<compile_context>
chip_gen: v7x
topology: tpu7x:2x2x1
jax: 0.10.0
libtpu: 0.0.40
codegen_flags: <defaults>
</compile_context>

<pallas_src>
import jax
import jax.numpy as jnp
from jax.experimental import pallas as pl
from jax.experimental.pallas import tpu as pltpu

H = 64        # LSTM hidden size
F1 = 32       # fc1 output size
TILE_B = 128  # batch tile: fills MXU rows on v5e; v6e/v7x take it in one pass.


def lstm_soh_kernel(x_ref, w_ih_ref, w_hh_ref, b_ref,
                    w1_ref, b1_ref, w2_ref, b2_ref, out_ref):
    T, TB, _ = x_ref.shape

    w_ih = w_ih_ref[...]        # (1, 4H)  f32, gate order [i, f, o, g]
    w_hh = w_hh_ref[...]        # (H, 4H)  bf16
    bias = b_ref[...]           # (1, 4H)  f32

    h = jnp.zeros((TB, H), jnp.float32)
    c = jnp.zeros((TB, H), jnp.float32)

    # T is small and static -> fully unrolled; every index below is static.
    for t in range(T):
        # Input contribution: independent of h, so the scheduler can overlap it
        # with the previous step's EUP/VPU work. (TB,1)*(1,4H) broadcast keeps
        # (sublane=batch, lane=gate) layout.
        xw_t = x_ref[t] * w_ih + bias                                 # (TB, 4H)
        gates = xw_t + jnp.dot(h.astype(jnp.bfloat16), w_hh,
                               preferred_element_type=jnp.float32)    # (TB, 4H)
        # [i|f] share the first 128-lane vreg; o and g are 64-lane slices of
        # the second one.  Sigmoid on 128+64 lanes, tanh on 64.
        if_g = jax.nn.sigmoid(gates[:, 0 * H:2 * H])                  # (TB, 2H)
        o_g = jax.nn.sigmoid(gates[:, 2 * H:3 * H])                   # (TB, H)
        g_g = jnp.tanh(gates[:, 3 * H:4 * H])                         # (TB, H)
        i_g = if_g[:, :H]
        f_g = if_g[:, H:]
        c = f_g * c + i_g * g_g
        h = o_g * jnp.tanh(c)

    # fc1 + ReLU on the MXU (bf16 operands, f32 accumulate); fc2 (width 1) as
    # VPU multiply + lane reduction.
    z1 = jnp.maximum(
        jnp.dot(h.astype(jnp.bfloat16), w1_ref[...],
                preferred_element_type=jnp.float32) + b1_ref[...], 0.0)   # (TB, F1)
    out_col = jnp.sum(z1 * w2_ref[...], axis=-1, keepdims=True) + b2_ref[...]  # (TB,1)
    # Lane-dense store: one unmasked (1, TB) vst instead of masked (TB, 1).
    out_ref[...] = out_col.T.astype(out_ref.dtype)


def lstm_soh_predictor(x, kp):
    """x: (B, T, 1) float32, batch_first like the PyTorch module."""
    B, T, _ = x.shape
    num_tiles = pl.cdiv(B, TILE_B)
    B_pad = num_tiles * TILE_B

    # (B, T, 1) -> (T, B_pad, 1): batch on sublanes (padded rows are zeros and
    # sliced away at the end).
    x_tb = jnp.transpose(x, (1, 0, 2))
    if B_pad != B:
        x_tb = jnp.pad(x_tb, ((0, 0), (0, B_pad - B), (0, 0)))

    const2 = lambda b: (0, 0)   # weights stay VMEM-resident across the grid
    out = pl.pallas_call(
        lstm_soh_kernel,
        out_shape=jax.ShapeDtypeStruct((1, B_pad), jnp.float32),
        grid=(num_tiles,),
        in_specs=[
            pl.BlockSpec((T, TILE_B, 1), lambda b: (0, b, 0)),   # x tile
            pl.BlockSpec((1, 4 * H), const2),                    # w_ih
            pl.BlockSpec((H, 4 * H), const2),                    # w_hh (bf16)
            pl.BlockSpec((1, 4 * H), const2),                    # bias
            pl.BlockSpec((H, F1), const2),                       # w1 (bf16)
            pl.BlockSpec((1, F1), const2),                       # b1
            pl.BlockSpec((1, F1), const2),                       # w2
            pl.BlockSpec((1, 1), const2),                        # b2
        ],
        out_specs=pl.BlockSpec((1, TILE_B), lambda b: (0, b)),
        compiler_params=pltpu.CompilerParams(
            dimension_semantics=("parallel",)),
    )(x_tb,
      kp["w_ih"], kp["w_hh"], kp["bias"],
      kp["w1"], kp["b1"], kp["w2"], kp["b2"])
    return out[0, :B, None]                                       # (B, 1)


def init_torch_params(key):
    """Deterministic synthetic parameters with exact PyTorch-module shapes."""
    ks = jax.random.split(key, 8)
    s = 0.1
    return {
        "weight_ih": s * jax.random.normal(ks[0], (4 * H, 1), jnp.float32),
        "weight_hh": s * jax.random.normal(ks[1], (4 * H, H), jnp.float32),
        "bias_ih":   s * jax.random.normal(ks[2], (4 * H,), jnp.float32),
        "bias_hh":   s * jax.random.normal(ks[3], (4 * H,), jnp.float32),
        "fc1_w":     s * jax.random.normal(ks[4], (F1, H), jnp.float32),
        "fc1_b":     s * jax.random.normal(ks[5], (F1,), jnp.float32),
        "fc2_w":     s * jax.random.normal(ks[6], (1, F1), jnp.float32),
        "fc2_b":     s * jax.random.normal(ks[7], (1,), jnp.float32),
    }


def prepare_kernel_params(tp):
    """Transpose / permute torch-shaped weights into the kernel layout.

    Gate order is permuted from PyTorch's [i, f, g, o] to [i, f, o, g] so the
    kernel slices i/f from one 128-lane vreg and o/g from the other.  Matmul
    operands (w_hh, w1) are stored in bf16; everything else stays f32.
    """
    perm = jnp.concatenate([jnp.arange(0, 2 * H),        # i, f
                            jnp.arange(3 * H, 4 * H),    # o
                            jnp.arange(2 * H, 3 * H)])   # g
    return {
        "w_ih": tp["weight_ih"][perm, :].T,                           # (1, 4H)
        "w_hh": tp["weight_hh"][perm, :].T.astype(jnp.bfloat16),      # (H, 4H)
        "bias": (tp["bias_ih"] + tp["bias_hh"])[perm][None, :],       # (1, 4H)
        "w1":   tp["fc1_w"].T.astype(jnp.bfloat16),                   # (H, 32)
        "b1":   tp["fc1_b"][None, :],                                 # (1, 32)
        "w2":   tp["fc2_w"],                                          # (1, 32)
        "b2":   tp["fc2_b"][None, :],                                 # (1, 1)
    }


def reference(x, tp):
    """Pure-JAX f32 reference with PyTorch semantics (gate order [i, f, g, o])."""
    B, T, _ = x.shape
    w_ih = tp["weight_ih"]                  # (4H, 1)
    w_hh = tp["weight_hh"]                  # (4H, H)
    b = tp["bias_ih"] + tp["bias_hh"]       # (4H,)
    h = jnp.zeros((B, H), jnp.float32)
    c = jnp.zeros((B, H), jnp.float32)
    for t in range(T):
        x_t = x[:, t, :]                    # (B, 1)
        gates = x_t @ w_ih.T + h @ w_hh.T + b
        i = jax.nn.sigmoid(gates[:, 0 * H:1 * H])
        f = jax.nn.sigmoid(gates[:, 1 * H:2 * H])
        g = jnp.tanh(gates[:, 2 * H:3 * H])
        o = jax.nn.sigmoid(gates[:, 3 * H:4 * H])
        c = f * c + i * g
        h = o * jnp.tanh(c)
    z1 = jnp.maximum(h @ tp["fc1_w"].T + tp["fc1_b"], 0.0)
    return z1 @ tp["fc2_w"].T + tp["fc2_b"]


if __name__ == "__main__":
    key = jax.random.PRNGKey(0)
    k_param, k_x = jax.random.split(key)
    tp = init_torch_params(k_param)
    kp = prepare_kernel_params(tp)

    B, T = 2, 8
    x = jax.random.normal(k_x, (B, T, 1), jnp.float32)

    out = lstm_soh_predictor(x, kp)
    out = jax.block_until_ready(out)

    ref = reference(x, tp)
    assert out.shape == (B, 1)
    # bf16 matmul operands through the 8-step recurrence -> loosened tolerance.
    assert jnp.allclose(out, ref, atol=2e-2, rtol=2e-2), (out, ref)
    print("KERNEL_OK")
</pallas_src>

<mosaic_0001>
module attributes {stable_mosaic.version = 11 : i64} {
  func.func @lstm_soh_kernel(%arg0: i32, %arg1: memref<8x128x1xf32, #tpu.memory_space<vmem>>, %arg2: memref<1x256xf32, #tpu.memory_space<vmem>>, %arg3: memref<64x256xbf16, #tpu.memory_space<vmem>>, %arg4: memref<1x256xf32, #tpu.memory_space<vmem>>, %arg5: memref<64x32xbf16, #tpu.memory_space<vmem>>, %arg6: memref<1x32xf32, #tpu.memory_space<vmem>>, %arg7: memref<1x32xf32, #tpu.memory_space<vmem>>, %arg8: memref<1x1xf32, #tpu.memory_space<vmem>>, %arg9: memref<1x128xf32, #tpu.memory_space<vmem>>) attributes {dimension_semantics = [#tpu.dimension_semantics<parallel>], iteration_bounds = array<i64: 1>, scalar_prefetch = 0 : i64, scratch_operands = 0 : i64, tpu.core_type = #tpu.core_type<tc>, window_params = [{transform_indices = @transform_0, window_bounds = array<i64: 8, 128, 1>}, {pipeline_mode = #tpu.pipeline_mode<synchronous>, transform_indices = @transform_1, window_bounds = array<i64: 1, 256>}, {pipeline_mode = #tpu.pipeline_mode<synchronous>, transform_indices = @transform_2, window_bounds = array<i64: 64, 256>}, {pipeline_mode = #tpu.pipeline_mode<synchronous>, transform_indices = @transform_3, window_bounds = array<i64: 1, 256>}, {pipeline_mode = #tpu.pipeline_mode<synchronous>, transform_indices = @transform_4, window_bounds = array<i64: 64, 32>}, {pipeline_mode = #tpu.pipeline_mode<synchronous>, transform_indices = @transform_5, window_bounds = array<i64: 1, 32>}, {pipeline_mode = #tpu.pipeline_mode<synchronous>, transform_indices = @transform_6, window_bounds = array<i64: 1, 32>}, {pipeline_mode = #tpu.pipeline_mode<synchronous>, transform_indices = @transform_7, window_bounds = array<i64: 1, 1>}, {transform_indices = @transform_8, window_bounds = array<i64: 1, 128>}]} {
    %c0 = arith.constant 0 : index
    %c0_0 = arith.constant 0 : index
    %0 = vector.load %arg2[%c0, %c0_0] : memref<1x256xf32, #tpu.memory_space<vmem>>, vector<1x256xf32>
    %c0_1 = arith.constant 0 : index
    %c0_2 = arith.constant 0 : index
    %1 = vector.load %arg3[%c0_1, %c0_2] : memref<64x256xbf16, #tpu.memory_space<vmem>>, vector<64x256xbf16>
    %c0_3 = arith.constant 0 : index
    %c0_4 = arith.constant 0 : index
    %2 = vector.load %arg4[%c0_3, %c0_4] : memref<1x256xf32, #tpu.memory_space<vmem>>, vector<1x256xf32>
    %cst = arith.constant 0.000000e+00 : f32
    %3 = vector.broadcast %cst : f32 to vector<128x64xf32>
    %cst_5 = arith.constant 0.000000e+00 : f32
    %4 = vector.broadcast %cst_5 : f32 to vector<128x64xf32>
    %c0_6 = arith.constant 0 : index
    %c0_7 = arith.constant 0 : index
    %c0_8 = arith.constant 0 : index
    %5 = vector.load %arg1[%c0_6, %c0_7, %c0_8] : memref<8x128x1xf32, #tpu.memory_space<vmem>>, vector<1x128x1xf32>
    %6 = vector.shape_cast %5 : vector<1x128x1xf32> to vector<128x1xf32>
    %7 = vector.broadcast %6 : vector<128x1xf32> to vector<128x256xf32>
    %8 = vector.broadcast %0 : vector<1x256xf32> to vector<128x256xf32>
    %9 = arith.mulf %7, %8 : vector<128x256xf32>
    %10 = vector.broadcast %2 : vector<1x256xf32> to vector<128x256xf32>
    %11 = arith.addf %9, %10 : vector<128x256xf32>
    %12 = arith.truncf %3 : vector<128x64xf32> to vector<128x64xbf16>
    %cst_9 = arith.constant dense<0.000000e+00> : vector<128x256xf32>
    %13 = tpu.matmul %12, %1, %cst_9 {dimension_numbers = #tpu.dot_dimension_numbers<[1], [0], [0], [1], [0, 0, 1, 1], [], []>} : vector<128x64xbf16>, vector<64x256xbf16>, vector<128x256xf32> -> vector<128x256xf32>
    %14 = arith.addf %11, %13 : vector<128x256xf32>
    %15 = vector.extract_strided_slice %14 {offsets = [0, 0], sizes = [128, 128], strides = [1, 1]} : vector<128x256xf32> to vector<128x128xf32>
    %16 = arith.negf %15 : vector<128x128xf32>
    %17 = math.exp %16 : vector<128x128xf32>
    %cst_10 = arith.constant 1.000000e+00 : f32
    %18 = vector.broadcast %cst_10 : f32 to vector<128x128xf32>
    %19 = arith.addf %18, %17 : vector<128x128xf32>
    %20 = arith.divf %18, %19 : vector<128x128xf32>
    %21 = vector.extract_strided_slice %14 {offsets = [0, 128], sizes = [128, 64], strides = [1, 1]} : vector<128x256xf32> to vector<128x64xf32>
    %22 = arith.negf %21 : vector<128x64xf32>
    %23 = math.exp %22 : vector<128x64xf32>
    %cst_11 = arith.constant 1.000000e+00 : f32
    %24 = vector.broadcast %cst_11 : f32 to vector<128x64xf32>
    %25 = arith.addf %24, %23 : vector<128x64xf32>
    %26 = arith.divf %24, %25 : vector<128x64xf32>
    %27 = vector.extract_strided_slice %14 {offsets = [0, 192], sizes = [128, 64], strides = [1, 1]} : vector<128x256xf32> to vector<128x64xf32>
    %28 = math.tanh %27 : vector<128x64xf32>
    %29 = vector.extract_strided_slice %20 {offsets = [0, 0], sizes = [128, 64], strides = [1, 1]} : vector<128x128xf32> to vector<128x64xf32>
    %30 = vector.extract_strided_slice %20 {offsets = [0, 64], sizes = [128, 64], strides = [1, 1]} : vector<128x128xf32> to vector<128x64xf32>
    %31 = arith.mulf %30, %4 : vector<128x64xf32>
    %32 = arith.mulf %29, %28 : vector<128x64xf32>
    %33 = arith.addf %31, %32 : vector<128x64xf32>
    %34 = math.tanh %33 : vector<128x64xf32>
    %35 = arith.mulf %26, %34 : vector<128x64xf32>
    %c1 = arith.constant 1 : index
    %c0_12 = arith.constant 0 : index
    %c0_13 = arith.constant 0 : index
    %36 = vector.load %arg1[%c1, %c0_12, %c0_13] : memref<8x128x1xf32, #tpu.memory_space<vmem>>, vector<1x128x1xf32>
    %37 = vector.shape_cast %36 : vector<1x128x1xf32> to vector<128x1xf32>
    %38 = vector.broadcast %37 : vector<128x1xf32> to vector<128x256xf32>
    %39 = vector.broadcast %0 : vector<1x256xf32> to vector<128x256xf32>
    %40 = arith.mulf %38, %39 : vector<128x256xf32>
    %41 = vector.broadcast %2 : vector<1x256xf32> to vector<128x256xf32>
    %42 = arith.addf %40, %41 : vector<128x256xf32>
    %43 = arith.truncf %35 : vector<128x64xf32> to vector<128x64xbf16>
    %cst_14 = arith.constant dense<0.000000e+00> : vector<128x256xf32>
    %44 = tpu.matmul %43, %1, %cst_14 {dimension_numbers = #tpu.dot_dimension_numbers<[1], [0], [0], [1], [0, 0, 1, 1], [], []>} : vector<128x64xbf16>, vector<64x256xbf16>, vector<128x256xf32> -> vector<128x256xf32>
    %45 = arith.addf %42, %44 : vector<128x256xf32>
    %46 = vector.extract_strided_slice %45 {offsets = [0, 0], sizes = [128, 128], strides = [1, 1]} : vector<128x256xf32> to vector<128x128xf32>
    %47 = arith.negf %46 : vector<128x128xf32>
    %48 = math.exp %47 : vector<128x128xf32>
    %cst_15 = arith.constant 1.000000e+00 : f32
    %49 = vector.broadcast %cst_15 : f32 to vector<128x128xf32>
    %50 = arith.addf %49, %48 : vector<128x128xf32>
    %51 = arith.divf %49, %50 : vector<128x128xf32>
    %52 = vector.extract_strided_slice %45 {offsets = [0, 128], sizes = [128, 64], strides = [1, 1]} : vector<128x256xf32> to vector<128x64xf32>
    %53 = arith.negf %52 : vector<128x64xf32>
    %54 = math.exp %53 : vector<128x64xf32>
    %cst_16 = arith.constant 1.000000e+00 : f32
    %55 = vector.broadcast %cst_16 : f32 to vector<128x64xf32>
    %56 = arith.addf %55, %54 : vector<128x64xf32>
    %57 = arith.divf %55, %56 : vector<128x64xf32>
    %58 = vector.extract_strided_slice %45 {offsets = [0, 192], sizes = [128, 64], strides = [1, 1]} : vector<128x256xf32> to vector<128x64xf32>
    %59 = math.tanh %58 : vector<128x64xf32>
    %60 = vector.extract_strided_slice %51 {offsets = [0, 0], sizes = [128, 64], strides = [1, 1]} : vector<128x128xf32> to vector<128x64xf32>
    %61 = vector.extract_strided_slice %51 {offsets = [0, 64], sizes = [128, 64], strides = [1, 1]} : vector<128x128xf32> to vector<128x64xf32>
    %62 = arith.mulf %61, %33 : vector<128x64xf32>
    %63 = arith.mulf %60, %59 : vector<128x64xf32>
    %64 = arith.addf %62, %63 : vector<128x64xf32>
    %65 = math.tanh %64 : vector<128x64xf32>
    %66 = arith.mulf %57, %65 : vector<128x64xf32>
    %c2 = arith.constant 2 : index
    %c0_17 = arith.constant 0 : index
    %c0_18 = arith.constant 0 : index
    %67 = vector.load %arg1[%c2, %c0_17, %c0_18] : memref<8x128x1xf32, #tpu.memory_space<vmem>>, vector<1x128x1xf32>
    %68 = vector.shape_cast %67 : vector<1x128x1xf32> to vector<128x1xf32>
    %69 = vector.broadcast %68 : vector<128x1xf32> to vector<128x256xf32>
    %70 = vector.broadcast %0 : vector<1x256xf32> to vector<128x256xf32>
    %71 = arith.mulf %69, %70 : vector<128x256xf32>
    %72 = vector.broadcast %2 : vector<1x256xf32> to vector<128x256xf32>
    %73 = arith.addf %71, %72 : vector<128x256xf32>
    %74 = arith.truncf %66 : vector<128x64xf32> to vector<128x64xbf16>
    %cst_19 = arith.constant dense<0.000000e+00> : vector<128x256xf32>
    %75 = tpu.matmul %74, %1, %cst_19 {dimension_numbers = #tpu.dot_dimension_numbers<[1], [0], [0], [1], [0, 0, 1, 1], [], []>} : vector<128x64xbf16>, vector<64x256xbf16>, vector<128x256xf32> -> vector<128x256xf32>
    %76 = arith.addf %73, %75 : vector<128x256xf32>
    %77 = vector.extract_strided_slice %76 {offsets = [0, 0], sizes = [128, 128], strides = [1, 1]} : vector<128x256xf32> to vector<128x128xf32>
    %78 = arith.negf %77 : vector<128x128xf32>
    %79 = math.exp %78 : vector<128x128xf32>
    %cst_20 = arith.constant 1.000000e+00 : f32
    %80 = vector.broadcast %cst_20 : f32 to vector<128x128xf32>
    %81 = arith.addf %80, %79 : vector<128x128xf32>
    %82 = arith.divf %80, %81 : vector<128x128xf32>
    %83 = vector.extract_strided_slice %76 {offsets = [0, 128], sizes = [128, 64], strides = [1, 1]} : vector<128x256xf32> to vector<128x64xf32>
    %84 = arith.negf %83 : vector<128x64xf32>
    %85 = math.exp %84 : vector<128x64xf32>
    %cst_21 = arith.constant 1.000000e+00 : f32
    %86 = vector.broadcast %cst_21 : f32 to vector<128x64xf32>
    %87 = arith.addf %86, %85 : vector<128x64xf32>
    %88 = arith.divf %86, %87 : vector<128x64xf32>
    %89 = vector.extract_strided_slice %76 {offsets = [0, 192], sizes = [128, 64], strides = [1, 1]} : vector<128x256xf32> to vector<128x64xf32>
    %90 = math.tanh %89 : vector<128x64xf32>
    %91 = vector.extract_strided_slice %82 {offsets = [0, 0], sizes = [128, 64], strides = [1, 1]} : vector<128x128xf32> to vector<128x64xf32>
    %92 = vector.extract_strided_slice %82 {offsets = [0, 64], sizes = [128, 64], strides = [1, 1]} : vector<128x128xf32> to vector<128x64xf32>
    %93 = arith.mulf %92, %64 : vector<128x64xf32>
    %94 = arith.mulf %91, %90 : vector<128x64xf32>
    %95 = arith.addf %93, %94 : vector<128x64xf32>
    %96 = math.tanh %95 : vector<128x64xf32>
    %97 = arith.mulf %88, %96 : vector<128x64xf32>
    %c3 = arith.constant 3 : index
    %c0_22 = arith.constant 0 : index
    %c0_23 = arith.constant 0 : index
    %98 = vector.load %arg1[%c3, %c0_22, %c0_23] : memref<8x128x1xf32, #tpu.memory_space<vmem>>, vector<1x128x1xf32>
    %99 = vector.shape_cast %98 : vector<1x128x1xf32> to vector<128x1xf32>
    %100 = vector.broadcast %99 : vector<128x1xf32> to vector<128x256xf32>
    %101 = vector.broadcast %0 : vector<1x256xf32> to vector<128x256xf32>
    %102 = arith.mulf %100, %101 : vector<128x256xf32>
    %103 = vector.broadcast %2 : vector<1x256xf32> to vector<128x256xf32>
    %104 = arith.addf %102, %103 : vector<128x256xf32>
    %105 = arith.truncf %97 : vector<128x64xf32> to vector<128x64xbf16>
    %cst_24 = arith.constant dense<0.000000e+00> : vector<128x256xf32>
    %106 = tpu.matmul %105, %1, %cst_24 {dimension_numbers = #tpu.dot_dimension_numbers<[1], [0], [0], [1], [0, 0, 1, 1], [], []>} : vector<128x64xbf16>, vector<64x256xbf16>, vector<128x256xf32> -> vector<128x256xf32>
    %107 = arith.addf %104, %106 : vector<128x256xf32>
    %108 = vector.extract_strided_slice %107 {offsets = [0, 0], sizes = [128, 128], strides = [1, 1]} : vector<128x256xf32> to vector<128x128xf32>
    %109 = arith.negf %108 : vector<128x128xf32>
    %110 = math.exp %109 : vector<128x128xf32>
    %cst_25 = arith.constant 1.000000e+00 : f32
    %111 = vector.broadcast %cst_25 : f32 to vector<128x128xf32>
    %112 = arith.addf %111, %110 : vector<128x128xf32>
    %113 = arith.divf %111, %112 : vector<128x128xf32>
    %114 = vector.extract_strided_slice %107 {offsets = [0, 128], sizes = [128, 64], strides = [1, 1]} : vector<128x256xf32> to vector<128x64xf32>
    %115 = arith.negf %114 : vector<128x64xf32>
    %116 = math.exp %115 : vector<128x64xf32>
    %cst_26 = arith.constant 1.000000e+00 : f32
    %117 = vector.broadcast %cst_26 : f32 to vector<128x64xf32>
    %118 = arith.addf %117, %116 : vector<128x64xf32>
    %119 = arith.divf %117, %118 : vector<128x64xf32>
    %120 = vector.extract_strided_slice %107 {offsets = [0, 192], sizes = [128, 64], strides = [1, 1]} : vector<128x256xf32> to vector<128x64xf32>
    %121 = math.tanh %120 : vector<128x64xf32>
    %122 = vector.extract_strided_slice %113 {offsets = [0, 0], sizes = [128, 64], strides = [1, 1]} : vector<128x128xf32> to vector<128x64xf32>
    %123 = vector.extract_strided_slice %113 {offsets = [0, 64], sizes = [128, 64], strides = [1, 1]} : vector<128x128xf32> to vector<128x64xf32>
    %124 = arith.mulf %123, %95 : vector<128x64xf32>
    %125 = arith.mulf %122, %121 : vector<128x64xf32>
    %126 = arith.addf %124, %125 : vector<128x64xf32>
    %127 = math.tanh %126 : vector<128x64xf32>
    %128 = arith.mulf %119, %127 : vector<128x64xf32>
    %c4 = arith.constant 4 : index
    %c0_27 = arith.constant 0 : index
    %c0_28 = arith.constant 0 : index
    %129 = vector.load %arg1[%c4, %c0_27, %c0_28] : memref<8x128x1xf32, #tpu.memory_space<vmem>>, vector<1x128x1xf32>
    %130 = vector.shape_cast %129 : vector<1x128x1xf32> to vector<128x1xf32>
    %131 = vector.broadcast %130 : vector<128x1xf32> to vector<128x256xf32>
    %132 = vector.broadcast %0 : vector<1x256xf32> to vector<128x256xf32>
    %133 = arith.mulf %131, %132 : vector<128x256xf32>
    %134 = vector.broadcast %2 : vector<1x256xf32> to vector<128x256xf32>
    %135 = arith.addf %133, %134 : vector<128x256xf32>
    %136 = arith.truncf %128 : vector<128x64xf32> to vector<128x64xbf16>
    %cst_29 = arith.constant dense<0.000000e+00> : vector<128x256xf32>
    %137 = tpu.matmul %136, %1, %cst_29 {dimension_numbers = #tpu.dot_dimension_numbers<[1], [0], [0], [1], [0, 0, 1, 1], [], []>} : vector<128x64xbf16>, vector<64x256xbf16>, vector<128x256xf32> -> vector<128x256xf32>
    %138 = arith.addf %135, %137 : vector<128x256xf32>
    %139 = vector.extract_strided_slice %138 {offsets = [0, 0], sizes = [128, 128], strides = [1, 1]} : vector<128x256xf32> to vector<128x128xf32>
    %140 = arith.negf %139 : vector<128x128xf32>
    %141 = math.exp %140 : vector<128x128xf32>
    %cst_30 = arith.constant 1.000000e+00 : f32
    %142 = vector.broadcast %cst_30 : f32 to vector<128x128xf32>
    %143 = arith.addf %142, %141 : vector<128x128xf32>
    %144 = arith.divf %142, %143 : vector<128x128xf32>
    %145 = vector.extract_strided_slice %138 {offsets = [0, 128], sizes = [128, 64], strides = [1, 1]} : vector<128x256xf32> to vector<128x64xf32>
    %146 = arith.negf %145 : vector<128x64xf32>
    %147 = math.exp %146 : vector<128x64xf32>
    %cst_31 = arith.constant 1.000000e+00 : f32
    %148 = vector.broadcast %cst_31 : f32 to vector<128x64xf32>
    %149 = arith.addf %148, %147 : vector<128x64xf32>
    %150 = arith.divf %148, %149 : vector<128x64xf32>
    %151 = vector.extract_strided_slice %138 {offsets = [0, 192], sizes = [128, 64], strides = [1, 1]} : vector<128x256xf32> to vector<128x64xf32>
    %152 = math.tanh %151 : vector<128x64xf32>
    %153 = vector.extract_strided_slice %144 {offsets = [0, 0], sizes = [128, 64], strides = [1, 1]} : vector<128x128xf32> to vector<128x64xf32>
    %154 = vector.extract_strided_slice %144 {offsets = [0, 64], sizes = [128, 64], strides = [1, 1]} : vector<128x128xf32> to vector<128x64xf32>
    %155 = arith.mulf %154, %126 : vector<128x64xf32>
    %156 = arith.mulf %153, %152 : vector<128x64xf32>
    %157 = arith.addf %155, %156 : vector<128x64xf32>
    %158 = math.tanh %157 : vector<128x64xf32>
    %159 = arith.mulf %150, %158 : vector<128x64xf32>
    %c5 = arith.constant 5 : index
    %c0_32 = arith.constant 0 : index
    %c0_33 = arith.constant 0 : index
    %160 = vector.load %arg1[%c5, %c0_32, %c0_33] : memref<8x128x1xf32, #tpu.memory_space<vmem>>, vector<1x128x1xf32>
    %161 = vector.shape_cast %160 : vector<1x128x1xf32> to vector<128x1xf32>
    %162 = vector.broadcast %161 : vector<128x1xf32> to vector<128x256xf32>
    %163 = vector.broadcast %0 : vector<1x256xf32> to vector<128x256xf32>
    %164 = arith.mulf %162, %163 : vector<128x256xf32>
    %165 = vector.broadcast %2 : vector<1x256xf32> to vector<128x256xf32>
    %166 = arith.addf %164, %165 : vector<128x256xf32>
    %167 = arith.truncf %159 : vector<128x64xf32> to vector<128x64xbf16>
    %cst_34 = arith.constant dense<0.000000e+00> : vector<128x256xf32>
    %168 = tpu.matmul %167, %1, %cst_34 {dimension_numbers = #tpu.dot_dimension_numbers<[1], [0], [0], [1], [0, 0, 1, 1], [], []>} : vector<128x64xbf16>, vector<64x256xbf16>, vector<128x256xf32> -> vector<128x256xf32>
    %169 = arith.addf %166, %168 : vector<128x256xf32>
    %170 = vector.extract_strided_slice %169 {offsets = [0, 0], sizes = [128, 128], strides = [1, 1]} : vector<128x256xf32> to vector<128x128xf32>
    %171 = arith.negf %170 : vector<128x128xf32>
    %172 = math.exp %171 : vector<128x128xf32>
    %cst_35 = arith.constant 1.000000e+00 : f32
    %173 = vector.broadcast %cst_35 : f32 to vector<128x128xf32>
    %174 = arith.addf %173, %172 : vector<128x128xf32>
    %175 = arith.divf %173, %174 : vector<128x128xf32>
    %176 = vector.extract_strided_slice %169 {offsets = [0, 128], sizes = [128, 64], strides = [1, 1]} : vector<128x256xf32> to vector<128x64xf32>
    %177 = arith.negf %176 : vector<128x64xf32>
    %178 = math.exp %177 : vector<128x64xf32>
    %cst_36 = arith.constant 1.000000e+00 : f32
    %179 = vector.broadcast %cst_36 : f32 to vector<128x64xf32>
    %180 = arith.addf %179, %178 : vector<128x64xf32>
    %181 = arith.divf %179, %180 : vector<128x64xf32>
    %182 = vector.extract_strided_slice %169 {offsets = [0, 192], sizes = [128, 64], strides = [1, 1]} : vector<128x256xf32> to vector<128x64xf32>
    %183 = math.tanh %182 : vector<128x64xf32>
    %184 = vector.extract_strided_slice %175 {offsets = [0, 0], sizes = [128, 64], strides = [1, 1]} : vector<128x128xf32> to vector<128x64xf32>
    %185 = vector.extract_strided_slice %175 {offsets = [0, 64], sizes = [128, 64], strides = [1, 1]} : vector<128x128xf32> to vector<128x64xf32>
    %186 = arith.mulf %185, %157 : vector<128x64xf32>
    %187 = arith.mulf %184, %183 : vector<128x64xf32>
    %188 = arith.addf %186, %187 : vector<128x64xf32>
    %189 = math.tanh %188 : vector<128x64xf32>
    %190 = arith.mulf %181, %189 : vector<128x64xf32>
    %c6 = arith.constant 6 : index
    %c0_37 = arith.constant 0 : index
    %c0_38 = arith.constant 0 : index
    %191 = vector.load %arg1[%c6, %c0_37, %c0_38] : memref<8x128x1xf32, #tpu.memory_space<vmem>>, vector<1x128x1xf32>
    %192 = vector.shape_cast %191 : vector<1x128x1xf32> to vector<128x1xf32>
    %193 = vector.broadcast %192 : vector<128x1xf32> to vector<128x256xf32>
    %194 = vector.broadcast %0 : vector<1x256xf32> to vector<128x256xf32>
    %195 = arith.mulf %193, %194 : vector<128x256xf32>
    %196 = vector.broadcast %2 : vector<1x256xf32> to vector<128x256xf32>
    %197 = arith.addf %195, %196 : vector<128x256xf32>
    %198 = arith.truncf %190 : vector<128x64xf32> to vector<128x64xbf16>
    %cst_39 = arith.constant dense<0.000000e+00> : vector<128x256xf32>
    %199 = tpu.matmul %198, %1, %cst_39 {dimension_numbers = #tpu.dot_dimension_numbers<[1], [0], [0], [1], [0, 0, 1, 1], [], []>} : vector<128x64xbf16>, vector<64x256xbf16>, vector<128x256xf32> -> vector<128x256xf32>
    %200 = arith.addf %197, %199 : vector<128x256xf32>
    %201 = vector.extract_strided_slice %200 {offsets = [0, 0], sizes = [128, 128], strides = [1, 1]} : vector<128x256xf32> to vector<128x128xf32>
    %202 = arith.negf %201 : vector<128x128xf32>
    %203 = math.exp %202 : vector<128x128xf32>
    %cst_40 = arith.constant 1.000000e+00 : f32
    %204 = vector.broadcast %cst_40 : f32 to vector<128x128xf32>
    %205 = arith.addf %204, %203 : vector<128x128xf32>
    %206 = arith.divf %204, %205 : vector<128x128xf32>
    %207 = vector.extract_strided_slice %200 {offsets = [0, 128], sizes = [128, 64], strides = [1, 1]} : vector<128x256xf32> to vector<128x64xf32>
    %208 = arith.negf %207 : vector<128x64xf32>
    %209 = math.exp %208 : vector<128x64xf32>
    %cst_41 = arith.constant 1.000000e+00 : f32
    %210 = vector.broadcast %cst_41 : f32 to vector<128x64xf32>
    %211 = arith.addf %210, %209 : vector<128x64xf32>
    %212 = arith.divf %210, %211 : vector<128x64xf32>
    %213 = vector.extract_strided_slice %200 {offsets = [0, 192], sizes = [128, 64], strides = [1, 1]} : vector<128x256xf32> to vector<128x64xf32>
    %214 = math.tanh %213 : vector<128x64xf32>
    %215 = vector.extract_strided_slice %206 {offsets = [0, 0], sizes = [128, 64], strides = [1, 1]} : vector<128x128xf32> to vector<128x64xf32>
    %216 = vector.extract_strided_slice %206 {offsets = [0, 64], sizes = [128, 64], strides = [1, 1]} : vector<128x128xf32> to vector<128x64xf32>
    %217 = arith.mulf %216, %188 : vector<128x64xf32>
    %218 = arith.mulf %215, %214 : vector<128x64xf32>
    %219 = arith.addf %217, %218 : vector<128x64xf32>
    %220 = math.tanh %219 : vector<128x64xf32>
    %221 = arith.mulf %212, %220 : vector<128x64xf32>
    %c7 = arith.constant 7 : index
    %c0_42 = arith.constant 0 : index
    %c0_43 = arith.constant 0 : index
    %222 = vector.load %arg1[%c7, %c0_42, %c0_43] : memref<8x128x1xf32, #tpu.memory_space<vmem>>, vector<1x128x1xf32>
    %223 = vector.shape_cast %222 : vector<1x128x1xf32> to vector<128x1xf32>
    %224 = vector.broadcast %223 : vector<128x1xf32> to vector<128x256xf32>
    %225 = vector.broadcast %0 : vector<1x256xf32> to vector<128x256xf32>
    %226 = arith.mulf %224, %225 : vector<128x256xf32>
    %227 = vector.broadcast %2 : vector<1x256xf32> to vector<128x256xf32>
    %228 = arith.addf %226, %227 : vector<128x256xf32>
    %229 = arith.truncf %221 : vector<128x64xf32> to vector<128x64xbf16>
    %cst_44 = arith.constant dense<0.000000e+00> : vector<128x256xf32>
    %230 = tpu.matmul %229, %1, %cst_44 {dimension_numbers = #tpu.dot_dimension_numbers<[1], [0], [0], [1], [0, 0, 1, 1], [], []>} : vector<128x64xbf16>, vector<64x256xbf16>, vector<128x256xf32> -> vector<128x256xf32>
    %231 = arith.addf %228, %230 : vector<128x256xf32>
    %232 = vector.extract_strided_slice %231 {offsets = [0, 0], sizes = [128, 128], strides = [1, 1]} : vector<128x256xf32> to vector<128x128xf32>
    %233 = arith.negf %232 : vector<128x128xf32>
    %234 = math.exp %233 : vector<128x128xf32>
    %cst_45 = arith.constant 1.000000e+00 : f32
    %235 = vector.broadcast %cst_45 : f32 to vector<128x128xf32>
    %236 = arith.addf %235, %234 : vector<128x128xf32>
    %237 = arith.divf %235, %236 : vector<128x128xf32>
    %238 = vector.extract_strided_slice %231 {offsets = [0, 128], sizes = [128, 64], strides = [1, 1]} : vector<128x256xf32> to vector<128x64xf32>
    %239 = arith.negf %238 : vector<128x64xf32>
    %240 = math.exp %239 : vector<128x64xf32>
    %cst_46 = arith.constant 1.000000e+00 : f32
    %241 = vector.broadcast %cst_46 : f32 to vector<128x64xf32>
    %242 = arith.addf %241, %240 : vector<128x64xf32>
    %243 = arith.divf %241, %242 : vector<128x64xf32>
    %244 = vector.extract_strided_slice %231 {offsets = [0, 192], sizes = [128, 64], strides = [1, 1]} : vector<128x256xf32> to vector<128x64xf32>
    %245 = math.tanh %244 : vector<128x64xf32>
    %246 = vector.extract_strided_slice %237 {offsets = [0, 0], sizes = [128, 64], strides = [1, 1]} : vector<128x128xf32> to vector<128x64xf32>
    %247 = vector.extract_strided_slice %237 {offsets = [0, 64], sizes = [128, 64], strides = [1, 1]} : vector<128x128xf32> to vector<128x64xf32>
    %248 = arith.mulf %247, %219 : vector<128x64xf32>
    %249 = arith.mulf %246, %245 : vector<128x64xf32>
    %250 = arith.addf %248, %249 : vector<128x64xf32>
    %251 = math.tanh %250 : vector<128x64xf32>
    %252 = arith.mulf %243, %251 : vector<128x64xf32>
    %253 = arith.truncf %252 : vector<128x64xf32> to vector<128x64xbf16>
    %c0_47 = arith.constant 0 : index
    %c0_48 = arith.constant 0 : index
    %254 = vector.load %arg5[%c0_47, %c0_48] : memref<64x32xbf16, #tpu.memory_space<vmem>>, vector<64x32xbf16>
    %cst_49 = arith.constant dense<0.000000e+00> : vector<128x32xf32>
    %255 = tpu.matmul %253, %254, %cst_49 {dimension_numbers = #tpu.dot_dimension_numbers<[1], [0], [0], [1], [0, 0, 1, 1], [], []>} : vector<128x64xbf16>, vector<64x32xbf16>, vector<128x32xf32> -> vector<128x32xf32>
    %c0_50 = arith.constant 0 : index
    %c0_51 = arith.constant 0 : index
    %256 = vector.load %arg6[%c0_50, %c0_51] : memref<1x32xf32, #tpu.memory_space<vmem>>, vector<1x32xf32>
    %257 = vector.broadcast %256 : vector<1x32xf32> to vector<128x32xf32>
    %258 = arith.addf %255, %257 : vector<128x32xf32>
    %cst_52 = arith.constant 0.000000e+00 : f32
    %259 = vector.broadcast %cst_52 : f32 to vector<128x32xf32>
    %260 = arith.maximumf %258, %259 : vector<128x32xf32>
    %c0_53 = arith.constant 0 : index
    %c0_54 = arith.constant 0 : index
    %261 = vector.load %arg7[%c0_53, %c0_54] : memref<1x32xf32, #tpu.memory_space<vmem>>, vector<1x32xf32>
    %262 = vector.broadcast %261 : vector<1x32xf32> to vector<128x32xf32>
    %263 = arith.mulf %260, %262 : vector<128x32xf32>
    %cst_55 = arith.constant dense<0.000000e+00> : vector<128xf32>
    %264 = vector.multi_reduction <add>, %263, %cst_55 [1] : vector<128x32xf32> to vector<128xf32>
    %265 = vector.shape_cast %264 : vector<128xf32> to vector<128x1xf32>
    %c0_56 = arith.constant 0 : index
    %c0_57 = arith.constant 0 : index
    %266 = vector.load %arg8[%c0_56, %c0_57] : memref<1x1xf32, #tpu.memory_space<vmem>>, vector<1x1xf32>
    %267 = vector.broadcast %266 : vector<1x1xf32> to vector<128x1xf32>
    %268 = arith.addf %265, %267 : vector<128x1xf32>
    %269 = tpu.transpose %268, [1, 0] : vector<128x1xf32> -> vector<1x128xf32>
    %c0_58 = arith.constant 0 : index
    %c0_59 = arith.constant 0 : index
    %270 = vector.load %arg9[%c0_58, %c0_59] : memref<1x128xf32, #tpu.memory_space<vmem>>, vector<1x128xf32>
    tpu.vector_store %arg9[%c0_58, %c0_59], %269 {strides = array<i32>} : memref<1x128xf32, #tpu.memory_space<vmem>>, vector<1x128xf32>,
    return
  }
  func.func @transform_0(%arg0: i32) -> (i32, i32, i32) {
    %c0_i32 = arith.constant 0 : i32
    %c0_i32_0 = arith.constant 0 : i32
    %c0_i32_1 = arith.constant 0 : i32
    return %c0_i32, %arg0, %c0_i32_0 : i32, i32, i32
  }
  func.func @transform_1(%arg0: i32) -> (i32, i32) {
    %c0_i32 = arith.constant 0 : i32
    %c0_i32_0 = arith.constant 0 : i32
    %c0_i32_1 = arith.constant 0 : i32
    return %c0_i32, %c0_i32_0 : i32, i32
  }
  func.func @transform_2(%arg0: i32) -> (i32, i32) {
    %c0_i32 = arith.constant 0 : i32
    %c0_i32_0 = arith.constant 0 : i32
    %c0_i32_1 = arith.constant 0 : i32
    return %c0_i32, %c0_i32_0 : i32, i32
  }
  func.func @transform_3(%arg0: i32) -> (i32, i32) {
    %c0_i32 = arith.constant 0 : i32
    %c0_i32_0 = arith.constant 0 : i32
    %c0_i32_1 = arith.constant 0 : i32
    return %c0_i32, %c0_i32_0 : i32, i32
  }
  func.func @transform_4(%arg0: i32) -> (i32, i32) {
    %c0_i32 = arith.constant 0 : i32
    %c0_i32_0 = arith.constant 0 : i32
    %c0_i32_1 = arith.constant 0 : i32
    return %c0_i32, %c0_i32_0 : i32, i32
  }
  func.func @transform_5(%arg0: i32) -> (i32, i32) {
    %c0_i32 = arith.constant 0 : i32
    %c0_i32_0 = arith.constant 0 : i32
    %c0_i32_1 = arith.constant 0 : i32
    return %c0_i32, %c0_i32_0 : i32, i32
  }
  func.func @transform_6(%arg0: i32) -> (i32, i32) {
    %c0_i32 = arith.constant 0 : i32
    %c0_i32_0 = arith.constant 0 : i32
    %c0_i32_1 = arith.constant 0 : i32
    return %c0_i32, %c0_i32_0 : i32, i32
  }
  func.func @transform_7(%arg0: i32) -> (i32, i32) {
    %c0_i32 = arith.constant 0 : i32
    %c0_i32_0 = arith.constant 0 : i32
    %c0_i32_1 = arith.constant 0 : i32
    return %c0_i32, %c0_i32_0 : i32, i32
  }
  func.func @transform_8(%arg0: i32) -> (i32, i32) {
    %c0_i32 = arith.constant 0 : i32
    %c0_i32_0 = arith.constant 0 : i32
    return %c0_i32, %arg0 : i32, i32
  }
}

</mosaic_0001>

<llo_original>
// kernel: tpu_custom_call.1
$region0: #{tpu_custom_call.1}
  #allocation0 [shape = 'u32[]', space=smem, size = 0x4, offset = 0x4, fixed_abs, tag = 'smem constant byte address 0x4 - core index']
  #allocation1 [shape = 'u32[144,128]{1,0:T(1,128)}', space=vmem, size = 0x12000, scoped, tag = 'internal scratch']
  #allocation2 [shape = 'f32[1,1]{1,0:T(1,128)S(1)}', space=vmem, size = 0x200, scoped, tag = 'scoped memory for tpu_custom_call.1']
  %s0 = inlined_call_operand.vmem [shape: f32[8,128,1], index: 0, kind: input, shape index: {}]
  %s1 = inlined_call_operand.vmem [shape: f32[1,256], index: 1, kind: input, shape index: {}]
  %s2 = inlined_call_operand.vmem [shape: bf16[64,256], index: 2, kind: input, shape index: {}]
  %s3 = inlined_call_operand.vmem [shape: f32[1,256], index: 3, kind: input, shape index: {}]
  %s4 = inlined_call_operand.vmem [shape: bf16[64,32], index: 4, kind: input, shape index: {}]
  %s5 = inlined_call_operand.vmem [shape: f32[1,32], index: 5, kind: input, shape index: {}]
  %s6 = inlined_call_operand.vmem [shape: f32[1,32], index: 6, kind: input, shape index: {}]
  %s7 = inlined_call_operand.<no memory space> [shape: f32[1,1], index: 7, kind: input, shape index: {}]
  %s8 = inlined_call_operand.hbm [shape: f32[1,128], index: 8, kind: output, shape index: {}]
  %s9 = sld [smem:[#allocation0]]
  $region42: #{tpu_custom_call.1} parent=0
    _
  %s11 = ssub.s32 1, %s9
  %s12 = scalar_select 0, %s11, %s9
  %v13 = vstv %s7
  %14 = vst [vmem:[#allocation2] sm:$0x1] %v13
  $region1: #{tpu_custom_call.1} parent=0
    #allocation3 [shape = 'u8[512]{0}', space=vmem, size = 0x400, scoped, tag = 'output window, operand 0, single buffered']
    #allocation4 [shape = 's32[1]{0}', space=sflag, size = 0x4, scoped, tag = 'scoped memory for tpu_custom_call.1']
    %15 = vsyncpa [#allocation4], 0
    // Predicated region
    $region2: #{tpu_custom_call.1} parent=1 // pred_check
      _
    $region3: #{tpu_custom_call.1} parent=1 // pred_check_branch
      %17 = sbr.rel (0) target = $region5
    $region4: #{tpu_custom_call.1} parent=1 // pred_region
      _
    $region5: #{tpu_custom_call.1} parent=1 // pred_fallthru
      _
    // Predicated region
    $region6: #{tpu_custom_call.1} parent=1 // pred_check
      _
    $region7: #{tpu_custom_call.1} parent=1 // pred_check_branch
      %19 = sbr.rel (0) target = $region9
    $region8: #{tpu_custom_call.1} parent=1 // pred_region
      _
    $region9: #{tpu_custom_call.1} parent=1 // pred_fallthru
      _
    // Predicated region
    $region10: #{tpu_custom_call.1} parent=1 // pred_check
      _
    $region11: #{tpu_custom_call.1} parent=1 // pred_check_branch
      %21 = sbr.rel (0) target = $region13
    $region12: #{tpu_custom_call.1} parent=1 // pred_region
      _
    $region13: #{tpu_custom_call.1} parent=1 // pred_fallthru
      _
    // Predicated region
    $region14: #{tpu_custom_call.1} parent=1 // pred_check
      _
    $region15: #{tpu_custom_call.1} parent=1 // pred_check_branch
      %23 = sbr.rel (0) target = $region17
    $region16: #{tpu_custom_call.1} parent=1 // pred_region
      _
    $region17: #{tpu_custom_call.1} parent=1 // pred_fallthru
      _
    // Predicated region
    $region18: #{tpu_custom_call.1} parent=1 // pred_check
      _
    $region19: #{tpu_custom_call.1} parent=1 // pred_check_branch
      %25 = sbr.rel (0) target = $region21
    $region20: #{tpu_custom_call.1} parent=1 // pred_region
      _
    $region21: #{tpu_custom_call.1} parent=1 // pred_fallthru
      _
    // Predicated region
    $region22: #{tpu_custom_call.1} parent=1 // pred_check
      _
    $region23: #{tpu_custom_call.1} parent=1 // pred_check_branch
      %27 = sbr.rel (0) target = $region25
    $region24: #{tpu_custom_call.1} parent=1 // pred_region
      _
    $region25: #{tpu_custom_call.1} parent=1 // pred_fallthru
      _
    // Predicated region
    $region26: #{tpu_custom_call.1} parent=1 // pred_check
      _
    $region27: #{tpu_custom_call.1} parent=1 // pred_check_branch
      %29 = sbr.rel (0) target = $region29
    $region28: #{tpu_custom_call.1} parent=1 // pred_region
      _
    $region29: #{tpu_custom_call.1} parent=1 // pred_fallthru
      _
    // Predicated region
    $region30: #{tpu_custom_call.1} parent=1 // pred_check
      _
    $region31: #{tpu_custom_call.1} parent=1 // pred_check_branch
      %31 = sbr.rel (0) target = $region33
    $region32: #{tpu_custom_call.1} parent=1 // pred_region
      _
    $region33: #{tpu_custom_call.1} parent=1 // pred_fallthru
      _
    %v33 = vld [vmem:[%s1] sm:$0x3]
    %v34 = vld [vmem:[%s2] sm:$0xff]
    %v35 = vld [vmem:[%s2 + $0x8] sm:$0xff]
    %v36 = vld [vmem:[%s2 + $0x10] sm:$0xff]
    %v37 = vld [vmem:[%s2 + $0x18] sm:$0xff]
    %v38 = vld [vmem:[%s2 + $0x20] sm:$0xff]
    %v39 = vld [vmem:[%s2 + $0x28] sm:$0xff]
    %v40 = vld [vmem:[%s2 + $0x30] sm:$0xff]
    %v41 = vld [vmem:[%s2 + $0x38] sm:$0xff]
    %v42 = vld [vmem:[%s3] sm:$0x3]
    %v43 = vld [vmem:[%s0] sm:$0xff]
    %v44 = vld [vmem:[%s0 + $0x8] sm:$0xff]
    %v45 = vld [vmem:[%s0 + $0x10] sm:$0xff]
    %v46 = vld [vmem:[%s0 + $0x18] sm:$0xff]
    %v47 = vld [vmem:[%s0 + $0x20] sm:$0xff]
    %v48 = vld [vmem:[%s0 + $0x28] sm:$0xff]
    %v49 = vld [vmem:[%s0 + $0x30] sm:$0xff]
    %v50 = vld [vmem:[%s0 + $0x38] sm:$0xff]
    %v51 = vld [vmem:[%s0 + $0x40] sm:$0xff]
    %v52 = vld [vmem:[%s0 + $0x48] sm:$0xff]
    %v53 = vld [vmem:[%s0 + $0x50] sm:$0xff]
    %v54 = vld [vmem:[%s0 + $0x58] sm:$0xff]
    %v55 = vld [vmem:[%s0 + $0x60] sm:$0xff]
    %v56 = vld [vmem:[%s0 + $0x68] sm:$0xff]
    %v57 = vld [vmem:[%s0 + $0x70] sm:$0xff]
    %v58 = vld [vmem:[%s0 + $0x78] sm:$0xff]
    %60 = vset.pattern.permute.xlu0 0
    %61 = vperm.xlu0 %60, %v43
    %v62 = vpop.permute.xlu0 %61
    %65 = vset.pattern.permute.xlu0 0
    %66 = vperm.xlu0 %65, %v44
    %v67 = vpop.permute.xlu0 %66
    %70 = vset.pattern.permute.xlu0 0
    %71 = vperm.xlu0 %70, %v45
    %v72 = vpop.permute.xlu0 %71
    %75 = vset.pattern.permute.xlu0 0
    %76 = vperm.xlu0 %75, %v46
    %v77 = vpop.permute.xlu0 %76
    %80 = vset.pattern.permute.xlu0 0
    %81 = vperm.xlu0 %80, %v47
    %v82 = vpop.permute.xlu0 %81
    %85 = vset.pattern.permute.xlu0 0
    %86 = vperm.xlu0 %85, %v48
    %v87 = vpop.permute.xlu0 %86
    %90 = vset.pattern.permute.xlu0 0
    %91 = vperm.xlu0 %90, %v49
    %v92 = vpop.permute.xlu0 %91
    %95 = vset.pattern.permute.xlu0 0
    %96 = vperm.xlu0 %95, %v50
    %v97 = vpop.permute.xlu0 %96
    %100 = vset.pattern.permute.xlu0 0
    %101 = vperm.xlu0 %100, %v51
    %v102 = vpop.permute.xlu0 %101
    %105 = vset.pattern.permute.xlu0 0
    %106 = vperm.xlu0 %105, %v52
    %v107 = vpop.permute.xlu0 %106
    %110 = vset.pattern.permute.xlu0 0
    %111 = vperm.xlu0 %110, %v53
    %v112 = vpop.permute.xlu0 %111
    %115 = vset.pattern.permute.xlu0 0
    %116 = vperm.xlu0 %115, %v54
    %v117 = vpop.permute.xlu0 %116
    %120 = vset.pattern.permute.xlu0 0
    %121 = vperm.xlu0 %120, %v55
    %v122 = vpop.permute.xlu0 %121
    %125 = vset.pattern.permute.xlu0 0
    %126 = vperm.xlu0 %125, %v56
    %v127 = vpop.permute.xlu0 %126
    %130 = vset.pattern.permute.xlu0 0
    %131 = vperm.xlu0 %130, %v57
    %v132 = vpop.permute.xlu0 %131
    %135 = vset.pattern.permute.xlu0 0
    %136 = vperm.xlu0 %135, %v58
    %v137 = vpop.permute.xlu0 %136
    %v140 = vlaneseq
    %v141 = vshrl.u32 %v140, 7
    %v142 = vsub.s32 0, %v141
    %v143 = vrot.slane %v33, %v142
    %v144 = vlaneseq
    %v145 = vshrl.u32 %v144, 7
    %v146 = vsub.s32 1, %v145
    %v147 = vrot.slane %v33, %v146
    %v150 = vmul.f32 %v62, %v143
    %v151 = vmul.f32 %v62, %v147
    %v152 = vmul.f32 %v67, %v143
    %v153 = vmul.f32 %v67, %v147
    %v154 = vmul.f32 %v72, %v143
    %v155 = vmul.f32 %v72, %v147
    %v156 = vmul.f32 %v77, %v143
    %v157 = vmul.f32 %v77, %v147
    %v158 = vmul.f32 %v82, %v143
    %v159 = vmul.f32 %v82, %v147
    %v160 = vmul.f32 %v87, %v143
    %v161 = vmul.f32 %v87, %v147
    %v162 = vmul.f32 %v92, %v143
    %v163 = vmul.f32 %v92, %v147
    %v164 = vmul.f32 %v97, %v143
    %v165 = vmul.f32 %v97, %v147
    %v166 = vmul.f32 %v102, %v143
    %v167 = vmul.f32 %v102, %v147
    %v168 = vmul.f32 %v107, %v143
    %v169 = vmul.f32 %v107, %v147
    %v170 = vmul.f32 %v112, %v143
    %v171 = vmul.f32 %v112, %v147
    %v172 = vmul.f32 %v117, %v143
    %v173 = vmul.f32 %v117, %v147
    %v174 = vmul.f32 %v122, %v143
    %v175 = vmul.f32 %v122, %v147
    %v176 = vmul.f32 %v127, %v143
    %v177 = vmul.f32 %v127, %v147
    %v178 = vmul.f32 %v132, %v143
    %v179 = vmul.f32 %v132, %v147
    %v180 = vmul.f32 %v137, %v143
    %v181 = vmul.f32 %v137, %v147
    %v183 = vlaneseq
    %v184 = vshrl.u32 %v183, 7
    %v185 = vsub.s32 0, %v184
    %v186 = vrot.slane %v42, %v185
    %v187 = vlaneseq
    %v188 = vshrl.u32 %v187, 7
    %v189 = vsub.s32 1, %v188
    %v190 = vrot.slane %v42, %v189
    %v193 = vadd.f32 %v150, %v186
    %v194 = vadd.f32 %v151, %v190
    %v195 = vadd.f32 %v152, %v186
    %v196 = vadd.f32 %v153, %v190
    %v197 = vadd.f32 %v154, %v186
    %v198 = vadd.f32 %v155, %v190
    %v199 = vadd.f32 %v156, %v186
    %v200 = vadd.f32 %v157, %v190
    %v201 = vadd.f32 %v158, %v186
    %v202 = vadd.f32 %v159, %v190
    %v203 = vadd.f32 %v160, %v186
    %v204 = vadd.f32 %v161, %v190
    %v205 = vadd.f32 %v162, %v186
    %v206 = vadd.f32 %v163, %v190
    %v207 = vadd.f32 %v164, %v186
    %v208 = vadd.f32 %v165, %v190
    %v209 = vadd.f32 %v166, %v186
    %v210 = vadd.f32 %v167, %v190
    %v211 = vadd.f32 %v168, %v186
    %v212 = vadd.f32 %v169, %v190
    %v213 = vadd.f32 %v170, %v186
    %v214 = vadd.f32 %v171, %v190
    %v215 = vadd.f32 %v172, %v186
    %v216 = vadd.f32 %v173, %v190
    %v217 = vadd.f32 %v174, %v186
    %v218 = vadd.f32 %v175, %v190
    %v219 = vadd.f32 %v176, %v186
    %v220 = vadd.f32 %v177, %v190
    %v221 = vadd.f32 %v178, %v186
    %v222 = vadd.f32 %v179, %v190
    %v223 = vadd.f32 %v180, %v186
    %v224 = vadd.f32 %v181, %v190
    %v233 = vunpack.c.l.b16 %v34
    %v234 = vunpack.c.h.b16 %v34
    %v235 = vunpack.c.l.b16 %v35
    %v236 = vunpack.c.h.b16 %v35
    %v237 = vunpack.c.l.b16 %v36
    %v238 = vunpack.c.h.b16 %v36
    %v239 = vunpack.c.l.b16 %v37
    %v240 = vunpack.c.h.b16 %v37
    %v241 = vunpack.c.l.b16 %v38
    %v242 = vunpack.c.h.b16 %v38
    %v243 = vunpack.c.l.b16 %v39
    %v244 = vunpack.c.h.b16 %v39
    %v245 = vunpack.c.l.b16 %v40
    %v246 = vunpack.c.h.b16 %v40
    %v247 = vunpack.c.l.b16 %v41
    %v248 = vunpack.c.h.b16 %v41
    %v249 = vpack.c.b16 %v235, %v233
    %v250 = vpack.c.b16 %v236, %v234
    %v251 = vpack.c.b16 %v239, %v237
    %v252 = vpack.c.b16 %v240, %v238
    %v253 = vpack.c.b16 %v243, %v241
    %v254 = vpack.c.b16 %v244, %v242
    %v255 = vpack.c.b16 %v247, %v245
    %v256 = vpack.c.b16 %v248, %v246
    %vm265 = vcmask 523264
    %v267 = vsel %vm265, 0, 0
    %269 = vmatprep.subr.bf16.mxu0 %v250
    %270 = vmatpush1.bf16.msra.mxu0 %v249
    %271 = vmatprep.subr.bf16.mxu0 %v252
    %272 = vmatpush1.bf16.msra.mxu0 %v251
    %273 = vmatprep.subr.bf16.mxu0 %v254
    %274 = vmatpush1.bf16.msra.mxu0 %v253
    %275 = vmatprep.subr.bf16.mxu0 %v256
    %276 = vmatpush1.bf16.msra.mxu0 %v255
    %277 = vmatprep.subr.bf16.mxu0 0
    %278 = vmatpush1.bf16.msra.mxu0 0
    %279 = vmatprep.subr.bf16.mxu0 0
    %280 = vmatpush1.bf16.msra.mxu0 0
    %281 = vmatprep.subr.bf16.mxu0 0
    %282 = vmatpush1.bf16.msra.mxu0 0
    %283 = vmatprep.subr.bf16.mxu0 0
    %284 = vmatpush1.bf16.msra.mxu0 0
    %285 = vmatprep.subr.bf16.mxu0 0
    %286 = vmatpush1.bf16.msra.mxu0 0
    %287 = vmatprep.subr.bf16.mxu0 0
    %288 = vmatpush1.bf16.msra.mxu0 0
    %289 = vmatprep.subr.bf16.mxu0 0
    %290 = vmatpush1.bf16.msra.mxu0 0
    %291 = vmatprep.subr.bf16.mxu0 0
    %292 = vmatpush1.bf16.msra.mxu0 0
    %293 = vmatprep.subr.bf16.mxu0 0
    %294 = vmatpush1.bf16.msra.mxu0 0
    %295 = vmatprep.subr.bf16.mxu0 0
    %296 = vmatpush1.bf16.msra.mxu0 0
    %297 = vmatprep.subr.bf16.mxu0 0
    %298 = vmatpush1.bf16.msra.mxu0 0
    %299 = vmatprep.subr.bf16.mxu0 0
    %300 = vmatpush1.bf16.msra.mxu0 0
    %301 = vmatprep.mubr.bf16.mxu0 0
    %302 = vmatmul.mubr.bf16.gmra.mrb[0].mxu0 %v267
    %v303 = vpop.f32.mrb[0].mxu0
    %v304 = vadd.f32 0.0, %v303
    %v305 = vpop.f32.mrb[0].mxu0
    %v306 = vadd.f32 0.0, %v305
    %v307 = vpop.f32.mrb[0].mxu0
    %v308 = vadd.f32 0.0, %v307
    %v309 = vpop.f32.mrb[0].mxu0
    %v310 = vadd.f32 0.0, %v309
    %311 = vmatprep.mubr.bf16.mxu0 0
    %312 = vmatmul.mubr.bf16.gmra.mrb[0].mxu0 %v267
    %v313 = vpop.f32.mrb[0].mxu0
    %v314 = vadd.f32 0.0, %v313
    %v315 = vpop.f32.mrb[0].mxu0
    %v316 = vadd.f32 0.0, %v315
    %v317 = vpop.f32.mrb[0].mxu0
    %v318 = vadd.f32 0.0, %v317
    %v319 = vpop.f32.mrb[0].mxu0
    %v320 = vadd.f32 0.0, %v319
    %321 = vmatprep.mubr.bf16.mxu0 0
    %322 = vmatmul.mubr.bf16.gmra.mrb[0].mxu0 %v267
    %v323 = vpop.f32.mrb[0].mxu0
    %v324 = vadd.f32 0.0, %v323
    %v325 = vpop.f32.mrb[0].mxu0
    %v326 = vadd.f32 0.0, %v325
    %v327 = vpop.f32.mrb[0].mxu0
    %v328 = vadd.f32 0.0, %v327
    %v329 = vpop.f32.mrb[0].mxu0
    %v330 = vadd.f32 0.0, %v329
    %331 = vmatprep.mubr.bf16.mxu0 0
    %332 = vmatmul.mubr.bf16.gmra.mrb[0].mxu0 %v267
    %v333 = vpop.f32.mrb[0].mxu0
    %v334 = vadd.f32 0.0, %v333
    %v335 = vpop.f32.mrb[0].mxu0
    %v336 = vadd.f32 0.0, %v335
    %v337 = vpop.f32.mrb[0].mxu0
    %v338 = vadd.f32 0.0, %v337
    %v339 = vpop.f32.mrb[0].mxu0
    %v340 = vadd.f32 0.0, %v339
    %341 = vmatprep.mubr.bf16.mxu0 0
    %342 = vmatmul.mubr.bf16.gmra.mrb[0].mxu0 %v267
    %v343 = vpop.f32.mrb[0].mxu0
    %v344 = vadd.f32 0.0, %v343
    %v345 = vpop.f32.mrb[0].mxu0
    %v346 = vadd.f32 0.0, %v345
    %v347 = vpop.f32.mrb[0].mxu0
    %v348 = vadd.f32 0.0, %v347
    %v349 = vpop.f32.mrb[0].mxu0
    %v350 = vadd.f32 0.0, %v349
    %351 = vmatprep.mubr.bf16.mxu0 0
    %352 = vmatmul.mubr.bf16.gmra.mrb[0].mxu0 %v267
    %v353 = vpop.f32.mrb[0].mxu0
    %v354 = vadd.f32 0.0, %v353
    %v355 = vpop.f32.mrb[0].mxu0
    %v356 = vadd.f32 0.0, %v355
    %v357 = vpop.f32.mrb[0].mxu0
    %v358 = vadd.f32 0.0, %v357
    %v359 = vpop.f32.mrb[0].mxu0
    %v360 = vadd.f32 0.0, %v359
    %361 = vmatprep.mubr.bf16.mxu0 0
    %362 = vmatmul.mubr.bf16.gmra.mrb[0].mxu0 %v267
    %v363 = vpop.f32.mrb[0].mxu0
    %v364 = vadd.f32 0.0, %v363
    %v365 = vpop.f32.mrb[0].mxu0
    %v366 = vadd.f32 0.0, %v365
    %v367 = vpop.f32.mrb[0].mxu0
    %v368 = vadd.f32 0.0, %v367
    %v369 = vpop.f32.mrb[0].mxu0
    %v370 = vadd.f32 0.0, %v369
    %371 = vmatprep.mubr.bf16.mxu0 0
    %372 = vmatmul.mubr.bf16.gmra.mrb[0].mxu0 %v267
    %v373 = vpop.f32.mrb[0].mxu0
    %v374 = vadd.f32 0.0, %v373
    %v375 = vpop.f32.mrb[0].mxu0
    %v376 = vadd.f32 0.0, %v375
    %v377 = vpop.f32.mrb[0].mxu0
    %v378 = vadd.f32 0.0, %v377
    %v379 = vpop.f32.mrb[0].mxu0
    %v380 = vadd.f32 0.0, %v379
    %381 = vdwg.mxu0
    %v382 = vadd.f32 %v193, %v304
    %v383 = vadd.f32 %v194, %v306
    %v384 = vadd.f32 %v195, %v308
    %v385 = vadd.f32 %v196, %v310
    %v386 = vadd.f32 %v197, %v314
    %v387 = vadd.f32 %v198, %v316
    %v388 = vadd.f32 %v199, %v318
    %v389 = vadd.f32 %v200, %v320
    %v390 = vadd.f32 %v201, %v324
    %v391 = vadd.f32 %v202, %v326
    %v392 = vadd.f32 %v203, %v328
    %v393 = vadd.f32 %v204, %v330
    %v394 = vadd.f32 %v205, %v334
    %v395 = vadd.f32 %v206, %v336
    %v396 = vadd.f32 %v207, %v338
    %v397 = vadd.f32 %v208, %v340
    %v398 = vadd.f32 %v209, %v344
    %v399 = vadd.f32 %v210, %v346
    %v400 = vadd.f32 %v211, %v348
    %v401 = vadd.f32 %v212, %v350
    %v402 = vadd.f32 %v213, %v354
    %v403 = vadd.f32 %v214, %v356
    %v404 = vadd.f32 %v215, %v358
    %v405 = vadd.f32 %v216, %v360
    %v406 = vadd.f32 %v217, %v364
    %v407 = vadd.f32 %v218, %v366
    %v408 = vadd.f32 %v219, %v368
    %v409 = vadd.f32 %v220, %v370
    %v410 = vadd.f32 %v221, %v374
    %v411 = vadd.f32 %v222, %v376
    %v412 = vadd.f32 %v223, %v378
    %v413 = vadd.f32 %v224, %v380
    %v414 = vxor.u32 %v382, 2147483648
    %v415 = vxor.u32 %v384, 2147483648
    %v416 = vxor.u32 %v386, 2147483648
    %v417 = vxor.u32 %v388, 2147483648
    %v418 = vxor.u32 %v390, 2147483648
    %v419 = vxor.u32 %v392, 2147483648
    %v420 = vxor.u32 %v394, 2147483648
    %v421 = vxor.u32 %v396, 2147483648
    %v422 = vxor.u32 %v398, 2147483648
    %v423 = vxor.u32 %v400, 2147483648
    %v424 = vxor.u32 %v402, 2147483648
    %v425 = vxor.u32 %v404, 2147483648
    %v426 = vxor.u32 %v406, 2147483648
    %v427 = vxor.u32 %v408, 2147483648
    %v428 = vxor.u32 %v410, 2147483648
    %v429 = vxor.u32 %v412, 2147483648
    %v430 = vmul.f32 %v414, 1.442695
    %v431 = vpow.pop %v430
    %v432 = vmul.f32 %v415, 1.442695
    %v433 = vpow.pop %v432
    %v434 = vmul.f32 %v416, 1.442695
    %v435 = vpow.pop %v434
    %v436 = vmul.f32 %v417, 1.442695
    %v437 = vpow.pop %v436
    %v438 = vmul.f32 %v418, 1.442695
    %v439 = vpow.pop %v438
    %v440 = vmul.f32 %v419, 1.442695
    %v441 = vpow.pop %v440
    %v442 = vmul.f32 %v420, 1.442695
    %v443 = vpow.pop %v442
    %v444 = vmul.f32 %v421, 1.442695
    %v445 = vpow.pop %v444
    %v446 = vmul.f32 %v422, 1.442695
    %v447 = vpow.pop %v446
    %v448 = vmul.f32 %v423, 1.442695
    %v449 = vpow.pop %v448
    %v450 = vmul.f32 %v424, 1.442695
    %v451 = vpow.pop %v450
    %v452 = vmul.f32 %v425, 1.442695
    %v453 = vpow.pop %v452
    %v454 = vmul.f32 %v426, 1.442695
    %v455 = vpow.pop %v454
    %v456 = vmul.f32 %v427, 1.442695
    %v457 = vpow.pop %v456
    %v458 = vmul.f32 %v428, 1.442695
    %v459 = vpow.pop %v458
    %v460 = vmul.f32 %v429, 1.442695
    %v461 = vpow.pop %v460
    %v462 = vadd.f32 %v431, 1.0
    %v463 = vadd.f32 %v433, 1.0
    %v464 = vadd.f32 %v435, 1.0
    %v465 = vadd.f32 %v437, 1.0
    %v466 = vadd.f32 %v439, 1.0
    %v467 = vadd.f32 %v441, 1.0
    %v468 = vadd.f32 %v443, 1.0
    %v469 = vadd.f32 %v445, 1.0
    %v470 = vadd.f32 %v447, 1.0
    %v471 = vadd.f32 %v449, 1.0
    %v472 = vadd.f32 %v451, 1.0
    %v473 = vadd.f32 %v453, 1.0
    %v474 = vadd.f32 %v455, 1.0
    %v475 = vadd.f32 %v457, 1.0
    %v476 = vadd.f32 %v459, 1.0
    %v477 = vadd.f32 %v461, 1.0
    %v478 = vrcp.pop %v462
    %v479 = vmul.f32 1.0, %v478
    %v480 = vrcp.pop %v463
    %v481 = vmul.f32 1.0, %v480
    %v482 = vrcp.pop %v464
    %v483 = vmul.f32 1.0, %v482
    %v484 = vrcp.pop %v465
    %v485 = vmul.f32 1.0, %v484
    %v486 = vrcp.pop %v466
    %v487 = vmul.f32 1.0, %v486
    %v488 = vrcp.pop %v467
    %v489 = vmul.f32 1.0, %v488
    %v490 = vrcp.pop %v468
    %v491 = vmul.f32 1.0, %v490
    %v492 = vrcp.pop %v469
    %v493 = vmul.f32 1.0, %v492
    %v494 = vrcp.pop %v470
    %v495 = vmul.f32 1.0, %v494
    %v496 = vrcp.pop %v471
    %v497 = vmul.f32 1.0, %v496
    %v498 = vrcp.pop %v472
    %v499 = vmul.f32 1.0, %v498
    %v500 = vrcp.pop %v473
    %v501 = vmul.f32 1.0, %v500
    %v502 = vrcp.pop %v474
    %v503 = vmul.f32 1.0, %v502
    %v504 = vrcp.pop %v475
    %v505 = vmul.f32 1.0, %v504
    %v506 = vrcp.pop %v476
    %v507 = vmul.f32 1.0, %v506
    %v508 = vrcp.pop %v477
    %v509 = vmul.f32 1.0, %v508
    %v510 = vxor.u32 %v383, 2147483648
    %v511 = vxor.u32 %v385, 2147483648
    %v512 = vxor.u32 %v387, 2147483648
    %v513 = vxor.u32 %v389, 2147483648
    %v514 = vxor.u32 %v391, 2147483648
    %v515 = vxor.u32 %v393, 2147483648
    %v516 = vxor.u32 %v395, 2147483648
    %v517 = vxor.u32 %v397, 2147483648
    %v518 = vxor.u32 %v399, 2147483648
    %v519 = vxor.u32 %v401, 2147483648
    %v520 = vxor.u32 %v403, 2147483648
    %v521 = vxor.u32 %v405, 2147483648
    %v522 = vxor.u32 %v407, 2147483648
    %v523 = vxor.u32 %v409, 2147483648
    %v524 = vxor.u32 %v411, 2147483648
    %v525 = vxor.u32 %v413, 2147483648
    %v526 = vmul.f32 %v510, 1.442695
    %v527 = vpow.pop %v526
    %v528 = vmul.f32 %v511, 1.442695
    %v529 = vpow.pop %v528
    %v530 = vmul.f32 %v512, 1.442695
    %v531 = vpow.pop %v530
    %v532 = vmul.f32 %v513, 1.442695
    %v533 = vpow.pop %v532
    %v534 = vmul.f32 %v514, 1.442695
    %v535 = vpow.pop %v534
    %v536 = vmul.f32 %v515, 1.442695
    %v537 = vpow.pop %v536
    %v538 = vmul.f32 %v516, 1.442695
    %v539 = vpow.pop %v538
    %v540 = vmul.f32 %v517, 1.442695
    %v541 = vpow.pop %v540
    %v542 = vmul.f32 %v518, 1.442695
    %v543 = vpow.pop %v542
    %v544 = vmul.f32 %v519, 1.442695
    %v545 = vpow.pop %v544
    %v546 = vmul.f32 %v520, 1.442695
    %v547 = vpow.pop %v546
    %v548 = vmul.f32 %v521, 1.442695
    %v549 = vpow.pop %v548
    %v550 = vmul.f32 %v522, 1.442695
    %v551 = vpow.pop %v550
    %v552 = vmul.f32 %v523, 1.442695
    %v553 = vpow.pop %v552
    %v554 = vmul.f32 %v524, 1.442695
    %v555 = vpow.pop %v554
    %v556 = vmul.f32 %v525, 1.442695
    %v557 = vpow.pop %v556
    %v558 = vadd.f32 %v527, 1.0
    %v559 = vadd.f32 %v529, 1.0
    %v560 = vadd.f32 %v531, 1.0
    %v561 = vadd.f32 %v533, 1.0
    %v562 = vadd.f32 %v535, 1.0
    %v563 = vadd.f32 %v537, 1.0
    %v564 = vadd.f32 %v539, 1.0
    %v565 = vadd.f32 %v541, 1.0
    %v566 = vadd.f32 %v543, 1.0
    %v567 = vadd.f32 %v545, 1.0
    %v568 = vadd.f32 %v547, 1.0
    %v569 = vadd.f32 %v549, 1.0
    %v570 = vadd.f32 %v551, 1.0
    %v571 = vadd.f32 %v553, 1.0
    %v572 = vadd.f32 %v555, 1.0
    %v573 = vadd.f32 %v557, 1.0
    %v574 = vrcp.pop %v558
    %v575 = vmul.f32 1.0, %v574
    %v576 = vrcp.pop %v559
    %v577 = vmul.f32 1.0, %v576
    %v578 = vrcp.pop %v560
    %v579 = vmul.f32 1.0, %v578
    %v580 = vrcp.pop %v561
    %v581 = vmul.f32 1.0, %v580
    %v582 = vrcp.pop %v562
    %v583 = vmul.f32 1.0, %v582
    %v584 = vrcp.pop %v563
    %v585 = vmul.f32 1.0, %v584
    %v586 = vrcp.pop %v564
    %v587 = vmul.f32 1.0, %v586
    %v588 = vrcp.pop %v565
    %v589 = vmul.f32 1.0, %v588
    %v590 = vrcp.pop %v566
    %v591 = vmul.f32 1.0, %v590
    %v592 = vrcp.pop %v567
    %v593 = vmul.f32 1.0, %v592
    %v594 = vrcp.pop %v568
    %v595 = vmul.f32 1.0, %v594
    %v596 = vrcp.pop %v569
    %v597 = vmul.f32 1.0, %v596
    %v598 = vrcp.pop %v570
    %v599 = vmul.f32 1.0, %v598
    %v600 = vrcp.pop %v571
    %v601 = vmul.f32 1.0, %v600
    %v602 = vrcp.pop %v572
    %v603 = vmul.f32 1.0, %v602
    %v604 = vrcp.pop %v573
    %v605 = vmul.f32 1.0, %v604
    %v606 = vtanh.pop %v383
    %v607 = vtanh.pop %v385
    %v608 = vtanh.pop %v387
    %v609 = vtanh.pop %v389
    %v610 = vtanh.pop %v391
    %v611 = vtanh.pop %v393
    %v612 = vtanh.pop %v395
    %v613 = vtanh.pop %v397
    %v614 = vtanh.pop %v399
    %v615 = vtanh.pop %v401
    %v616 = vtanh.pop %v403
    %v617 = vtanh.pop %v405
    %v618 = vtanh.pop %v407
    %v619 = vtanh.pop %v409
    %v620 = vtanh.pop %v411
    %v621 = vtanh.pop %v413
    %v622 = vmul.f32 %v479, 0.0
    %v623 = vmul.f32 %v481, 0.0
    %v624 = vmul.f32 %v483, 0.0
    %v625 = vmul.f32 %v485, 0.0
    %v626 = vmul.f32 %v487, 0.0
    %v627 = vmul.f32 %v489, 0.0
    %v628 = vmul.f32 %v491, 0.0
    %v629 = vmul.f32 %v493, 0.0
    %v630 = vmul.f32 %v495, 0.0
    %v631 = vmul.f32 %v497, 0.0
    %v632 = vmul.f32 %v499, 0.0
    %v633 = vmul.f32 %v501, 0.0
    %v634 = vmul.f32 %v503, 0.0
    %v635 = vmul.f32 %v505, 0.0
    %v636 = vmul.f32 %v507, 0.0
    %v637 = vmul.f32 %v509, 0.0
    %654 = vrot.lane.b32.xlu0 %v606, 64
    %v655 = vpop.permute.xlu0 %654
    %656 = vrot.lane.b32.xlu0 %v607, 64
    %v657 = vpop.permute.xlu0 %656
    %658 = vrot.lane.b32.xlu0 %v608, 64
    %v659 = vpop.permute.xlu0 %658
    %660 = vrot.lane.b32.xlu0 %v609, 64
    %v661 = vpop.permute.xlu0 %660
    %662 = vrot.lane.b32.xlu0 %v610, 64
    %v663 = vpop.permute.xlu0 %662
    %664 = vrot.lane.b32.xlu0 %v611, 64
    %v665 = vpop.permute.xlu0 %664
    %666 = vrot.lane.b32.xlu0 %v612, 64
    %v667 = vpop.permute.xlu0 %666
    %668 = vrot.lane.b32.xlu0 %v613, 64
    %v669 = vpop.permute.xlu0 %668
    %670 = vrot.lane.b32.xlu0 %v614, 64
    %v671 = vpop.permute.xlu0 %670
    %672 = vrot.lane.b32.xlu0 %v615, 64
    %v673 = vpop.permute.xlu0 %672
    %674 = vrot.lane.b32.xlu0 %v616, 64
    %v675 = vpop.permute.xlu0 %674
    %676 = vrot.lane.b32.xlu0 %v617, 64
    %v677 = vpop.permute.xlu0 %676
    %678 = vrot.lane.b32.xlu0 %v618, 64
    %v679 = vpop.permute.xlu0 %678
    %680 = vrot.lane.b32.xlu0 %v619, 64
    %v681 = vpop.permute.xlu0 %680
    %682 = vrot.lane.b32.xlu0 %v620, 64
    %v683 = vpop.permute.xlu0 %682
    %684 = vrot.lane.b32.xlu0 %v621, 64
    %v685 = vpop.permute.xlu0 %684
    %v702 = vmul.f32 %v479, %v655
    %v703 = vmul.f32 %v481, %v657
    %v704 = vmul.f32 %v483, %v659
    %v705 = vmul.f32 %v485, %v661
    %v706 = vmul.f32 %v487, %v663
    %v707 = vmul.f32 %v489, %v665
    %v708 = vmul.f32 %v491, %v667
    %v709 = vmul.f32 %v493, %v669
    %v710 = vmul.f32 %v495, %v671
    %v711 = vmul.f32 %v497, %v673
    %v712 = vmul.f32 %v499, %v675
    %v713 = vmul.f32 %v501, %v677
    %v714 = vmul.f32 %v503, %v679
    %v715 = vmul.f32 %v505, %v681
    %v716 = vmul.f32 %v507, %v683
    %v717 = vmul.f32 %v509, %v685
    %734 = vrot.lane.b32.xlu0 %v702, 64
    %v735 = vpop.permute.xlu0 %734
    %736 = vrot.lane.b32.xlu0 %v703, 64
    %v737 = vpop.permute.xlu0 %736
    %738 = vrot.lane.b32.xlu0 %v704, 64
    %v739 = vpop.permute.xlu0 %738
    %740 = vrot.lane.b32.xlu0 %v705, 64
    %v741 = vpop.permute.xlu0 %740
    %742 = vrot.lane.b32.xlu0 %v706, 64
    %v743 = vpop.permute.xlu0 %742
    %744 = vrot.lane.b32.xlu0 %v707, 64
    %v745 = vpop.permute.xlu0 %744
    %746 = vrot.lane.b32.xlu0 %v708, 64
    %v747 = vpop.permute.xlu0 %746
    %748 = vrot.lane.b32.xlu0 %v709, 64
    %v749 = vpop.permute.xlu0 %748
    %750 = vrot.lane.b32.xlu0 %v710, 64
    %v751 = vpop.permute.xlu0 %750
    %752 = vrot.lane.b32.xlu0 %v711, 64
    %v753 = vpop.permute.xlu0 %752
    %754 = vrot.lane.b32.xlu0 %v712, 64
    %v755 = vpop.permute.xlu0 %754
    %756 = vrot.lane.b32.xlu0 %v713, 64
    %v757 = vpop.permute.xlu0 %756
    %758 = vrot.lane.b32.xlu0 %v714, 64
    %v759 = vpop.permute.xlu0 %758
    %760 = vrot.lane.b32.xlu0 %v715, 64
    %v761 = vpop.permute.xlu0 %760
    %762 = vrot.lane.b32.xlu0 %v716, 64
    %v763 = vpop.permute.xlu0 %762
    %764 = vrot.lane.b32.xlu0 %v717, 64
    %v765 = vpop.permute.xlu0 %764
    %v782 = vadd.f32 %v622, %v735
    %v783 = vadd.f32 %v623, %v737
    %v784 = vadd.f32 %v624, %v739
    %v785 = vadd.f32 %v625, %v741
    %v786 = vadd.f32 %v626, %v743
    %v787 = vadd.f32 %v627, %v745
    %v788 = vadd.f32 %v628, %v747
    %v789 = vadd.f32 %v629, %v749
    %v790 = vadd.f32 %v630, %v751
    %v791 = vadd.f32 %v631, %v753
    %v792 = vadd.f32 %v632, %v755
    %v793 = vadd.f32 %v633, %v757
    %v794 = vadd.f32 %v634, %v759
    %v795 = vadd.f32 %v635, %v761
    %v796 = vadd.f32 %v636, %v763
    %v797 = vadd.f32 %v637, %v765
    %v798 = vtanh.pop %v782
    %v799 = vtanh.pop %v783
    %v800 = vtanh.pop %v784
    %v801 = vtanh.pop %v785
    %v802 = vtanh.pop %v786
    %v803 = vtanh.pop %v787
    %v804 = vtanh.pop %v788
    %v805 = vtanh.pop %v789
    %v806 = vtanh.pop %v790
    %v807 = vtanh.pop %v791
    %v808 = vtanh.pop %v792
    %v809 = vtanh.pop %v793
    %v810 = vtanh.pop %v794
    %v811 = vtanh.pop %v795
    %v812 = vtanh.pop %v796
    %v813 = vtanh.pop %v797
    %830 = vrot.lane.b32.xlu0 %v798, 64
    %v831 = vpop.permute.xlu0 %830
    %832 = vrot.lane.b32.xlu0 %v799, 64
    %v833 = vpop.permute.xlu0 %832
    %834 = vrot.lane.b32.xlu0 %v800, 64
    %v835 = vpop.permute.xlu0 %834
    %836 = vrot.lane.b32.xlu0 %v801, 64
    %v837 = vpop.permute.xlu0 %836
    %838 = vrot.lane.b32.xlu0 %v802, 64
    %v839 = vpop.permute.xlu0 %838
    %840 = vrot.lane.b32.xlu0 %v803, 64
    %v841 = vpop.permute.xlu0 %840
    %842 = vrot.lane.b32.xlu0 %v804, 64
    %v843 = vpop.permute.xlu0 %842
    %844 = vrot.lane.b32.xlu0 %v805, 64
    %v845 = vpop.permute.xlu0 %844
    %846 = vrot.lane.b32.xlu0 %v806, 64
    %v847 = vpop.permute.xlu0 %846
    %848 = vrot.lane.b32.xlu0 %v807, 64
    %v849 = vpop.permute.xlu0 %848
    %850 = vrot.lane.b32.xlu0 %v808, 64
    %v851 = vpop.permute.xlu0 %850
    %852 = vrot.lane.b32.xlu0 %v809, 64
    %v853 = vpop.permute.xlu0 %852
    %854 = vrot.lane.b32.xlu0 %v810, 64
    %v855 = vpop.permute.xlu0 %854
    %856 = vrot.lane.b32.xlu0 %v811, 64
    %v857 = vpop.permute.xlu0 %856
    %858 = vrot.lane.b32.xlu0 %v812, 64
    %v859 = vpop.permute.xlu0 %858
    %860 = vrot.lane.b32.xlu0 %v813, 64
    %v861 = vpop.permute.xlu0 %860
    %v878 = vmul.f32 %v575, %v831
    %v879 = vmul.f32 %v577, %v833
    %v880 = vmul.f32 %v579, %v835
    %v881 = vmul.f32 %v581, %v837
    %v882 = vmul.f32 %v583, %v839
    %v883 = vmul.f32 %v585, %v841
    %v884 = vmul.f32 %v587, %v843
    %v885 = vmul.f32 %v589, %v845
    %v886 = vmul.f32 %v591, %v847
    %v887 = vmul.f32 %v593, %v849
    %v888 = vmul.f32 %v595, %v851
    %v889 = vmul.f32 %v597, %v853
    %v890 = vmul.f32 %v599, %v855
    %v891 = vmul.f32 %v601, %v857
    %v892 = vmul.f32 %v603, %v859
    %v893 = vmul.f32 %v605, %v861
    %s894 = scalar_lea.vmem %s0, 128
    %v895 = vld [vmem:[%s894] sm:$0xff]
    %v896 = vld [vmem:[%s894 + $0x8] sm:$0xff]
    %v897 = vld [vmem:[%s894 + $0x10] sm:$0xff]
    %v898 = vld [vmem:[%s894 + $0x18] sm:$0xff]
    %v899 = vld [vmem:[%s894 + $0x20] sm:$0xff]
    %v900 = vld [vmem:[%s894 + $0x28] sm:$0xff]
    %v901 = vld [vmem:[%s894 + $0x30] sm:$0xff]
    %v902 = vld [vmem:[%s894 + $0x38] sm:$0xff]
    %v903 = vld [vmem:[%s894 + $0x40] sm:$0xff]
    %v904 = vld [vmem:[%s894 + $0x48] sm:$0xff]
    %v905 = vld [vmem:[%s894 + $0x50] sm:$0xff]
    %v906 = vld [vmem:[%s894 + $0x58] sm:$0xff]
    %v907 = vld [vmem:[%s894 + $0x60] sm:$0xff]
    %v908 = vld [vmem:[%s894 + $0x68] sm:$0xff]
    %v909 = vld [vmem:[%s894 + $0x70] sm:$0xff]
    %v910 = vld [vmem:[%s894 + $0x78] sm:$0xff]
    %912 = vset.pattern.permute.xlu0 0
    %913 = vperm.xlu0 %912, %v895
    %v914 = vpop.permute.xlu0 %913
    %917 = vset.pattern.permute.xlu0 0
    %918 = vperm.xlu0 %917, %v896
    %v919 = vpop.permute.xlu0 %918
    %922 = vset.pattern.permute.xlu0 0
    %923 = vperm.xlu0 %922, %v897
    %v924 = vpop.permute.xlu0 %923
    %927 = vset.pattern.permute.xlu0 0
    %928 = vperm.xlu0 %927, %v898
    %v929 = vpop.permute.xlu0 %928
    %932 = vset.pattern.permute.xlu0 0
    %933 = vperm.xlu0 %932, %v899
    %v934 = vpop.permute.xlu0 %933
    %937 = vset.pattern.permute.xlu0 0
    %938 = vperm.xlu0 %937, %v900
    %v939 = vpop.permute.xlu0 %938
    %942 = vset.pattern.permute.xlu0 0
    %943 = vperm.xlu0 %942, %v901
    %v944 = vpop.permute.xlu0 %943
    %947 = vset.pattern.permute.xlu0 0
    %948 = vperm.xlu0 %947, %v902
    %v949 = vpop.permute.xlu0 %948
    %952 = vset.pattern.permute.xlu0 0
    %953 = vperm.xlu0 %952, %v903
    %v954 = vpop.permute.xlu0 %953
    %957 = vset.pattern.permute.xlu0 0
    %958 = vperm.xlu0 %957, %v904
    %v959 = vpop.permute.xlu0 %958
    %962 = vset.pattern.permute.xlu0 0
    %963 = vperm.xlu0 %962, %v905
    %v964 = vpop.permute.xlu0 %963
    %967 = vset.pattern.permute.xlu0 0
    %968 = vperm.xlu0 %967, %v906
    %v969 = vpop.permute.xlu0 %968
    %972 = vset.pattern.permute.xlu0 0
    %973 = vperm.xlu0 %972, %v907
    %v974 = vpop.permute.xlu0 %973
    %977 = vset.pattern.permute.xlu0 0
    %978 = vperm.xlu0 %977, %v908
    %v979 = vpop.permute.xlu0 %978
    %982 = vset.pattern.permute.xlu0 0
    %983 = vperm.xlu0 %982, %v909
    %v984 = vpop.permute.xlu0 %983
    %987 = vset.pattern.permute.xlu0 0
    %988 = vperm.xlu0 %987, %v910
    %v989 = vpop.permute.xlu0 %988
    %v991 = vmul.f32 %v914, %v143
    %v992 = vmul.f32 %v914, %v147
    %v993 = vmul.f32 %v919, %v143
    %v994 = vmul.f32 %v919, %v147
    %v995 = vmul.f32 %v924, %v143
    %v996 = vmul.f32 %v924, %v147
    %v997 = vmul.f32 %v929, %v143
    %v998 = vmul.f32 %v929, %v147
    %v999 = vmul.f32 %v934, %v143
    %v1000 = vmul.f32 %v934, %v147
    %v1001 = vmul.f32 %v939, %v143
    %v1002 = vmul.f32 %v939, %v147
    %v1003 = vmul.f32 %v944, %v143
    %v1004 = vmul.f32 %v944, %v147
    %v1005 = vmul.f32 %v949, %v143
    %v1006 = vmul.f32 %v949, %v147
    %v1007 = vmul.f32 %v954, %v143
    %v1008 = vmul.f32 %v954, %v147
    %v1009 = vmul.f32 %v959, %v143
    %v1010 = vmul.f32 %v959, %v147
    %v1011 = vmul.f32 %v964, %v143
    %v1012 = vmul.f32 %v964, %v147
    %v1013 = vmul.f32 %v969, %v143
    %v1014 = vmul.f32 %v969, %v147
    %v1015 = vmul.f32 %v974, %v143
    %v1016 = vmul.f32 %v974, %v147
    %v1017 = vmul.f32 %v979, %v143
    %v1018 = vmul.f32 %v979, %v147
    %v1019 = vmul.f32 %v984, %v143
    %v1020 = vmul.f32 %v984, %v147
    %v1021 = vmul.f32 %v989, %v143
    %v1022 = vmul.f32 %v989, %v147
    %v1023 = vadd.f32 %v991, %v186
    %v1024 = vadd.f32 %v992, %v190
    %v1025 = vadd.f32 %v993, %v186
    %v1026 = vadd.f32 %v994, %v190
    %v1027 = vadd.f32 %v995, %v186
    %v1028 = vadd.f32 %v996, %v190
    %v1029 = vadd.f32 %v997, %v186
    %v1030 = vadd.f32 %v998, %v190
    %v1031 = vadd.f32 %v999, %v186
    %v1032 = vadd.f32 %v1000, %v190
    %v1033 = vadd.f32 %v1001, %v186
    %v1034 = vadd.f32 %v1002, %v190
    %v1035 = vadd.f32 %v1003, %v186
    %v1036 = vadd.f32 %v1004, %v190
    %v1037 = vadd.f32 %v1005, %v186
    %v1038 = vadd.f32 %v1006, %v190
    %v1039 = vadd.f32 %v1007, %v186
    %v1040 = vadd.f32 %v1008, %v190
    %v1041 = vadd.f32 %v1009, %v186
    %v1042 = vadd.f32 %v1010, %v190
    %v1043 = vadd.f32 %v1011, %v186
    %v1044 = vadd.f32 %v1012, %v190
    %v1045 = vadd.f32 %v1013, %v186
    %v1046 = vadd.f32 %v1014, %v190
    %v1047 = vadd.f32 %v1015, %v186
    %v1048 = vadd.f32 %v1016, %v190
    %v1049 = vadd.f32 %v1017, %v186
    %v1050 = vadd.f32 %v1018, %v190
    %v1051 = vadd.f32 %v1019, %v186
    %v1052 = vadd.f32 %v1020, %v190
    %v1053 = vadd.f32 %v1021, %v186
    %v1054 = vadd.f32 %v1022, %v190
    %v1055 = vpack.c.bf16 %v879, %v878
    %v1056 = vpack.c.bf16 %v881, %v880
    %v1057 = vpack.c.bf16 %v883, %v882
    %v1058 = vpack.c.bf16 %v885, %v884
    %v1059 = vpack.c.bf16 %v887, %v886
    %v1060 = vpack.c.bf16 %v889, %v888
    %v1061 = vpack.c.bf16 %v891, %v890
    %v1062 = vpack.c.bf16 %v893, %v892
    %v1064 = vsel %vm265, %v1055, 0
    %v1067 = vsel %vm265, %v1056, 0
    %v1070 = vsel %vm265, %v1057, 0
    %v1073 = vsel %vm265, %v1058, 0
    %v1076 = vsel %vm265, %v1059, 0
    %v1079 = vsel %vm265, %v1060, 0
    %v1082 = vsel %vm265, %v1061, 0
    %v1085 = vsel %vm265, %v1062, 0
    %1087 = vmatprep.subr.bf16.mxu0 %v250
    %1088 = vmatpush1.bf16.msra.mxu0 %v249
    %1089 = vmatprep.subr.bf16.mxu0 %v252
    %1090 = vmatpush1.bf16.msra.mxu0 %v251
    %1091 = vmatprep.subr.bf16.mxu0 %v254
    %1092 = vmatpush1.bf16.msra.mxu0 %v253
    %1093 = vmatprep.subr.bf16.mxu0 %v256
    %1094 = vmatpush1.bf16.msra.mxu0 %v255
    %1095 = vmatprep.subr.bf16.mxu0 0
    %1096 = vmatpush1.bf16.msra.mxu0 0
    %1097 = vmatprep.subr.bf16.mxu0 0
    %1098 = vmatpush1.bf16.msra.mxu0 0
    %1099 = vmatprep.subr.bf16.mxu0 0
    %1100 = vmatpush1.bf16.msra.mxu0 0
    %1101 = vmatprep.subr.bf16.mxu0 0
    %1102 = vmatpush1.bf16.msra.mxu0 0
    %1103 = vmatprep.subr.bf16.mxu0 0
    %1104 = vmatpush1.bf16.msra.mxu0 0
    %1105 = vmatprep.subr.bf16.mxu0 0
    %1106 = vmatpush1.bf16.msra.mxu0 0
    %1107 = vmatprep.subr.bf16.mxu0 0
    %1108 = vmatpush1.bf16.msra.mxu0 0
    %1109 = vmatprep.subr.bf16.mxu0 0
    %1110 = vmatpush1.bf16.msra.mxu0 0
    %1111 = vmatprep.subr.bf16.mxu0 0
    %1112 = vmatpush1.bf16.msra.mxu0 0
    %1113 = vmatprep.subr.bf16.mxu0 0
    %1114 = vmatpush1.bf16.msra.mxu0 0
    %1115 = vmatprep.subr.bf16.mxu0 0
    %1116 = vmatpush1.bf16.msra.mxu0 0
    %1117 = vmatprep.subr.bf16.mxu0 0
    %1118 = vmatpush1.bf16.msra.mxu0 0
    %1119 = vmatprep.mubr.bf16.mxu0 0
    %1120 = vmatmul.mubr.bf16.gmra.mrb[0].mxu0 %v1064
    %v1121 = vpop.f32.mrb[0].mxu0
    %v1122 = vadd.f32 0.0, %v1121
    %v1123 = vpop.f32.mrb[0].mxu0
    %v1124 = vadd.f32 0.0, %v1123
    %v1125 = vpop.f32.mrb[0].mxu0
    %v1126 = vadd.f32 0.0, %v1125
    %v1127 = vpop.f32.mrb[0].mxu0
    %v1128 = vadd.f32 0.0, %v1127
    %1129 = vmatprep.mubr.bf16.mxu0 0
    %1130 = vmatmul.mubr.bf16.gmra.mrb[0].mxu0 %v1067
    %v1131 = vpop.f32.mrb[0].mxu0
    %v1132 = vadd.f32 0.0, %v1131
    %v1133 = vpop.f32.mrb[0].mxu0
    %v1134 = vadd.f32 0.0, %v1133
    %v1135 = vpop.f32.mrb[0].mxu0
    %v1136 = vadd.f32 0.0, %v1135
    %v1137 = vpop.f32.mrb[0].mxu0
    %v1138 = vadd.f32 0.0, %v1137
    %1139 = vmatprep.mubr.bf16.mxu0 0
    %1140 = vmatmul.mubr.bf16.gmra.mrb[0].mxu0 %v1070
    %v1141 = vpop.f32.mrb[0].mxu0
    %v1142 = vadd.f32 0.0, %v1141
    %v1143 = vpop.f32.mrb[0].mxu0
    %v1144 = vadd.f32 0.0, %v1143
    %v1145 = vpop.f32.mrb[0].mxu0
    %v1146 = vadd.f32 0.0, %v1145
    %v1147 = vpop.f32.mrb[0].mxu0
    %v1148 = vadd.f32 0.0, %v1147
    %1149 = vmatprep.mubr.bf16.mxu0 0
    %1150 = vmatmul.mubr.bf16.gmra.mrb[0].mxu0 %v1073
    %v1151 = vpop.f32.mrb[0].mxu0
    %v1152 = vadd.f32 0.0, %v1151
    %v1153 = vpop.f32.mrb[0].mxu0
    %v1154 = vadd.f32 0.0, %v1153
    %v1155 = vpop.f32.mrb[0].mxu0
    %v1156 = vadd.f32 0.0, %v1155
    %v1157 = vpop.f32.mrb[0].mxu0
    %v1158 = vadd.f32 0.0, %v1157
    %1159 = vmatprep.mubr.bf16.mxu0 0
    %1160 = vmatmul.mubr.bf16.gmra.mrb[0].mxu0 %v1076
    %v1161 = vpop.f32.mrb[0].mxu0
    %v1162 = vadd.f32 0.0, %v1161
    %v1163 = vpop.f32.mrb[0].mxu0
    %v1164 = vadd.f32 0.0, %v1163
    %v1165 = vpop.f32.mrb[0].mxu0
    %v1166 = vadd.f32 0.0, %v1165
    %v1167 = vpop.f32.mrb[0].mxu0
    %v1168 = vadd.f32 0.0, %v1167
    %1169 = vmatprep.mubr.bf16.mxu0 0
    %1170 = vmatmul.mubr.bf16.gmra.mrb[0].mxu0 %v1079
    %v1171 = vpop.f32.mrb[0].mxu0
    %v1172 = vadd.f32 0.0, %v1171
    %v1173 = vpop.f32.mrb[0].mxu0
    %v1174 = vadd.f32 0.0, %v1173
    %v1175 = vpop.f32.mrb[0].mxu0
    %v1176 = vadd.f32 0.0, %v1175
    %v1177 = vpop.f32.mrb[0].mxu0
    %v1178 = vadd.f32 0.0, %v1177
    %1179 = vmatprep.mubr.bf16.mxu0 0
    %1180 = vmatmul.mubr.bf16.gmra.mrb[0].mxu0 %v1082
    %v1181 = vpop.f32.mrb[0].mxu0
    %v1182 = vadd.f32 0.0, %v1181
    %v1183 = vpop.f32.mrb[0].mxu0
    %v1184 = vadd.f32 0.0, %v1183
    %v1185 = vpop.f32.mrb[0].mxu0
    %v1186 = vadd.f32 0.0, %v1185
    %v1187 = vpop.f32.mrb[0].mxu0
    %v1188 = vadd.f32 0.0, %v1187
    %1189 = vmatprep.mubr.bf16.mxu0 0
    %1190 = vmatmul.mubr.bf16.gmra.mrb[0].mxu0 %v1085
    %v1191 = vpop.f32.mrb[0].mxu0
    %v1192 = vadd.f32 0.0, %v1191
    %v1193 = vpop.f32.mrb[0].mxu0
    %v1194 = vadd.f32 0.0, %v1193
    %v1195 = vpop.f32.mrb[0].mxu0
    %v1196 = vadd.f32 0.0, %v1195
    %v1197 = vpop.f32.mrb[0].mxu0
    %v1198 = vadd.f32 0.0, %v1197
    %1199 = vdwg.mxu0
    %v1200 = vadd.f32 %v1023, %v1122
    %v1201 = vadd.f32 %v1024, %v1124
    %v1202 = vadd.f32 %v1025, %v1126
    %v1203 = vadd.f32 %v1026, %v1128
    %v1204 = vadd.f32 %v1027, %v1132
    %v1205 = vadd.f32 %v1028, %v1134
    %v1206 = vadd.f32 %v1029, %v1136
    %v1207 = vadd.f32 %v1030, %v1138
    %v1208 = vadd.f32 %v1031, %v1142
    %v1209 = vadd.f32 %v1032, %v1144
    %v1210 = vadd.f32 %v1033, %v1146
    %v1211 = vadd.f32 %v1034, %v1148
    %v1212 = vadd.f32 %v1035, %v1152
    %v1213 = vadd.f32 %v1036, %v1154
    %v1214 = vadd.f32 %v1037, %v1156
    %v1215 = vadd.f32 %v1038, %v1158
    %v1216 = vadd.f32 %v1039, %v1162
    %v1217 = vadd.f32 %v1040, %v1164
    %v1218 = vadd.f32 %v1041, %v1166
    %v1219 = vadd.f32 %v1042, %v1168
    %v1220 = vadd.f32 %v1043, %v1172
    %v1221 = vadd.f32 %v1044, %v1174
    %v1222 = vadd.f32 %v1045, %v1176
    %v1223 = vadd.f32 %v1046, %v1178
    %v1224 = vadd.f32 %v1047, %v1182
    %v1225 = vadd.f32 %v1048, %v1184
    %v1226 = vadd.f32 %v1049, %v1186
    %v1227 = vadd.f32 %v1050, %v1188
    %v1228 = vadd.f32 %v1051, %v1192
    %v1229 = vadd.f32 %v1052, %v1194
    %v1230 = vadd.f32 %v1053, %v1196
    %v1231 = vadd.f32 %v1054, %v1198
    %v1232 = vxor.u32 %v1200, 2147483648
    %v1233 = vxor.u32 %v1202, 2147483648
    %v1234 = vxor.u32 %v1204, 2147483648
    %v1235 = vxor.u32 %v1206, 2147483648
    %v1236 = vxor.u32 %v1208, 2147483648
    %v1237 = vxor.u32 %v1210, 2147483648
    %v1238 = vxor.u32 %v1212, 2147483648
    %v1239 = vxor.u32 %v1214, 2147483648
    %v1240 = vxor.u32 %v1216, 2147483648
    %v1241 = vxor.u32 %v1218, 2147483648
    %v1242 = vxor.u32 %v1220, 2147483648
    %v1243 = vxor.u32 %v1222, 2147483648
    %v1244 = vxor.u32 %v1224, 2147483648
    %v1245 = vxor.u32 %v1226, 2147483648
    %v1246 = vxor.u32 %v1228, 2147483648
    %v1247 = vxor.u32 %v1230, 2147483648
    %v1248 = vmul.f32 %v1232, 1.442695
    %v1249 = vpow.pop %v1248
    %v1250 = vmul.f32 %v1233, 1.442695
    %v1251 = vpow.pop %v1250
    %v1252 = vmul.f32 %v1234, 1.442695
    %v1253 = vpow.pop %v1252
    %v1254 = vmul.f32 %v1235, 1.442695
    %v1255 = vpow.pop %v1254
    %v1256 = vmul.f32 %v1236, 1.442695
    %v1257 = vpow.pop %v1256
    %v1258 = vmul.f32 %v1237, 1.442695
    %v1259 = vpow.pop %v1258
    %v1260 = vmul.f32 %v1238, 1.442695
    %v1261 = vpow.pop %v1260
    %v1262 = vmul.f32 %v1239, 1.442695
    %v1263 = vpow.pop %v1262
    %v1264 = vmul.f32 %v1240, 1.442695
    %v1265 = vpow.pop %v1264
    %v1266 = vmul.f32 %v1241, 1.442695
    %v1267 = vpow.pop %v1266
    %v1268 = vmul.f32 %v1242, 1.442695
    %v1269 = vpow.pop %v1268
    %v1270 = vmul.f32 %v1243, 1.442695
    %v1271 = vpow.pop %v1270
    %v1272 = vmul.f32 %v1244, 1.442695
    %v1273 = vpow.pop %v1272
    %v1274 = vmul.f32 %v1245, 1.442695
    %v1275 = vpow.pop %v1274
    %v1276 = vmul.f32 %v1246, 1.442695
    %v1277 = vpow.pop %v1276
    %v1278 = vmul.f32 %v1247, 1.442695
    %v1279 = vpow.pop %v1278
    %v1280 = vadd.f32 %v1249, 1.0
    %v1281 = vadd.f32 %v1251, 1.0
    %v1282 = vadd.f32 %v1253, 1.0
    %v1283 = vadd.f32 %v1255, 1.0
    %v1284 = vadd.f32 %v1257, 1.0
    %v1285 = vadd.f32 %v1259, 1.0
    %v1286 = vadd.f32 %v1261, 1.0
    %v1287 = vadd.f32 %v1263, 1.0
    %v1288 = vadd.f32 %v1265, 1.0
    %v1289 = vadd.f32 %v1267, 1.0
    %v1290 = vadd.f32 %v1269, 1.0
    %v1291 = vadd.f32 %v1271, 1.0
    %v1292 = vadd.f32 %v1273, 1.0
    %v1293 = vadd.f32 %v1275, 1.0
    %v1294 = vadd.f32 %v1277, 1.0
    %v1295 = vadd.f32 %v1279, 1.0
    %v1296 = vrcp.pop %v1280
    %v1297 = vmul.f32 1.0, %v1296
    %v1298 = vrcp.pop %v1281
    %v1299 = vmul.f32 1.0, %v1298
    %v1300 = vrcp.pop %v1282
    %v1301 = vmul.f32 1.0, %v1300
    %v1302 = vrcp.pop %v1283
    %v1303 = vmul.f32 1.0, %v1302
    %v1304 = vrcp.pop %v1284
    %v1305 = vmul.f32 1.0, %v1304
    %v1306 = vrcp.pop %v1285
    %v1307 = vmul.f32 1.0, %v1306
    %v1308 = vrcp.pop %v1286
    %v1309 = vmul.f32 1.0, %v1308
    %v1310 = vrcp.pop %v1287
    %v1311 = vmul.f32 1.0, %v1310
    %v1312 = vrcp.pop %v1288
    %v1313 = vmul.f32 1.0, %v1312
    %v1314 = vrcp.pop %v1289
    %v1315 = vmul.f32 1.0, %v1314
    %v1316 = vrcp.pop %v1290
    %v1317 = vmul.f32 1.0, %v1316
    %v1318 = vrcp.pop %v1291
    %v1319 = vmul.f32 1.0, %v1318
    %v1320 = vrcp.pop %v1292
    %v1321 = vmul.f32 1.0, %v1320
    %v1322 = vrcp.pop %v1293
    %v1323 = vmul.f32 1.0, %v1322
    %v1324 = vrcp.pop %v1294
    %v1325 = vmul.f32 1.0, %v1324
    %v1326 = vrcp.pop %v1295
    %v1327 = vmul.f32 1.0, %v1326
    %v1328 = vxor.u32 %v1201, 2147483648
    %v1329 = vxor.u32 %v1203, 2147483648
    %v1330 = vxor.u32 %v1205, 2147483648
    %v1331 = vxor.u32 %v1207, 2147483648
    %v1332 = vxor.u32 %v1209, 2147483648
    %v1333 = vxor.u32 %v1211, 2147483648
    %v1334 = vxor.u32 %v1213, 2147483648
    %v1335 = vxor.u32 %v1215, 2147483648
    %v1336 = vxor.u32 %v1217, 2147483648
    %v1337 = vxor.u32 %v1219, 2147483648
    %v1338 = vxor.u32 %v1221, 2147483648
    %v1339 = vxor.u32 %v1223, 2147483648
    %v1340 = vxor.u32 %v1225, 2147483648
    %v1341 = vxor.u32 %v1227, 2147483648
    %v1342 = vxor.u32 %v1229, 2147483648
    %v1343 = vxor.u32 %v1231, 2147483648
    %v1344 = vmul.f32 %v1328, 1.442695
    %v1345 = vpow.pop %v1344
    %v1346 = vmul.f32 %v1329, 1.442695
    %v1347 = vpow.pop %v1346
    %v1348 = vmul.f32 %v1330, 1.442695
    %v1349 = vpow.pop %v1348
    %v1350 = vmul.f32 %v1331, 1.442695
    %v1351 = vpow.pop %v1350
    %v1352 = vmul.f32 %v1332, 1.442695
    %v1353 = vpow.pop %v1352
    %v1354 = vmul.f32 %v1333, 1.442695
    %v1355 = vpow.pop %v1354
    %v1356 = vmul.f32 %v1334, 1.442695
    %v1357 = vpow.pop %v1356
    %v1358 = vmul.f32 %v1335, 1.442695
    %v1359 = vpow.pop %v1358
    %v1360 = vmul.f32 %v1336, 1.442695
    %v1361 = vpow.pop %v1360
    %v1362 = vmul.f32 %v1337, 1.442695
    %v1363 = vpow.pop %v1362
    %v1364 = vmul.f32 %v1338, 1.442695
    %v1365 = vpow.pop %v1364
    %v1366 = vmul.f32 %v1339, 1.442695
    %v1367 = vpow.pop %v1366
    %v1368 = vmul.f32 %v1340, 1.442695
    %v1369 = vpow.pop %v1368
    %v1370 = vmul.f32 %v1341, 1.442695
    %v1371 = vpow.pop %v1370
    %v1372 = vmul.f32 %v1342, 1.442695
    %v1373 = vpow.pop %v1372
    %v1374 = vmul.f32 %v1343, 1.442695
    %v1375 = vpow.pop %v1374
    %v1376 = vadd.f32 %v1345, 1.0
    %v1377 = vadd.f32 %v1347, 1.0
    %v1378 = vadd.f32 %v1349, 1.0
    %v1379 = vadd.f32 %v1351, 1.0
    %v1380 = vadd.f32 %v1353, 1.0
    %v1381 = vadd.f32 %v1355, 1.0
    %v1382 = vadd.f32 %v1357, 1.0
    %v1383 = vadd.f32 %v1359, 1.0
    %v1384 = vadd.f32 %v1361, 1.0
    %v1385 = vadd.f32 %v1363, 1.0
    %v1386 = vadd.f32 %v1365, 1.0
    %v1387 = vadd.f32 %v1367, 1.0
    %v1388 = vadd.f32 %v1369, 1.0
    %v1389 = vadd.f32 %v1371, 1.0
    %v1390 = vadd.f32 %v1373, 1.0
    %v1391 = vadd.f32 %v1375, 1.0
    %v1392 = vrcp.pop %v1376
    %v1393 = vmul.f32 1.0, %v1392
    %v1394 = vrcp.pop %v1377
    %v1395 = vmul.f32 1.0, %v1394
    %v1396 = vrcp.pop %v1378
    %v1397 = vmul.f32 1.0, %v1396
    %v1398 = vrcp.pop %v1379
    %v1399 = vmul.f32 1.0, %v1398
    %v1400 = vrcp.pop %v1380
    %v1401 = vmul.f32 1.0, %v1400
    %v1402 = vrcp.pop %v1381
    %v1403 = vmul.f32 1.0, %v1402
    %v1404 = vrcp.pop %v1382
    %v1405 = vmul.f32 1.0, %v1404
    %v1406 = vrcp.pop %v1383
    %v1407 = vmul.f32 1.0, %v1406
    %v1408 = vrcp.pop %v1384
    %v1409 = vmul.f32 1.0, %v1408
    %v1410 = vrcp.pop %v1385
    %v1411 = vmul.f32 1.0, %v1410
    %v1412 = vrcp.pop %v1386
    %v1413 = vmul.f32 1.0, %v1412
    %v1414 = vrcp.pop %v1387
    %v1415 = vmul.f32 1.0, %v1414
    %v1416 = vrcp.pop %v1388
    %v1417 = vmul.f32 1.0, %v1416
    %v1418 = vrcp.pop %v1389
    %v1419 = vmul.f32 1.0, %v1418
    %v1420 = vrcp.pop %v1390
    %v1421 = vmul.f32 1.0, %v1420
    %v1422 = vrcp.pop %v1391
    %v1423 = vmul.f32 1.0, %v1422
    %v1424 = vtanh.pop %v1201
    %v1425 = vtanh.pop %v1203
    %v1426 = vtanh.pop %v1205
    %v1427 = vtanh.pop %v1207
    %v1428 = vtanh.pop %v1209
    %v1429 = vtanh.pop %v1211
    %v1430 = vtanh.pop %v1213
    %v1431 = vtanh.pop %v1215
    %v1432 = vtanh.pop %v1217
    %v1433 = vtanh.pop %v1219
    %v1434 = vtanh.pop %v1221
    %v1435 = vtanh.pop %v1223
    %v1436 = vtanh.pop %v1225
    %v1437 = vtanh.pop %v1227
    %v1438 = vtanh.pop %v1229
    %v1439 = vtanh.pop %v1231
    %v1440 = vmul.f32 %v1297, %v782
    %v1441 = vmul.f32 %v1299, %v783
    %v1442 = vmul.f32 %v1301, %v784
    %v1443 = vmul.f32 %v1303, %v785
    %v1444 = vmul.f32 %v1305, %v786
    %v1445 = vmul.f32 %v1307, %v787
    %v1446 = vmul.f32 %v1309, %v788
    %v1447 = vmul.f32 %v1311, %v789
    %v1448 = vmul.f32 %v1313, %v790
    %v1449 = vmul.f32 %v1315, %v791
    %v1450 = vmul.f32 %v1317, %v792
    %v1451 = vmul.f32 %v1319, %v793
    %v1452 = vmul.f32 %v1321, %v794
    %v1453 = vmul.f32 %v1323, %v795
    %v1454 = vmul.f32 %v1325, %v796
    %v1455 = vmul.f32 %v1327, %v797
    %1472 = vrot.lane.b32.xlu0 %v1424, 64
    %v1473 = vpop.permute.xlu0 %1472
    %1474 = vrot.lane.b32.xlu0 %v1425, 64
    %v1475 = vpop.permute.xlu0 %1474
    %1476 = vrot.lane.b32.xlu0 %v1426, 64
    %v1477 = vpop.permute.xlu0 %1476
    %1478 = vrot.lane.b32.xlu0 %v1427, 64
    %v1479 = vpop.permute.xlu0 %1478
    %1480 = vrot.lane.b32.xlu0 %v1428, 64
    %v1481 = vpop.permute.xlu0 %1480
    %1482 = vrot.lane.b32.xlu0 %v1429, 64
    %v1483 = vpop.permute.xlu0 %1482
    %1484 = vrot.lane.b32.xlu0 %v1430, 64
    %v1485 = vpop.permute.xlu0 %1484
    %1486 = vrot.lane.b32.xlu0 %v1431, 64
    %v1487 = vpop.permute.xlu0 %1486
    %1488 = vrot.lane.b32.xlu0 %v1432, 64
    %v1489 = vpop.permute.xlu0 %1488
    %1490 = vrot.lane.b32.xlu0 %v1433, 64
    %v1491 = vpop.permute.xlu0 %1490
    %1492 = vrot.lane.b32.xlu0 %v1434, 64
    %v1493 = vpop.permute.xlu0 %1492
    %1494 = vrot.lane.b32.xlu0 %v1435, 64
    %v1495 = vpop.permute.xlu0 %1494
    %1496 = vrot.lane.b32.xlu0 %v1436, 64
    %v1497 = vpop.permute.xlu0 %1496
    %1498 = vrot.lane.b32.xlu0 %v1437, 64
    %v1499 = vpop.permute.xlu0 %1498
    %1500 = vrot.lane.b32.xlu0 %v1438, 64
    %v1501 = vpop.permute.xlu0 %1500
    %1502 = vrot.lane.b32.xlu0 %v1439, 64
    %v1503 = vpop.permute.xlu0 %1502
    %v1520 = vmul.f32 %v1297, %v1473
    %v1521 = vmul.f32 %v1299, %v1475
    %v1522 = vmul.f32 %v1301, %v1477
    %v1523 = vmul.f32 %v1303, %v1479
    %v1524 = vmul.f32 %v1305, %v1481
    %v1525 = vmul.f32 %v1307, %v1483
    %v1526 = vmul.f32 %v1309, %v1485
    %v1527 = vmul.f32 %v1311, %v1487
    %v1528 = vmul.f32 %v1313, %v1489
    %v1529 = vmul.f32 %v1315, %v1491
    %v1530 = vmul.f32 %v1317, %v1493
    %v1531 = vmul.f32 %v1319, %v1495
    %v1532 = vmul.f32 %v1321, %v1497
    %v1533 = vmul.f32 %v1323, %v1499
    %v1534 = vmul.f32 %v1325, %v1501
    %v1535 = vmul.f32 %v1327, %v1503
    %1552 = vrot.lane.b32.xlu0 %v1520, 64
    %v1553 = vpop.permute.xlu0 %1552
    %1554 = vrot.lane.b32.xlu0 %v1521, 64
    %v1555 = vpop.permute.xlu0 %1554
    %1556 = vrot.lane.b32.xlu0 %v1522, 64
    %v1557 = vpop.permute.xlu0 %1556
    %1558 = vrot.lane.b32.xlu0 %v1523, 64
    %v1559 = vpop.permute.xlu0 %1558
    %1560 = vrot.lane.b32.xlu0 %v1524, 64
    %v1561 = vpop.permute.xlu0 %1560
    %1562 = vrot.lane.b32.xlu0 %v1525, 64
    %v1563 = vpop.permute.xlu0 %1562
    %1564 = vrot.lane.b32.xlu0 %v1526, 64
    %v1565 = vpop.permute.xlu0 %1564
    %1566 = vrot.lane.b32.xlu0 %v1527, 64
    %v1567 = vpop.permute.xlu0 %1566
    %1568 = vrot.lane.b32.xlu0 %v1528, 64
    %v1569 = vpop.permute.xlu0 %1568
    %1570 = vrot.lane.b32.xlu0 %v1529, 64
    %v1571 = vpop.permute.xlu0 %1570
    %1572 = vrot.lane.b32.xlu0 %v1530, 64
    %v1573 = vpop.permute.xlu0 %1572
    %1574 = vrot.lane.b32.xlu0 %v1531, 64
    %v1575 = vpop.permute.xlu0 %1574
    %1576 = vrot.lane.b32.xlu0 %v1532, 64
    %v1577 = vpop.permute.xlu0 %1576
    %1578 = vrot.lane.b32.xlu0 %v1533, 64
    %v1579 = vpop.permute.xlu0 %1578
    %1580 = vrot.lane.b32.xlu0 %v1534, 64
    %v1581 = vpop.permute.xlu0 %1580
    %1582 = vrot.lane.b32.xlu0 %v1535, 64
    %v1583 = vpop.permute.xlu0 %1582
    %v1600 = vadd.f32 %v1440, %v1553
    %v1601 = vadd.f32 %v1441, %v1555
    %v1602 = vadd.f32 %v1442, %v1557
    %v1603 = vadd.f32 %v1443, %v1559
    %v1604 = vadd.f32 %v1444, %v1561
    %v1605 = vadd.f32 %v1445, %v1563
    %v1606 = vadd.f32 %v1446, %v1565
    %v1607 = vadd.f32 %v1447, %v1567
    %v1608 = vadd.f32 %v1448, %v1569
    %v1609 = vadd.f32 %v1449, %v1571
    %v1610 = vadd.f32 %v1450, %v1573
    %v1611 = vadd.f32 %v1451, %v1575
    %v1612 = vadd.f32 %v1452, %v1577
    %v1613 = vadd.f32 %v1453, %v1579
    %v1614 = vadd.f32 %v1454, %v1581
    %v1615 = vadd.f32 %v1455, %v1583
    %v1616 = vtanh.pop %v1600
    %v1617 = vtanh.pop %v1601
    %v1618 = vtanh.pop %v1602
    %v1619 = vtanh.pop %v1603
    %v1620 = vtanh.pop %v1604
    %v1621 = vtanh.pop %v1605
    %v1622 = vtanh.pop %v1606
    %v1623 = vtanh.pop %v1607
    %v1624 = vtanh.pop %v1608
    %v1625 = vtanh.pop %v1609
    %v1626 = vtanh.pop %v1610
    %v1627 = vtanh.pop %v1611
    %v1628 = vtanh.pop %v1612
    %v1629 = vtanh.pop %v1613
    %v1630 = vtanh.pop %v1614
    %v1631 = vtanh.pop %v1615
    %1648 = vrot.lane.b32.xlu0 %v1616, 64
    %v1649 = vpop.permute.xlu0 %1648
    %1650 = vrot.lane.b32.xlu0 %v1617, 64
    %v1651 = vpop.permute.xlu0 %1650
    %1652 = vrot.lane.b32.xlu0 %v1618, 64
    %v1653 = vpop.permute.xlu0 %1652
    %1654 = vrot.lane.b32.xlu0 %v1619, 64
    %v1655 = vpop.permute.xlu0 %1654
    %1656 = vrot.lane.b32.xlu0 %v1620, 64
    %v1657 = vpop.permute.xlu0 %1656
    %1658 = vrot.lane.b32.xlu0 %v1621, 64
    %v1659 = vpop.permute.xlu0 %1658
    %1660 = vrot.lane.b32.xlu0 %v1622, 64
    %v1661 = vpop.permute.xlu0 %1660
    %1662 = vrot.lane.b32.xlu0 %v1623, 64
    %v1663 = vpop.permute.xlu0 %1662
    %1664 = vrot.lane.b32.xlu0 %v1624, 64
    %v1665 = vpop.permute.xlu0 %1664
    %1666 = vrot.lane.b32.xlu0 %v1625, 64
    %v1667 = vpop.permute.xlu0 %1666
    %1668 = vrot.lane.b32.xlu0 %v1626, 64
    %v1669 = vpop.permute.xlu0 %1668
    %1670 = vrot.lane.b32.xlu0 %v1627, 64
    %v1671 = vpop.permute.xlu0 %1670
    %1672 = vrot.lane.b32.xlu0 %v1628, 64
    %v1673 = vpop.permute.xlu0 %1672
    %1674 = vrot.lane.b32.xlu0 %v1629, 64
    %v1675 = vpop.permute.xlu0 %1674
    %1676 = vrot.lane.b32.xlu0 %v1630, 64
    %v1677 = vpop.permute.xlu0 %1676
    %1678 = vrot.lane.b32.xlu0 %v1631, 64
    %v1679 = vpop.permute.xlu0 %1678
    %v1696 = vmul.f32 %v1393, %v1649
    %v1697 = vmul.f32 %v1395, %v1651
    %v1698 = vmul.f32 %v1397, %v1653
    %v1699 = vmul.f32 %v1399, %v1655
    %v1700 = vmul.f32 %v1401, %v1657
    %v1701 = vmul.f32 %v1403, %v1659
    %v1702 = vmul.f32 %v1405, %v1661
    %v1703 = vmul.f32 %v1407, %v1663
    %v1704 = vmul.f32 %v1409, %v1665
    %v1705 = vmul.f32 %v1411, %v1667
    %v1706 = vmul.f32 %v1413, %v1669
    %v1707 = vmul.f32 %v1415, %v1671
    %v1708 = vmul.f32 %v1417, %v1673
    %v1709 = vmul.f32 %v1419, %v1675
    %v1710 = vmul.f32 %v1421, %v1677
    %v1711 = vmul.f32 %v1423, %v1679
    %s1712 = scalar_lea.vmem %s0, 256
    %v1713 = vld [vmem:[%s1712] sm:$0xff]
    %v1714 = vld [vmem:[%s1712 + $0x8] sm:$0xff]
    %v1715 = vld [vmem:[%s1712 + $0x10] sm:$0xff]
    %v1716 = vld [vmem:[%s1712 + $0x18] sm:$0xff]
    %v1717 = vld [vmem:[%s1712 + $0x20] sm:$0xff]
    %v1718 = vld [vmem:[%s1712 + $0x28] sm:$0xff]
    %v1719 = vld [vmem:[%s1712 + $0x30] sm:$0xff]
    %v1720 = vld [vmem:[%s1712 + $0x38] sm:$0xff]
    %v1721 = vld [vmem:[%s1712 + $0x40] sm:$0xff]
    %v1722 = vld [vmem:[%s1712 + $0x48] sm:$0xff]
    %v1723 = vld [vmem:[%s1712 + $0x50] sm:$0xff]
    %v1724 = vld [vmem:[%s1712 + $0x58] sm:$0xff]
    %v1725 = vld [vmem:[%s1712 + $0x60] sm:$0xff]
    %v1726 = vld [vmem:[%s1712 + $0x68] sm:$0xff]
    %v1727 = vld [vmem:[%s1712 + $0x70] sm:$0xff]
    %v1728 = vld [vmem:[%s1712 + $0x78] sm:$0xff]
    %1730 = vset.pattern.permute.xlu0 0
    %1731 = vperm.xlu0 %1730, %v1713
    %v1732 = vpop.permute.xlu0 %1731
    %1735 = vset.pattern.permute.xlu0 0
    %1736 = vperm.xlu0 %1735, %v1714
    %v1737 = vpop.permute.xlu0 %1736
    %1740 = vset.pattern.permute.xlu0 0
    %1741 = vperm.xlu0 %1740, %v1715
    %v1742 = vpop.permute.xlu0 %1741
    %1745 = vset.pattern.permute.xlu0 0
    %1746 = vperm.xlu0 %1745, %v1716
    %v1747 = vpop.permute.xlu0 %1746
    %1750 = vset.pattern.permute.xlu0 0
    %1751 = vperm.xlu0 %1750, %v1717
    %v1752 = vpop.permute.xlu0 %1751
    %1755 = vset.pattern.permute.xlu0 0
    %1756 = vperm.xlu0 %1755, %v1718
    %v1757 = vpop.permute.xlu0 %1756
    %1760 = vset.pattern.permute.xlu0 0
    %1761 = vperm.xlu0 %1760, %v1719
    %v1762 = vpop.permute.xlu0 %1761
    %1765 = vset.pattern.permute.xlu0 0
    %1766 = vperm.xlu0 %1765, %v1720
    %v1767 = vpop.permute.xlu0 %1766
    %1770 = vset.pattern.permute.xlu0 0
    %1771 = vperm.xlu0 %1770, %v1721
    %v1772 = vpop.permute.xlu0 %1771
    %1775 = vset.pattern.permute.xlu0 0
    %1776 = vperm.xlu0 %1775, %v1722
    %v1777 = vpop.permute.xlu0 %1776
    %1780 = vset.pattern.permute.xlu0 0
    %1781 = vperm.xlu0 %1780, %v1723
    %v1782 = vpop.permute.xlu0 %1781
    %1785 = vset.pattern.permute.xlu0 0
    %1786 = vperm.xlu0 %1785, %v1724
    %v1787 = vpop.permute.xlu0 %1786
    %1790 = vset.pattern.permute.xlu0 0
    %1791 = vperm.xlu0 %1790, %v1725
    %v1792 = vpop.permute.xlu0 %1791
    %1795 = vset.pattern.permute.xlu0 0
    %1796 = vperm.xlu0 %1795, %v1726
    %v1797 = vpop.permute.xlu0 %1796
    %1800 = vset.pattern.permute.xlu0 0
    %1801 = vperm.xlu0 %1800, %v1727
    %v1802 = vpop.permute.xlu0 %1801
    %1805 = vset.pattern.permute.xlu0 0
    %1806 = vperm.xlu0 %1805, %v1728
    %v1807 = vpop.permute.xlu0 %1806
    %v1809 = vmul.f32 %v1732, %v143
    %v1810 = vmul.f32 %v1732, %v147
    %v1811 = vmul.f32 %v1737, %v143
    %v1812 = vmul.f32 %v1737, %v147
    %v1813 = vmul.f32 %v1742, %v143
    %v1814 = vmul.f32 %v1742, %v147
    %v1815 = vmul.f32 %v1747, %v143
    %v1816 = vmul.f32 %v1747, %v147
    %v1817 = vmul.f32 %v1752, %v143
    %v1818 = vmul.f32 %v1752, %v147
    %v1819 = vmul.f32 %v1757, %v143
    %v1820 = vmul.f32 %v1757, %v147
    %v1821 = vmul.f32 %v1762, %v143
    %v1822 = vmul.f32 %v1762, %v147
    %v1823 = vmul.f32 %v1767, %v143
    %v1824 = vmul.f32 %v1767, %v147
    %v1825 = vmul.f32 %v1772, %v143
    %v1826 = vmul.f32 %v1772, %v147
    %v1827 = vmul.f32 %v1777, %v143
    %v1828 = vmul.f32 %v1777, %v147
    %v1829 = vmul.f32 %v1782, %v143
    %v1830 = vmul.f32 %v1782, %v147
    %v1831 = vmul.f32 %v1787, %v143
    %v1832 = vmul.f32 %v1787, %v147
    %v1833 = vmul.f32 %v1792, %v143
    %v1834 = vmul.f32 %v1792, %v147
    %v1835 = vmul.f32 %v1797, %v143
    %v1836 = vmul.f32 %v1797, %v147
    %v1837 = vmul.f32 %v1802, %v143
    %v1838 = vmul.f32 %v1802, %v147
    %v1839 = vmul.f32 %v1807, %v143
    %v1840 = vmul.f32 %v1807, %v147
    %v1841 = vadd.f32 %v1809, %v186
    %v1842 = vadd.f32 %v1810, %v190
    %v1843 = vadd.f32 %v1811, %v186
    %v1844 = vadd.f32 %v1812, %v190
    %v1845 = vadd.f32 %v1813, %v186
    %v1846 = vadd.f32 %v1814, %v190
    %v1847 = vadd.f32 %v1815, %v186
    %v1848 = vadd.f32 %v1816, %v190
    %v1849 = vadd.f32 %v1817, %v186
    %v1850 = vadd.f32 %v1818, %v190
    %v1851 = vadd.f32 %v1819, %v186
    %v1852 = vadd.f32 %v1820, %v190
    %v1853 = vadd.f32 %v1821, %v186
    %v1854 = vadd.f32 %v1822, %v190
    %v1855 = vadd.f32 %v1823, %v186
    %v1856 = vadd.f32 %v1824, %v190
    %v1857 = vadd.f32 %v1825, %v186
    %v1858 = vadd.f32 %v1826, %v190
    %v1859 = vadd.f32 %v1827, %v186
    %v1860 = vadd.f32 %v1828, %v190
    %v1861 = vadd.f32 %v1829, %v186
    %v1862 = vadd.f32 %v1830, %v190
    %v1863 = vadd.f32 %v1831, %v186
    %v1864 = vadd.f32 %v1832, %v190
    %v1865 = vadd.f32 %v1833, %v186
    %v1866 = vadd.f32 %v1834, %v190
    %v1867 = vadd.f32 %v1835, %v186
    %v1868 = vadd.f32 %v1836, %v190
    %v1869 = vadd.f32 %v1837, %v186
    %v1870 = vadd.f32 %v1838, %v190
    %v1871 = vadd.f32 %v1839, %v186
    %v1872 = vadd.f32 %v1840, %v190
    %v1873 = vpack.c.bf16 %v1697, %v1696
    %v1874 = vpack.c.bf16 %v1699, %v1698
    %v1875 = vpack.c.bf16 %v1701, %v1700
    %v1876 = vpack.c.bf16 %v1703, %v1702
    %v1877 = vpack.c.bf16 %v1705, %v1704
    %v1878 = vpack.c.bf16 %v1707, %v1706
    %v1879 = vpack.c.bf16 %v1709, %v1708
    %v1880 = vpack.c.bf16 %v1711, %v1710
    %v1882 = vsel %vm265, %v1873, 0
    %v1885 = vsel %vm265, %v1874, 0
    %v1888 = vsel %vm265, %v1875, 0
    %v1891 = vsel %vm265, %v1876, 0
    %v1894 = vsel %vm265, %v1877, 0
    %v1897 = vsel %vm265, %v1878, 0
    %v1900 = vsel %vm265, %v1879, 0
    %v1903 = vsel %vm265, %v1880, 0
    %1905 = vmatprep.subr.bf16.mxu0 %v250
    %1906 = vmatpush1.bf16.msra.mxu0 %v249
    %1907 = vmatprep.subr.bf16.mxu0 %v252
    %1908 = vmatpush1.bf16.msra.mxu0 %v251
    %1909 = vmatprep.subr.bf16.mxu0 %v254
    %1910 = vmatpush1.bf16.msra.mxu0 %v253
    %1911 = vmatprep.subr.bf16.mxu0 %v256
    %1912 = vmatpush1.bf16.msra.mxu0 %v255
    %1913 = vmatprep.subr.bf16.mxu0 0
    %1914 = vmatpush1.bf16.msra.mxu0 0
    %1915 = vmatprep.subr.bf16.mxu0 0
    %1916 = vmatpush1.bf16.msra.mxu0 0
    %1917 = vmatprep.subr.bf16.mxu0 0
    %1918 = vmatpush1.bf16.msra.mxu0 0
    %1919 = vmatprep.subr.bf16.mxu0 0
    %1920 = vmatpush1.bf16.msra.mxu0 0
    %1921 = vmatprep.subr.bf16.mxu0 0
    %1922 = vmatpush1.bf16.msra.mxu0 0
    %1923 = vmatprep.subr.bf16.mxu0 0
    %1924 = vmatpush1.bf16.msra.mxu0 0
    %1925 = vmatprep.subr.bf16.mxu0 0
    %1926 = vmatpush1.bf16.msra.mxu0 0
    %1927 = vmatprep.subr.bf16.mxu0 0
    %1928 = vmatpush1.bf16.msra.mxu0 0
    %1929 = vmatprep.subr.bf16.mxu0 0
    %1930 = vmatpush1.bf16.msra.mxu0 0
    %1931 = vmatprep.subr.bf16.mxu0 0
    %1932 = vmatpush1.bf16.msra.mxu0 0
    %1933 = vmatprep.subr.bf16.mxu0 0
    %1934 = vmatpush1.bf16.msra.mxu0 0
    %1935 = vmatprep.subr.bf16.mxu0 0
    %1936 = vmatpush1.bf16.msra.mxu0 0
    %1937 = vmatprep.mubr.bf16.mxu0 0
    %1938 = vmatmul.mubr.bf16.gmra.mrb[0].mxu0 %v1882
    %v1939 = vpop.f32.mrb[0].mxu0
    %v1940 = vadd.f32 0.0, %v1939
    %v1941 = vpop.f32.mrb[0].mxu0
    %v1942 = vadd.f32 0.0, %v1941
    %v1943 = vpop.f32.mrb[0].mxu0
    %v1944 = vadd.f32 0.0, %v1943
    %v1945 = vpop.f32.mrb[0].mxu0
    %v1946 = vadd.f32 0.0, %v1945
    %1947 = vmatprep.mubr.bf16.mxu0 0
    %1948 = vmatmul.mubr.bf16.gmra.mrb[0].mxu0 %v1885
    %v1949 = vpop.f32.mrb[0].mxu0
    %v1950 = vadd.f32 0.0, %v1949
    %v1951 = vpop.f32.mrb[0].mxu0
    %v1952 = vadd.f32 0.0, %v1951
    %v1953 = vpop.f32.mrb[0].mxu0
    %v1954 = vadd.f32 0.0, %v1953
    %v1955 = vpop.f32.mrb[0].mxu0
    %v1956 = vadd.f32 0.0, %v1955
    %1957 = vmatprep.mubr.bf16.mxu0 0
    %1958 = vmatmul.mubr.bf16.gmra.mrb[0].mxu0 %v1888
    %v1959 = vpop.f32.mrb[0].mxu0
    %v1960 = vadd.f32 0.0, %v1959
    %v1961 = vpop.f32.mrb[0].mxu0
    %v1962 = vadd.f32 0.0, %v1961
    %v1963 = vpop.f32.mrb[0].mxu0
    %v1964 = vadd.f32 0.0, %v1963
    %v1965 = vpop.f32.mrb[0].mxu0
    %v1966 = vadd.f32 0.0, %v1965
    %1967 = vmatprep.mubr.bf16.mxu0 0
    %1968 = vmatmul.mubr.bf16.gmra.mrb[0].mxu0 %v1891
    %v1969 = vpop.f32.mrb[0].mxu0
    %v1970 = vadd.f32 0.0, %v1969
    %v1971 = vpop.f32.mrb[0].mxu0
    %v1972 = vadd.f32 0.0, %v1971
    %v1973 = vpop.f32.mrb[0].mxu0
    %v1974 = vadd.f32 0.0, %v1973
    %v1975 = vpop.f32.mrb[0].mxu0
    %v1976 = vadd.f32 0.0, %v1975
    %1977 = vmatprep.mubr.bf16.mxu0 0
    %1978 = vmatmul.mubr.bf16.gmra.mrb[0].mxu0 %v1894
    %v1979 = vpop.f32.mrb[0].mxu0
    %v1980 = vadd.f32 0.0, %v1979
    %v1981 = vpop.f32.mrb[0].mxu0
    %v1982 = vadd.f32 0.0, %v1981
    %v1983 = vpop.f32.mrb[0].mxu0
    %v1984 = vadd.f32 0.0, %v1983
    %v1985 = vpop.f32.mrb[0].mxu0
    %v1986 = vadd.f32 0.0, %v1985
    %1987 = vmatprep.mubr.bf16.mxu0 0
    %1988 = vmatmul.mubr.bf16.gmra.mrb[0].mxu0 %v1897
    %v1989 = vpop.f32.mrb[0].mxu0
    %v1990 = vadd.f32 0.0, %v1989
    %v1991 = vpop.f32.mrb[0].mxu0
    %v1992 = vadd.f32 0.0, %v1991
    %v1993 = vpop.f32.mrb[0].mxu0
    %v1994 = vadd.f32 0.0, %v1993
    %v1995 = vpop.f32.mrb[0].mxu0
    %v1996 = vadd.f32 0.0, %v1995
    %1997 = vmatprep.mubr.bf16.mxu0 0
    %1998 = vmatmul.mubr.bf16.gmra.mrb[0].mxu0 %v1900
    %v1999 = vpop.f32.mrb[0].mxu0
    %v2000 = vadd.f32 0.0, %v1999
    %v2001 = vpop.f32.mrb[0].mxu0
    %v2002 = vadd.f32 0.0, %v2001
    %v2003 = vpop.f32.mrb[0].mxu0
    %v2004 = vadd.f32 0.0, %v2003
    %v2005 = vpop.f32.mrb[0].mxu0
    %v2006 = vadd.f32 0.0, %v2005
    %2007 = vmatprep.mubr.bf16.mxu0 0
    %2008 = vmatmul.mubr.bf16.gmra.mrb[0].mxu0 %v1903
    %v2009 = vpop.f32.mrb[0].mxu0
    %v2010 = vadd.f32 0.0, %v2009
    %v2011 = vpop.f32.mrb[0].mxu0
    %v2012 = vadd.f32 0.0, %v2011
    %v2013 = vpop.f32.mrb[0].mxu0
    %v2014 = vadd.f32 0.0, %v2013
    %v2015 = vpop.f32.mrb[0].mxu0
    %v2016 = vadd.f32 0.0, %v2015
    %2017 = vdwg.mxu0
    %v2018 = vadd.f32 %v1841, %v1940
    %v2019 = vadd.f32 %v1842, %v1942
    %v2020 = vadd.f32 %v1843, %v1944
    %v2021 = vadd.f32 %v1844, %v1946
    %v2022 = vadd.f32 %v1845, %v1950
    %v2023 = vadd.f32 %v1846, %v1952
    %v2024 = vadd.f32 %v1847, %v1954
    %v2025 = vadd.f32 %v1848, %v1956
    %v2026 = vadd.f32 %v1849, %v1960
    %v2027 = vadd.f32 %v1850, %v1962
    %v2028 = vadd.f32 %v1851, %v1964
    %v2029 = vadd.f32 %v1852, %v1966
    %v2030 = vadd.f32 %v1853, %v1970
    %v2031 = vadd.f32 %v1854, %v1972
    %v2032 = vadd.f32 %v1855, %v1974
    %v2033 = vadd.f32 %v1856, %v1976
    %v2034 = vadd.f32 %v1857, %v1980
    %v2035 = vadd.f32 %v1858, %v1982
    %v2036 = vadd.f32 %v1859, %v1984
    %v2037 = vadd.f32 %v1860, %v1986
    %v2038 = vadd.f32 %v1861, %v1990
    %v2039 = vadd.f32 %v1862, %v1992
    %v2040 = vadd.f32 %v1863, %v1994
    %v2041 = vadd.f32 %v1864, %v1996
    %v2042 = vadd.f32 %v1865, %v2000
    %v2043 = vadd.f32 %v1866, %v2002
    %v2044 = vadd.f32 %v1867, %v2004
    %v2045 = vadd.f32 %v1868, %v2006
    %v2046 = vadd.f32 %v1869, %v2010
    %v2047 = vadd.f32 %v1870, %v2012
    %v2048 = vadd.f32 %v1871, %v2014
    %v2049 = vadd.f32 %v1872, %v2016
    %v2050 = vxor.u32 %v2018, 2147483648
    %v2051 = vxor.u32 %v2020, 2147483648
    %v2052 = vxor.u32 %v2022, 2147483648
    %v2053 = vxor.u32 %v2024, 2147483648
    %v2054 = vxor.u32 %v2026, 2147483648
    %v2055 = vxor.u32 %v2028, 2147483648
    %v2056 = vxor.u32 %v2030, 2147483648
    %v2057 = vxor.u32 %v2032, 2147483648
    %v2058 = vxor.u32 %v2034, 2147483648
    %v2059 = vxor.u32 %v2036, 2147483648
    %v2060 = vxor.u32 %v2038, 2147483648
    %v2061 = vxor.u32 %v2040, 2147483648
    %v2062 = vxor.u32 %v2042, 2147483648
    %v2063 = vxor.u32 %v2044, 2147483648
    %v2064 = vxor.u32 %v2046, 2147483648
    %v2065 = vxor.u32 %v2048, 2147483648
    %v2066 = vmul.f32 %v2050, 1.442695
    %v2067 = vpow.pop %v2066
    %v2068 = vmul.f32 %v2051, 1.442695
    %v2069 = vpow.pop %v2068
    %v2070 = vmul.f32 %v2052, 1.442695
    %v2071 = vpow.pop %v2070
    %v2072 = vmul.f32 %v2053, 1.442695
    %v2073 = vpow.pop %v2072
    %v2074 = vmul.f32 %v2054, 1.442695
    %v2075 = vpow.pop %v2074
    %v2076 = vmul.f32 %v2055, 1.442695
    %v2077 = vpow.pop %v2076
    %v2078 = vmul.f32 %v2056, 1.442695
    %v2079 = vpow.pop %v2078
    %v2080 = vmul.f32 %v2057, 1.442695
    %v2081 = vpow.pop %v2080
    %v2082 = vmul.f32 %v2058, 1.442695
    %v2083 = vpow.pop %v2082
    %v2084 = vmul.f32 %v2059, 1.442695
    %v2085 = vpow.pop %v2084
    %v2086 = vmul.f32 %v2060, 1.442695
    %v2087 = vpow.pop %v2086
    %v2088 = vmul.f32 %v2061, 1.442695
    %v2089 = vpow.pop %v2088
    %v2090 = vmul.f32 %v2062, 1.442695
    %v2091 = vpow.pop %v2090
    %v2092 = vmul.f32 %v2063, 1.442695
    %v2093 = vpow.pop %v2092
    %v2094 = vmul.f32 %v2064, 1.442695
    %v2095 = vpow.pop %v2094
    %v2096 = vmul.f32 %v2065, 1.442695
    %v2097 = vpow.pop %v2096
    %v2098 = vadd.f32 %v2067, 1.0
    %v2099 = vadd.f32 %v2069, 1.0
    %v2100 = vadd.f32 %v2071, 1.0
    %v2101 = vadd.f32 %v2073, 1.0
    %v2102 = vadd.f32 %v2075, 1.0
    %v2103 = vadd.f32 %v2077, 1.0
    %v2104 = vadd.f32 %v2079, 1.0
    %v2105 = vadd.f32 %v2081, 1.0
    %v2106 = vadd.f32 %v2083, 1.0
    %v2107 = vadd.f32 %v2085, 1.0
    %v2108 = vadd.f32 %v2087, 1.0
    %v2109 = vadd.f32 %v2089, 1.0
    %v2110 = vadd.f32 %v2091, 1.0
    %v2111 = vadd.f32 %v2093, 1.0
    %v2112 = vadd.f32 %v2095, 1.0
    %v2113 = vadd.f32 %v2097, 1.0
    %v2114 = vrcp.pop %v2098
    %v2115 = vmul.f32 1.0, %v2114
    %v2116 = vrcp.pop %v2099
    %v2117 = vmul.f32 1.0, %v2116
    %v2118 = vrcp.pop %v2100
    %v2119 = vmul.f32 1.0, %v2118
    %v2120 = vrcp.pop %v2101
    %v2121 = vmul.f32 1.0, %v2120
    %v2122 = vrcp.pop %v2102
    %v2123 = vmul.f32 1.0, %v2122
    %v2124 = vrcp.pop %v2103
    %v2125 = vmul.f32 1.0, %v2124
    %v2126 = vrcp.pop %v2104
    %v2127 = vmul.f32 1.0, %v2126
    %v2128 = vrcp.pop %v2105
    %v2129 = vmul.f32 1.0, %v2128
    %v2130 = vrcp.pop %v2106
    %v2131 = vmul.f32 1.0, %v2130
    %v2132 = vrcp.pop %v2107
    %v2133 = vmul.f32 1.0, %v2132
    %v2134 = vrcp.pop %v2108
    %v2135 = vmul.f32 1.0, %v2134
    %v2136 = vrcp.pop %v2109
    %v2137 = vmul.f32 1.0, %v2136
    %v2138 = vrcp.pop %v2110
    %v2139 = vmul.f32 1.0, %v2138
    %v2140 = vrcp.pop %v2111
    %v2141 = vmul.f32 1.0, %v2140
    %v2142 = vrcp.pop %v2112
    %v2143 = vmul.f32 1.0, %v2142
    %v2144 = vrcp.pop %v2113
    %v2145 = vmul.f32 1.0, %v2144
    %v2146 = vxor.u32 %v2019, 2147483648
    %v2147 = vxor.u32 %v2021, 2147483648
    %v2148 = vxor.u32 %v2023, 2147483648
    %v2149 = vxor.u32 %v2025, 2147483648
    %v2150 = vxor.u32 %v2027, 2147483648
    %v2151 = vxor.u32 %v2029, 2147483648
    %v2152 = vxor.u32 %v2031, 2147483648
    %v2153 = vxor.u32 %v2033, 2147483648
    %v2154 = vxor.u32 %v2035, 2147483648
    %v2155 = vxor.u32 %v2037, 2147483648
    %v2156 = vxor.u32 %v2039, 2147483648
    %v2157 = vxor.u32 %v2041, 2147483648
    %v2158 = vxor.u32 %v2043, 2147483648
    %v2159 = vxor.u32 %v2045, 2147483648
    %v2160 = vxor.u32 %v2047, 2147483648
    %v2161 = vxor.u32 %v2049, 2147483648
    %v2162 = vmul.f32 %v2146, 1.442695
    %v2163 = vpow.pop %v2162
    %v2164 = vmul.f32 %v2147, 1.442695
    %v2165 = vpow.pop %v2164
    %v2166 = vmul.f32 %v2148, 1.442695
    %v2167 = vpow.pop %v2166
    %v2168 = vmul.f32 %v2149, 1.442695
    %v2169 = vpow.pop %v2168
    %v2170 = vmul.f32 %v2150, 1.442695
    %v2171 = vpow.pop %v2170
    %v2172 = vmul.f32 %v2151, 1.442695
    %v2173 = vpow.pop %v2172
    %v2174 = vmul.f32 %v2152, 1.442695
    %v2175 = vpow.pop %v2174
    %v2176 = vmul.f32 %v2153, 1.442695
    %v2177 = vpow.pop %v2176
    %v2178 = vmul.f32 %v2154, 1.442695
    %v2179 = vpow.pop %v2178
    %v2180 = vmul.f32 %v2155, 1.442695
    %v2181 = vpow.pop %v2180
    %v2182 = vmul.f32 %v2156, 1.442695
    %v2183 = vpow.pop %v2182
    %v2184 = vmul.f32 %v2157, 1.442695
    %v2185 = vpow.pop %v2184
    %v2186 = vmul.f32 %v2158, 1.442695
    %v2187 = vpow.pop %v2186
    %v2188 = vmul.f32 %v2159, 1.442695
    %v2189 = vpow.pop %v2188
    %v2190 = vmul.f32 %v2160, 1.442695
    %v2191 = vpow.pop %v2190
    %v2192 = vmul.f32 %v2161, 1.442695
    %v2193 = vpow.pop %v2192
    %v2194 = vadd.f32 %v2163, 1.0
    %v2195 = vadd.f32 %v2165, 1.0
    %v2196 = vadd.f32 %v2167, 1.0
    %v2197 = vadd.f32 %v2169, 1.0
    %v2198 = vadd.f32 %v2171, 1.0
    %v2199 = vadd.f32 %v2173, 1.0
    %v2200 = vadd.f32 %v2175, 1.0
    %v2201 = vadd.f32 %v2177, 1.0
    %v2202 = vadd.f32 %v2179, 1.0
    %v2203 = vadd.f32 %v2181, 1.0
    %v2204 = vadd.f32 %v2183, 1.0
    %v2205 = vadd.f32 %v2185, 1.0
    %v2206 = vadd.f32 %v2187, 1.0
    %v2207 = vadd.f32 %v2189, 1.0
    %v2208 = vadd.f32 %v2191, 1.0
    %v2209 = vadd.f32 %v2193, 1.0
    %v2210 = vrcp.pop %v2194
    %v2211 = vmul.f32 1.0, %v2210
    %v2212 = vrcp.pop %v2195
    %v2213 = vmul.f32 1.0, %v2212
    %v2214 = vrcp.pop %v2196
    %v2215 = vmul.f32 1.0, %v2214
    %v2216 = vrcp.pop %v2197
    %v2217 = vmul.f32 1.0, %v2216
    %v2218 = vrcp.pop %v2198
    %v2219 = vmul.f32 1.0, %v2218
    %v2220 = vrcp.pop %v2199
    %v2221 = vmul.f32 1.0, %v2220
    %v2222 = vrcp.pop %v2200
    %v2223 = vmul.f32 1.0, %v2222
    %v2224 = vrcp.pop %v2201
    %v2225 = vmul.f32 1.0, %v2224
    %v2226 = vrcp.pop %v2202
    %v2227 = vmul.f32 1.0, %v2226
    %v2228 = vrcp.pop %v2203
    %v2229 = vmul.f32 1.0, %v2228
    %v2230 = vrcp.pop %v2204
    %v2231 = vmul.f32 1.0, %v2230
    %v2232 = vrcp.pop %v2205
    %v2233 = vmul.f32 1.0, %v2232
    %v2234 = vrcp.pop %v2206
    %v2235 = vmul.f32 1.0, %v2234
    %v2236 = vrcp.pop %v2207
    %v2237 = vmul.f32 1.0, %v2236
    %v2238 = vrcp.pop %v2208
    %v2239 = vmul.f32 1.0, %v2238
    %v2240 = vrcp.pop %v2209
    %v2241 = vmul.f32 1.0, %v2240
    %v2242 = vtanh.pop %v2019
    %v2243 = vtanh.pop %v2021
    %v2244 = vtanh.pop %v2023
    %v2245 = vtanh.pop %v2025
    %v2246 = vtanh.pop %v2027
    %v2247 = vtanh.pop %v2029
    %v2248 = vtanh.pop %v2031
    %v2249 = vtanh.pop %v2033
    %v2250 = vtanh.pop %v2035
    %v2251 = vtanh.pop %v2037
    %v2252 = vtanh.pop %v2039
    %v2253 = vtanh.pop %v2041
    %v2254 = vtanh.pop %v2043
    %v2255 = vtanh.pop %v2045
    %v2256 = vtanh.pop %v2047
    %v2257 = vtanh.pop %v2049
    %v2258 = vmul.f32 %v2115, %v1600
    %v2259 = vmul.f32 %v2117, %v1601
    %v2260 = vmul.f32 %v2119, %v1602
    %v2261 = vmul.f32 %v2121, %v1603
    %v2262 = vmul.f32 %v2123, %v1604
    %v2263 = vmul.f32 %v2125, %v1605
    %v2264 = vmul.f32 %v2127, %v1606
    %v2265 = vmul.f32 %v2129, %v1607
    %v2266 = vmul.f32 %v2131, %v1608
    %v2267 = vmul.f32 %v2133, %v1609
    %v2268 = vmul.f32 %v2135, %v1610
    %v2269 = vmul.f32 %v2137, %v1611
    %v2270 = vmul.f32 %v2139, %v1612
    %v2271 = vmul.f32 %v2141, %v1613
    %v2272 = vmul.f32 %v2143, %v1614
    %v2273 = vmul.f32 %v2145, %v1615
    %2290 = vrot.lane.b32.xlu0 %v2242, 64
    %v2291 = vpop.permute.xlu0 %2290
    %2292 = vrot.lane.b32.xlu0 %v2243, 64
    %v2293 = vpop.permute.xlu0 %2292
    %2294 = vrot.lane.b32.xlu0 %v2244, 64
    %v2295 = vpop.permute.xlu0 %2294
    %2296 = vrot.lane.b32.xlu0 %v2245, 64
    %v2297 = vpop.permute.xlu0 %2296
    %2298 = vrot.lane.b32.xlu0 %v2246, 64
    %v2299 = vpop.permute.xlu0 %2298
    %2300 = vrot.lane.b32.xlu0 %v2247, 64
    %v2301 = vpop.permute.xlu0 %2300
    %2302 = vrot.lane.b32.xlu0 %v2248, 64
    %v2303 = vpop.permute.xlu0 %2302
    %2304 = vrot.lane.b32.xlu0 %v2249, 64
    %v2305 = vpop.permute.xlu0 %2304
    %2306 = vrot.lane.b32.xlu0 %v2250, 64
    %v2307 = vpop.permute.xlu0 %2306
    %2308 = vrot.lane.b32.xlu0 %v2251, 64
    %v2309 = vpop.permute.xlu0 %2308
    %2310 = vrot.lane.b32.xlu0 %v2252, 64
    %v2311 = vpop.permute.xlu0 %2310
    %2312 = vrot.lane.b32.xlu0 %v2253, 64
    %v2313 = vpop.permute.xlu0 %2312
    %2314 = vrot.lane.b32.xlu0 %v2254, 64
    %v2315 = vpop.permute.xlu0 %2314
    %2316 = vrot.lane.b32.xlu0 %v2255, 64
    %v2317 = vpop.permute.xlu0 %2316
    %2318 = vrot.lane.b32.xlu0 %v2256, 64
    %v2319 = vpop.permute.xlu0 %2318
    %2320 = vrot.lane.b32.xlu0 %v2257, 64
    %v2321 = vpop.permute.xlu0 %2320
    %v2338 = vmul.f32 %v2115, %v2291
    %v2339 = vmul.f32 %v2117, %v2293
    %v2340 = vmul.f32 %v2119, %v2295
    %v2341 = vmul.f32 %v2121, %v2297
    %v2342 = vmul.f32 %v2123, %v2299
    %v2343 = vmul.f32 %v2125, %v2301
    %v2344 = vmul.f32 %v2127, %v2303
    %v2345 = vmul.f32 %v2129, %v2305
    %v2346 = vmul.f32 %v2131, %v2307
    %v2347 = vmul.f32 %v2133, %v2309
    %v2348 = vmul.f32 %v2135, %v2311
    %v2349 = vmul.f32 %v2137, %v2313
    %v2350 = vmul.f32 %v2139, %v2315
    %v2351 = vmul.f32 %v2141, %v2317
    %v2352 = vmul.f32 %v2143, %v2319
    %v2353 = vmul.f32 %v2145, %v2321
    %2370 = vrot.lane.b32.xlu0 %v2338, 64
    %v2371 = vpop.permute.xlu0 %2370
    %2372 = vrot.lane.b32.xlu0 %v2339, 64
    %v2373 = vpop.permute.xlu0 %2372
    %2374 = vrot.lane.b32.xlu0 %v2340, 64
    %v2375 = vpop.permute.xlu0 %2374
    %2376 = vrot.lane.b32.xlu0 %v2341, 64
    %v2377 = vpop.permute.xlu0 %2376
    %2378 = vrot.lane.b32.xlu0 %v2342, 64
    %v2379 = vpop.permute.xlu0 %2378
    %2380 = vrot.lane.b32.xlu0 %v2343, 64
    %v2381 = vpop.permute.xlu0 %2380
    %2382 = vrot.lane.b32.xlu0 %v2344, 64
    %v2383 = vpop.permute.xlu0 %2382
    %2384 = vrot.lane.b32.xlu0 %v2345, 64
    %v2385 = vpop.permute.xlu0 %2384
    %2386 = vrot.lane.b32.xlu0 %v2346, 64
    %v2387 = vpop.permute.xlu0 %2386
    %2388 = vrot.lane.b32.xlu0 %v2347, 64
    %v2389 = vpop.permute.xlu0 %2388
    %2390 = vrot.lane.b32.xlu0 %v2348, 64
    %v2391 = vpop.permute.xlu0 %2390
    %2392 = vrot.lane.b32.xlu0 %v2349, 64
    %v2393 = vpop.permute.xlu0 %2392
    %2394 = vrot.lane.b32.xlu0 %v2350, 64
    %v2395 = vpop.permute.xlu0 %2394
    %2396 = vrot.lane.b32.xlu0 %v2351, 64
    %v2397 = vpop.permute.xlu0 %2396
    %2398 = vrot.lane.b32.xlu0 %v2352, 64
    %v2399 = vpop.permute.xlu0 %2398
    %2400 = vrot.lane.b32.xlu0 %v2353, 64
    %v2401 = vpop.permute.xlu0 %2400
    %v2418 = vadd.f32 %v2258, %v2371
    %v2419 = vadd.f32 %v2259, %v2373
    %v2420 = vadd.f32 %v2260, %v2375
    %v2421 = vadd.f32 %v2261, %v2377
    %v2422 = vadd.f32 %v2262, %v2379
    %v2423 = vadd.f32 %v2263, %v2381
    %v2424 = vadd.f32 %v2264, %v2383
    %v2425 = vadd.f32 %v2265, %v2385
    %v2426 = vadd.f32 %v2266, %v2387
    %v2427 = vadd.f32 %v2267, %v2389
    %v2428 = vadd.f32 %v2268, %v2391
    %v2429 = vadd.f32 %v2269, %v2393
    %v2430 = vadd.f32 %v2270, %v2395
    %v2431 = vadd.f32 %v2271, %v2397
    %v2432 = vadd.f32 %v2272, %v2399
    %v2433 = vadd.f32 %v2273, %v2401
    %v2434 = vtanh.pop %v2418
    %v2435 = vtanh.pop %v2419
    %v2436 = vtanh.pop %v2420
    %v2437 = vtanh.pop %v2421
    %v2438 = vtanh.pop %v2422
    %v2439 = vtanh.pop %v2423
    %v2440 = vtanh.pop %v2424
    %v2441 = vtanh.pop %v2425
    %v2442 = vtanh.pop %v2426
    %v2443 = vtanh.pop %v2427
    %v2444 = vtanh.pop %v2428
    %v2445 = vtanh.pop %v2429
    %v2446 = vtanh.pop %v2430
    %v2447 = vtanh.pop %v2431
    %v2448 = vtanh.pop %v2432
    %v2449 = vtanh.pop %v2433
    %2466 = vrot.lane.b32.xlu0 %v2434, 64
    %v2467 = vpop.permute.xlu0 %2466
    %2468 = vrot.lane.b32.xlu0 %v2435, 64
    %v2469 = vpop.permute.xlu0 %2468
    %2470 = vrot.lane.b32.xlu0 %v2436, 64
    %v2471 = vpop.permute.xlu0 %2470
    %2472 = vrot.lane.b32.xlu0 %v2437, 64
    %v2473 = vpop.permute.xlu0 %2472
    %2474 = vrot.lane.b32.xlu0 %v2438, 64
    %v2475 = vpop.permute.xlu0 %2474
    %2476 = vrot.lane.b32.xlu0 %v2439, 64
    %v2477 = vpop.permute.xlu0 %2476
    %2478 = vrot.lane.b32.xlu0 %v2440, 64
    %v2479 = vpop.permute.xlu0 %2478
    %2480 = vrot.lane.b32.xlu0 %v2441, 64
    %v2481 = vpop.permute.xlu0 %2480
    %2482 = vrot.lane.b32.xlu0 %v2442, 64
    %v2483 = vpop.permute.xlu0 %2482
    %2484 = vrot.lane.b32.xlu0 %v2443, 64
    %v2485 = vpop.permute.xlu0 %2484
    %2486 = vrot.lane.b32.xlu0 %v2444, 64
    %v2487 = vpop.permute.xlu0 %2486
    %2488 = vrot.lane.b32.xlu0 %v2445, 64
    %v2489 = vpop.permute.xlu0 %2488
    %2490 = vrot.lane.b32.xlu0 %v2446, 64
    %v2491 = vpop.permute.xlu0 %2490
    %2492 = vrot.lane.b32.xlu0 %v2447, 64
    %v2493 = vpop.permute.xlu0 %2492
    %2494 = vrot.lane.b32.xlu0 %v2448, 64
    %v2495 = vpop.permute.xlu0 %2494
    %2496 = vrot.lane.b32.xlu0 %v2449, 64
    %v2497 = vpop.permute.xlu0 %2496
    %v2514 = vmul.f32 %v2211, %v2467
    %v2515 = vmul.f32 %v2213, %v2469
    %v2516 = vmul.f32 %v2215, %v2471
    %v2517 = vmul.f32 %v2217, %v2473
    %v2518 = vmul.f32 %v2219, %v2475
    %v2519 = vmul.f32 %v2221, %v2477
    %v2520 = vmul.f32 %v2223, %v2479
    %v2521 = vmul.f32 %v2225, %v2481
    %v2522 = vmul.f32 %v2227, %v2483
    %v2523 = vmul.f32 %v2229, %v2485
    %v2524 = vmul.f32 %v2231, %v2487
    %v2525 = vmul.f32 %v2233, %v2489
    %v2526 = vmul.f32 %v2235, %v2491
    %v2527 = vmul.f32 %v2237, %v2493
    %v2528 = vmul.f32 %v2239, %v2495
    %v2529 = vmul.f32 %v2241, %v2497
    %s2530 = scalar_lea.vmem %s0, 384
    %v2531 = vld [vmem:[%s2530] sm:$0xff]
    %v2532 = vld [vmem:[%s2530 + $0x8] sm:$0xff]
    %v2533 = vld [vmem:[%s2530 + $0x10] sm:$0xff]
    %v2534 = vld [vmem:[%s2530 + $0x18] sm:$0xff]
    %v2535 = vld [vmem:[%s2530 + $0x20] sm:$0xff]
    %v2536 = vld [vmem:[%s2530 + $0x28] sm:$0xff]
    %v2537 = vld [vmem:[%s2530 + $0x30] sm:$0xff]
    %v2538 = vld [vmem:[%s2530 + $0x38] sm:$0xff]
    %v2539 = vld [vmem:[%s2530 + $0x40] sm:$0xff]
    %v2540 = vld [vmem:[%s2530 + $0x48] sm:$0xff]
    %v2541 = vld [vmem:[%s2530 + $0x50] sm:$0xff]
    %v2542 = vld [vmem:[%s2530 + $0x58] sm:$0xff]
    %v2543 = vld [vmem:[%s2530 + $0x60] sm:$0xff]
    %v2544 = vld [vmem:[%s2530 + $0x68] sm:$0xff]
    %v2545 = vld [vmem:[%s2530 + $0x70] sm:$0xff]
    %v2546 = vld [vmem:[%s2530 + $0x78] sm:$0xff]
    %2548 = vset.pattern.permute.xlu0 0
    %2549 = vperm.xlu0 %2548, %v2531
    %v2550 = vpop.permute.xlu0 %2549
    %2553 = vset.pattern.permute.xlu0 0
    %2554 = vperm.xlu0 %2553, %v2532
    %v2555 = vpop.permute.xlu0 %2554
    %2558 = vset.pattern.permute.xlu0 0
    %2559 = vperm.xlu0 %2558, %v2533
    %v2560 = vpop.permute.xlu0 %2559
    %2563 = vset.pattern.permute.xlu0 0
    %2564 = vperm.xlu0 %2563, %v2534
    %v2565 = vpop.permute.xlu0 %2564
    %2568 = vset.pattern.permute.xlu0 0
    %2569 = vperm.xlu0 %2568, %v2535
    %v2570 = vpop.permute.xlu0 %2569
    %2573 = vset.pattern.permute.xlu0 0
    %2574 = vperm.xlu0 %2573, %v2536
    %v2575 = vpop.permute.xlu0 %2574
    %2578 = vset.pattern.permute.xlu0 0
    %2579 = vperm.xlu0 %2578, %v2537
    %v2580 = vpop.permute.xlu0 %2579
    %2583 = vset.pattern.permute.xlu0 0
    %2584 = vperm.xlu0 %2583, %v2538
    %v2585 = vpop.permute.xlu0 %2584
    %2588 = vset.pattern.permute.xlu0 0
    %2589 = vperm.xlu0 %2588, %v2539
    %v2590 = vpop.permute.xlu0 %2589
    %2593 = vset.pattern.permute.xlu0 0
    %2594 = vperm.xlu0 %2593, %v2540
    %v2595 = vpop.permute.xlu0 %2594
    %2598 = vset.pattern.permute.xlu0 0
    %2599 = vperm.xlu0 %2598, %v2541
    %v2600 = vpop.permute.xlu0 %2599
    %2603 = vset.pattern.permute.xlu0 0
    %2604 = vperm.xlu0 %2603, %v2542
    %v2605 = vpop.permute.xlu0 %2604
    %2608 = vset.pattern.permute.xlu0 0
    %2609 = vperm.xlu0 %2608, %v2543
    %v2610 = vpop.permute.xlu0 %2609
    %2613 = vset.pattern.permute.xlu0 0
    %2614 = vperm.xlu0 %2613, %v2544
    %v2615 = vpop.permute.xlu0 %2614
    %2618 = vset.pattern.permute.xlu0 0
    %2619 = vperm.xlu0 %2618, %v2545
    %v2620 = vpop.permute.xlu0 %2619
    %2623 = vset.pattern.permute.xlu0 0
    %2624 = vperm.xlu0 %2623, %v2546
    %v2625 = vpop.permute.xlu0 %2624
    %v2627 = vmul.f32 %v2550, %v143
    %v2628 = vmul.f32 %v2550, %v147
    %v2629 = vmul.f32 %v2555, %v143
    %v2630 = vmul.f32 %v2555, %v147
    %v2631 = vmul.f32 %v2560, %v143
    %v2632 = vmul.f32 %v2560, %v147
    %v2633 = vmul.f32 %v2565, %v143
    %v2634 = vmul.f32 %v2565, %v147
    %v2635 = vmul.f32 %v2570, %v143
    %v2636 = vmul.f32 %v2570, %v147
    %v2637 = vmul.f32 %v2575, %v143
    %v2638 = vmul.f32 %v2575, %v147
    %v2639 = vmul.f32 %v2580, %v143
    %v2640 = vmul.f32 %v2580, %v147
    %v2641 = vmul.f32 %v2585, %v143
    %v2642 = vmul.f32 %v2585, %v147
    %v2643 = vmul.f32 %v2590, %v143
    %v2644 = vmul.f32 %v2590, %v147
    %v2645 = vmul.f32 %v2595, %v143
    %v2646 = vmul.f32 %v2595, %v147
    %v2647 = vmul.f32 %v2600, %v143
    %v2648 = vmul.f32 %v2600, %v147
    %v2649 = vmul.f32 %v2605, %v143
    %v2650 = vmul.f32 %v2605, %v147
    %v2651 = vmul.f32 %v2610, %v143
    %v2652 = vmul.f32 %v2610, %v147
    %v2653 = vmul.f32 %v2615, %v143
    %v2654 = vmul.f32 %v2615, %v147
    %v2655 = vmul.f32 %v2620, %v143
    %v2656 = vmul.f32 %v2620, %v147
    %v2657 = vmul.f32 %v2625, %v143
    %v2658 = vmul.f32 %v2625, %v147
    %v2659 = vadd.f32 %v2627, %v186
    %v2660 = vadd.f32 %v2628, %v190
    %v2661 = vadd.f32 %v2629, %v186
    %v2662 = vadd.f32 %v2630, %v190
    %v2663 = vadd.f32 %v2631, %v186
    %v2664 = vadd.f32 %v2632, %v190
    %v2665 = vadd.f32 %v2633, %v186
    %v2666 = vadd.f32 %v2634, %v190
    %v2667 = vadd.f32 %v2635, %v186
    %v2668 = vadd.f32 %v2636, %v190
    %v2669 = vadd.f32 %v2637, %v186
    %v2670 = vadd.f32 %v2638, %v190
    %v2671 = vadd.f32 %v2639, %v186
    %v2672 = vadd.f32 %v2640, %v190
    %v2673 = vadd.f32 %v2641, %v186
    %v2674 = vadd.f32 %v2642, %v190
    %v2675 = vadd.f32 %v2643, %v186
    %v2676 = vadd.f32 %v2644, %v190
    %v2677 = vadd.f32 %v2645, %v186
    %v2678 = vadd.f32 %v2646, %v190
    %v2679 = vadd.f32 %v2647, %v186
    %v2680 = vadd.f32 %v2648, %v190
    %v2681 = vadd.f32 %v2649, %v186
    %v2682 = vadd.f32 %v2650, %v190
    %v2683 = vadd.f32 %v2651, %v186
    %v2684 = vadd.f32 %v2652, %v190
    %v2685 = vadd.f32 %v2653, %v186
    %v2686 = vadd.f32 %v2654, %v190
    %v2687 = vadd.f32 %v2655, %v186
    %v2688 = vadd.f32 %v2656, %v190
    %v2689 = vadd.f32 %v2657, %v186
    %v2690 = vadd.f32 %v2658, %v190
    %v2691 = vpack.c.bf16 %v2515, %v2514
    %v2692 = vpack.c.bf16 %v2517, %v2516
    %v2693 = vpack.c.bf16 %v2519, %v2518
    %v2694 = vpack.c.bf16 %v2521, %v2520
    %v2695 = vpack.c.bf16 %v2523, %v2522
    %v2696 = vpack.c.bf16 %v2525, %v2524
    %v2697 = vpack.c.bf16 %v2527, %v2526
    %v2698 = vpack.c.bf16 %v2529, %v2528
    %v2700 = vsel %vm265, %v2691, 0
    %v2703 = vsel %vm265, %v2692, 0
    %v2706 = vsel %vm265, %v2693, 0
    %v2709 = vsel %vm265, %v2694, 0
    %v2712 = vsel %vm265, %v2695, 0
    %v2715 = vsel %vm265, %v2696, 0
    %v2718 = vsel %vm265, %v2697, 0
    %v2721 = vsel %vm265, %v2698, 0
    %2723 = vmatprep.subr.bf16.mxu0 %v250
    %2724 = vmatpush1.bf16.msra.mxu0 %v249
    %2725 = vmatprep.subr.bf16.mxu0 %v252
    %2726 = vmatpush1.bf16.msra.mxu0 %v251
    %2727 = vmatprep.subr.bf16.mxu0 %v254
    %2728 = vmatpush1.bf16.msra.mxu0 %v253
    %2729 = vmatprep.subr.bf16.mxu0 %v256
    %2730 = vmatpush1.bf16.msra.mxu0 %v255
    %2731 = vmatprep.subr.bf16.mxu0 0
    %2732 = vmatpush1.bf16.msra.mxu0 0
    %2733 = vmatprep.subr.bf16.mxu0 0
    %2734 = vmatpush1.bf16.msra.mxu0 0
    %2735 = vmatprep.subr.bf16.mxu0 0
    %2736 = vmatpush1.bf16.msra.mxu0 0
    %2737 = vmatprep.subr.bf16.mxu0 0
    %2738 = vmatpush1.bf16.msra.mxu0 0
    %2739 = vmatprep.subr.bf16.mxu0 0
    %2740 = vmatpush1.bf16.msra.mxu0 0
    %2741 = vmatprep.subr.bf16.mxu0 0
    %2742 = vmatpush1.bf16.msra.mxu0 0
    %2743 = vmatprep.subr.bf16.mxu0 0
    %2744 = vmatpush1.bf16.msra.mxu0 0
    %2745 = vmatprep.subr.bf16.mxu0 0
    %2746 = vmatpush1.bf16.msra.mxu0 0
    %2747 = vmatprep.subr.bf16.mxu0 0
    %2748 = vmatpush1.bf16.msra.mxu0 0
    %2749 = vmatprep.subr.bf16.mxu0 0
    %2750 = vmatpush1.bf16.msra.mxu0 0
    %2751 = vmatprep.subr.bf16.mxu0 0
    %2752 = vmatpush1.bf16.msra.mxu0 0
    %2753 = vmatprep.subr.bf16.mxu0 0
    %2754 = vmatpush1.bf16.msra.mxu0 0
    %2755 = vmatprep.mubr.bf16.mxu0 0
    %2756 = vmatmul.mubr.bf16.gmra.mrb[0].mxu0 %v2700
    %v2757 = vpop.f32.mrb[0].mxu0
    %v2758 = vadd.f32 0.0, %v2757
    %v2759 = vpop.f32.mrb[0].mxu0
    %v2760 = vadd.f32 0.0, %v2759
    %v2761 = vpop.f32.mrb[0].mxu0
    %v2762 = vadd.f32 0.0, %v2761
    %v2763 = vpop.f32.mrb[0].mxu0
    %v2764 = vadd.f32 0.0, %v2763
    %2765 = vmatprep.mubr.bf16.mxu0 0
    %2766 = vmatmul.mubr.bf16.gmra.mrb[0].mxu0 %v2703
    %v2767 = vpop.f32.mrb[0].mxu0
    %v2768 = vadd.f32 0.0, %v2767
    %v2769 = vpop.f32.mrb[0].mxu0
    %v2770 = vadd.f32 0.0, %v2769
    %v2771 = vpop.f32.mrb[0].mxu0
    %v2772 = vadd.f32 0.0, %v2771
    %v2773 = vpop.f32.mrb[0].mxu0
    %v2774 = vadd.f32 0.0, %v2773
    %2775 = vmatprep.mubr.bf16.mxu0 0
    %2776 = vmatmul.mubr.bf16.gmra.mrb[0].mxu0 %v2706
    %v2777 = vpop.f32.mrb[0].mxu0
    %v2778 = vadd.f32 0.0, %v2777
    %v2779 = vpop.f32.mrb[0].mxu0
    %v2780 = vadd.f32 0.0, %v2779
    %v2781 = vpop.f32.mrb[0].mxu0
    %v2782 = vadd.f32 0.0, %v2781
    %v2783 = vpop.f32.mrb[0].mxu0
    %v2784 = vadd.f32 0.0, %v2783
    %2785 = vmatprep.mubr.bf16.mxu0 0
    %2786 = vmatmul.mubr.bf16.gmra.mrb[0].mxu0 %v2709
    %v2787 = vpop.f32.mrb[0].mxu0
    %v2788 = vadd.f32 0.0, %v2787
    %v2789 = vpop.f32.mrb[0].mxu0
    %v2790 = vadd.f32 0.0, %v2789
    %v2791 = vpop.f32.mrb[0].mxu0
    %v2792 = vadd.f32 0.0, %v2791
    %v2793 = vpop.f32.mrb[0].mxu0
    %v2794 = vadd.f32 0.0, %v2793
    %2795 = vmatprep.mubr.bf16.mxu0 0
    %2796 = vmatmul.mubr.bf16.gmra.mrb[0].mxu0 %v2712
    %v2797 = vpop.f32.mrb[0].mxu0
    %v2798 = vadd.f32 0.0, %v2797
    %v2799 = vpop.f32.mrb[0].mxu0
    %v2800 = vadd.f32 0.0, %v2799
    %v2801 = vpop.f32.mrb[0].mxu0
    %v2802 = vadd.f32 0.0, %v2801
    %v2803 = vpop.f32.mrb[0].mxu0
    %v2804 = vadd.f32 0.0, %v2803
    %2805 = vmatprep.mubr.bf16.mxu0 0
    %2806 = vmatmul.mubr.bf16.gmra.mrb[0].mxu0 %v2715
    %v2807 = vpop.f32.mrb[0].mxu0
    %v2808 = vadd.f32 0.0, %v2807
    %v2809 = vpop.f32.mrb[0].mxu0
    %v2810 = vadd.f32 0.0, %v2809
    %v2811 = vpop.f32.mrb[0].mxu0
    %v2812 = vadd.f32 0.0, %v2811
    %v2813 = vpop.f32.mrb[0].mxu0
    %v2814 = vadd.f32 0.0, %v2813
    %2815 = vmatprep.mubr.bf16.mxu0 0
    %2816 = vmatmul.mubr.bf16.gmra.mrb[0].mxu0 %v2718
    %v2817 = vpop.f32.mrb[0].mxu0
    %v2818 = vadd.f32 0.0, %v2817
    %v2819 = vpop.f32.mrb[0].mxu0
    %v2820 = vadd.f32 0.0, %v2819
    %v2821 = vpop.f32.mrb[0].mxu0
    %v2822 = vadd.f32 0.0, %v2821
    %v2823 = vpop.f32.mrb[0].mxu0
    %v2824 = vadd.f32 0.0, %v2823
    %2825 = vmatprep.mubr.bf16.mxu0 0
    %2826 = vmatmul.mubr.bf16.gmra.mrb[0].mxu0 %v2721
    %v2827 = vpop.f32.mrb[0].mxu0
    %v2828 = vadd.f32 0.0, %v2827
    %v2829 = vpop.f32.mrb[0].mxu0
    %v2830 = vadd.f32 0.0, %v2829
    %v2831 = vpop.f32.mrb[0].mxu0
    %v2832 = vadd.f32 0.0, %v2831
    %v2833 = vpop.f32.mrb[0].mxu0
    %v2834 = vadd.f32 0.0, %v2833
    %2835 = vdwg.mxu0
    %v2836 = vadd.f32 %v2659, %v2758
    %v2837 = vadd.f32 %v2660, %v2760
    %v2838 = vadd.f32 %v2661, %v2762
    %v2839 = vadd.f32 %v2662, %v2764
    %v2840 = vadd.f32 %v2663, %v2768
    %v2841 = vadd.f32 %v2664, %v2770
    %v2842 = vadd.f32 %v2665, %v2772
    %v2843 = vadd.f32 %v2666, %v2774
    %v2844 = vadd.f32 %v2667, %v2778
    %v2845 = vadd.f32 %v2668, %v2780
    %v2846 = vadd.f32 %v2669, %v2782
    %v2847 = vadd.f32 %v2670, %v2784
    %v2848 = vadd.f32 %v2671, %v2788
    %v2849 = vadd.f32 %v2672, %v2790
    %v2850 = vadd.f32 %v2673, %v2792
    %v2851 = vadd.f32 %v2674, %v2794
    %v2852 = vadd.f32 %v2675, %v2798
    %v2853 = vadd.f32 %v2676, %v2800
    %v2854 = vadd.f32 %v2677, %v2802
    %v2855 = vadd.f32 %v2678, %v2804
    %v2856 = vadd.f32 %v2679, %v2808
    %v2857 = vadd.f32 %v2680, %v2810
    %v2858 = vadd.f32 %v2681, %v2812
    %v2859 = vadd.f32 %v2682, %v2814
    %v2860 = vadd.f32 %v2683, %v2818
    %v2861 = vadd.f32 %v2684, %v2820
    %v2862 = vadd.f32 %v2685, %v2822
    %v2863 = vadd.f32 %v2686, %v2824
    %v2864 = vadd.f32 %v2687, %v2828
    %v2865 = vadd.f32 %v2688, %v2830
    %v2866 = vadd.f32 %v2689, %v2832
    %v2867 = vadd.f32 %v2690, %v2834
    %v2868 = vxor.u32 %v2836, 2147483648
    %v2869 = vxor.u32 %v2838, 2147483648
    %v2870 = vxor.u32 %v2840, 2147483648
    %v2871 = vxor.u32 %v2842, 2147483648
    %v2872 = vxor.u32 %v2844, 2147483648
    %v2873 = vxor.u32 %v2846, 2147483648
    %v2874 = vxor.u32 %v2848, 2147483648
    %v2875 = vxor.u32 %v2850, 2147483648
    %v2876 = vxor.u32 %v2852, 2147483648
    %v2877 = vxor.u32 %v2854, 2147483648
    %v2878 = vxor.u32 %v2856, 2147483648
    %v2879 = vxor.u32 %v2858, 2147483648
    %v2880 = vxor.u32 %v2860, 2147483648
    %v2881 = vxor.u32 %v2862, 2147483648
    %v2882 = vxor.u32 %v2864, 2147483648
    %v2883 = vxor.u32 %v2866, 2147483648
    %v2884 = vmul.f32 %v2868, 1.442695
    %v2885 = vpow.pop %v2884
    %v2886 = vmul.f32 %v2869, 1.442695
    %v2887 = vpow.pop %v2886
    %v2888 = vmul.f32 %v2870, 1.442695
    %v2889 = vpow.pop %v2888
    %v2890 = vmul.f32 %v2871, 1.442695
    %v2891 = vpow.pop %v2890
    %v2892 = vmul.f32 %v2872, 1.442695
    %v2893 = vpow.pop %v2892
    %v2894 = vmul.f32 %v2873, 1.442695
    %v2895 = vpow.pop %v2894
    %v2896 = vmul.f32 %v2874, 1.442695
    %v2897 = vpow.pop %v2896
    %v2898 = vmul.f32 %v2875, 1.442695
    %v2899 = vpow.pop %v2898
    %v2900 = vmul.f32 %v2876, 1.442695
    %v2901 = vpow.pop %v2900
    %v2902 = vmul.f32 %v2877, 1.442695
    %v2903 = vpow.pop %v2902
    %v2904 = vmul.f32 %v2878, 1.442695
    %v2905 = vpow.pop %v2904
    %v2906 = vmul.f32 %v2879, 1.442695
    %v2907 = vpow.pop %v2906
    %v2908 = vmul.f32 %v2880, 1.442695
    %v2909 = vpow.pop %v2908
    %v2910 = vmul.f32 %v2881, 1.442695
    %v2911 = vpow.pop %v2910
    %v2912 = vmul.f32 %v2882, 1.442695
    %v2913 = vpow.pop %v2912
    %v2914 = vmul.f32 %v2883, 1.442695
    %v2915 = vpow.pop %v2914
    %v2916 = vadd.f32 %v2885, 1.0
    %v2917 = vadd.f32 %v2887, 1.0
    %v2918 = vadd.f32 %v2889, 1.0
    %v2919 = vadd.f32 %v2891, 1.0
    %v2920 = vadd.f32 %v2893, 1.0
    %v2921 = vadd.f32 %v2895, 1.0
    %v2922 = vadd.f32 %v2897, 1.0
    %v2923 = vadd.f32 %v2899, 1.0
    %v2924 = vadd.f32 %v2901, 1.0
    %v2925 = vadd.f32 %v2903, 1.0
    %v2926 = vadd.f32 %v2905, 1.0
    %v2927 = vadd.f32 %v2907, 1.0
    %v2928 = vadd.f32 %v2909, 1.0
    %v2929 = vadd.f32 %v2911, 1.0
    %v2930 = vadd.f32 %v2913, 1.0
    %v2931 = vadd.f32 %v2915, 1.0
    %v2932 = vrcp.pop %v2916
    %v2933 = vmul.f32 1.0, %v2932
    %v2934 = vrcp.pop %v2917
    %v2935 = vmul.f32 1.0, %v2934
    %v2936 = vrcp.pop %v2918
    %v2937 = vmul.f32 1.0, %v2936
    %v2938 = vrcp.pop %v2919
    %v2939 = vmul.f32 1.0, %v2938
    %v2940 = vrcp.pop %v2920
    %v2941 = vmul.f32 1.0, %v2940
    %v2942 = vrcp.pop %v2921
    %v2943 = vmul.f32 1.0, %v2942
    %v2944 = vrcp.pop %v2922
    %v2945 = vmul.f32 1.0, %v2944
    %v2946 = vrcp.pop %v2923
    %v2947 = vmul.f32 1.0, %v2946
    %v2948 = vrcp.pop %v2924
    %v2949 = vmul.f32 1.0, %v2948
    %v2950 = vrcp.pop %v2925
    %v2951 = vmul.f32 1.0, %v2950
    %v2952 = vrcp.pop %v2926
    %v2953 = vmul.f32 1.0, %v2952
    %v2954 = vrcp.pop %v2927
    %v2955 = vmul.f32 1.0, %v2954
    %v2956 = vrcp.pop %v2928
    %v2957 = vmul.f32 1.0, %v2956
    %v2958 = vrcp.pop %v2929
    %v2959 = vmul.f32 1.0, %v2958
    %v2960 = vrcp.pop %v2930
    %v2961 = vmul.f32 1.0, %v2960
    %v2962 = vrcp.pop %v2931
    %v2963 = vmul.f32 1.0, %v2962
    %v2964 = vxor.u32 %v2837, 2147483648
    %v2965 = vxor.u32 %v2839, 2147483648
    %v2966 = vxor.u32 %v2841, 2147483648
    %v2967 = vxor.u32 %v2843, 2147483648
    %v2968 = vxor.u32 %v2845, 2147483648
    %v2969 = vxor.u32 %v2847, 2147483648
    %v2970 = vxor.u32 %v2849, 2147483648
    %v2971 = vxor.u32 %v2851, 2147483648
    %v2972 = vxor.u32 %v2853, 2147483648
    %v2973 = vxor.u32 %v2855, 2147483648
    %v2974 = vxor.u32 %v2857, 2147483648
    %v2975 = vxor.u32 %v2859, 2147483648
    %v2976 = vxor.u32 %v2861, 2147483648
    %v2977 = vxor.u32 %v2863, 2147483648
    %v2978 = vxor.u32 %v2865, 2147483648
    %v2979 = vxor.u32 %v2867, 2147483648
    %v2980 = vmul.f32 %v2964, 1.442695
    %v2981 = vpow.pop %v2980
    %v2982 = vmul.f32 %v2965, 1.442695
    %v2983 = vpow.pop %v2982
    %v2984 = vmul.f32 %v2966, 1.442695
    %v2985 = vpow.pop %v2984
    %v2986 = vmul.f32 %v2967, 1.442695
    %v2987 = vpow.pop %v2986
    %v2988 = vmul.f32 %v2968, 1.442695
    %v2989 = vpow.pop %v2988
    %v2990 = vmul.f32 %v2969, 1.442695
    %v2991 = vpow.pop %v2990
    %v2992 = vmul.f32 %v2970, 1.442695
    %v2993 = vpow.pop %v2992
    %v2994 = vmul.f32 %v2971, 1.442695
    %v2995 = vpow.pop %v2994
    %v2996 = vmul.f32 %v2972, 1.442695
    %v2997 = vpow.pop %v2996
    %v2998 = vmul.f32 %v2973, 1.442695
    %v2999 = vpow.pop %v2998
    %v3000 = vmul.f32 %v2974, 1.442695
    %v3001 = vpow.pop %v3000
    %v3002 = vmul.f32 %v2975, 1.442695
    %v3003 = vpow.pop %v3002
    %v3004 = vmul.f32 %v2976, 1.442695
    %v3005 = vpow.pop %v3004
    %v3006 = vmul.f32 %v2977, 1.442695
    %v3007 = vpow.pop %v3006
    %v3008 = vmul.f32 %v2978, 1.442695
    %v3009 = vpow.pop %v3008
    %v3010 = vmul.f32 %v2979, 1.442695
    %v3011 = vpow.pop %v3010
    %v3012 = vadd.f32 %v2981, 1.0
    %v3013 = vadd.f32 %v2983, 1.0
    %v3014 = vadd.f32 %v2985, 1.0
    %v3015 = vadd.f32 %v2987, 1.0
    %v3016 = vadd.f32 %v2989, 1.0
    %v3017 = vadd.f32 %v2991, 1.0
    %v3018 = vadd.f32 %v2993, 1.0
    %v3019 = vadd.f32 %v2995, 1.0
    %v3020 = vadd.f32 %v2997, 1.0
    %v3021 = vadd.f32 %v2999, 1.0
    %v3022 = vadd.f32 %v3001, 1.0
    %v3023 = vadd.f32 %v3003, 1.0
    %v3024 = vadd.f32 %v3005, 1.0
    %v3025 = vadd.f32 %v3007, 1.0
    %v3026 = vadd.f32 %v3009, 1.0
    %v3027 = vadd.f32 %v3011, 1.0
    %v3028 = vrcp.pop %v3012
    %v3029 = vmul.f32 1.0, %v3028
    %v3030 = vrcp.pop %v3013
    %v3031 = vmul.f32 1.0, %v3030
    %v3032 = vrcp.pop %v3014
    %v3033 = vmul.f32 1.0, %v3032
    %v3034 = vrcp.pop %v3015
    %v3035 = vmul.f32 1.0, %v3034
    %v3036 = vrcp.pop %v3016
    %v3037 = vmul.f32 1.0, %v3036
    %v3038 = vrcp.pop %v3017
    %v3039 = vmul.f32 1.0, %v3038
    %v3040 = vrcp.pop %v3018
    %v3041 = vmul.f32 1.0, %v3040
    %v3042 = vrcp.pop %v3019
    %v3043 = vmul.f32 1.0, %v3042
    %v3044 = vrcp.pop %v3020
    %v3045 = vmul.f32 1.0, %v3044
    %v3046 = vrcp.pop %v3021
    %v3047 = vmul.f32 1.0, %v3046
    %v3048 = vrcp.pop %v3022
    %v3049 = vmul.f32 1.0, %v3048
    %v3050 = vrcp.pop %v3023
    %v3051 = vmul.f32 1.0, %v3050
    %v3052 = vrcp.pop %v3024
    %v3053 = vmul.f32 1.0, %v3052
    %v3054 = vrcp.pop %v3025
    %v3055 = vmul.f32 1.0, %v3054
    %v3056 = vrcp.pop %v3026
    %v3057 = vmul.f32 1.0, %v3056
    %v3058 = vrcp.pop %v3027
    %v3059 = vmul.f32 1.0, %v3058
    %v3060 = vtanh.pop %v2837
    %v3061 = vtanh.pop %v2839
    %v3062 = vtanh.pop %v2841
    %v3063 = vtanh.pop %v2843
    %v3064 = vtanh.pop %v2845
    %v3065 = vtanh.pop %v2847
    %v3066 = vtanh.pop %v2849
    %v3067 = vtanh.pop %v2851
    %v3068 = vtanh.pop %v2853
    %v3069 = vtanh.pop %v2855
    %v3070 = vtanh.pop %v2857
    %v3071 = vtanh.pop %v2859
    %v3072 = vtanh.pop %v2861
    %v3073 = vtanh.pop %v2863
    %v3074 = vtanh.pop %v2865
    %v3075 = vtanh.pop %v2867
    %v3076 = vmul.f32 %v2933, %v2418
    %v3077 = vmul.f32 %v2935, %v2419
    %v3078 = vmul.f32 %v2937, %v2420
    %v3079 = vmul.f32 %v2939, %v2421
    %v3080 = vmul.f32 %v2941, %v2422
    %v3081 = vmul.f32 %v2943, %v2423
    %v3082 = vmul.f32 %v2945, %v2424
    %v3083 = vmul.f32 %v2947, %v2425
    %v3084 = vmul.f32 %v2949, %v2426
    %v3085 = vmul.f32 %v2951, %v2427
    %v3086 = vmul.f32 %v2953, %v2428
    %v3087 = vmul.f32 %v2955, %v2429
    %v3088 = vmul.f32 %v2957, %v2430
    %v3089 = vmul.f32 %v2959, %v2431
    %v3090 = vmul.f32 %v2961, %v2432
    %v3091 = vmul.f32 %v2963, %v2433
    %3108 = vrot.lane.b32.xlu0 %v3060, 64
    %v3109 = vpop.permute.xlu0 %3108
    %3110 = vrot.lane.b32.xlu0 %v3061, 64
    %v3111 = vpop.permute.xlu0 %3110
    %3112 = vrot.lane.b32.xlu0 %v3062, 64
    %v3113 = vpop.permute.xlu0 %3112
    %3114 = vrot.lane.b32.xlu0 %v3063, 64
    %v3115 = vpop.permute.xlu0 %3114
    %3116 = vrot.lane.b32.xlu0 %v3064, 64
    %v3117 = vpop.permute.xlu0 %3116
    %3118 = vrot.lane.b32.xlu0 %v3065, 64
    %v3119 = vpop.permute.xlu0 %3118
    %3120 = vrot.lane.b32.xlu0 %v3066, 64
    %v3121 = vpop.permute.xlu0 %3120
    %3122 = vrot.lane.b32.xlu0 %v3067, 64
    %v3123 = vpop.permute.xlu0 %3122
    %3124 = vrot.lane.b32.xlu0 %v3068, 64
    %v3125 = vpop.permute.xlu0 %3124
    %3126 = vrot.lane.b32.xlu0 %v3069, 64
    %v3127 = vpop.permute.xlu0 %3126
    %3128 = vrot.lane.b32.xlu0 %v3070, 64
    %v3129 = vpop.permute.xlu0 %3128
    %3130 = vrot.lane.b32.xlu0 %v3071, 64
    %v3131 = vpop.permute.xlu0 %3130
    %3132 = vrot.lane.b32.xlu0 %v3072, 64
    %v3133 = vpop.permute.xlu0 %3132
    %3134 = vrot.lane.b32.xlu0 %v3073, 64
    %v3135 = vpop.permute.xlu0 %3134
    %3136 = vrot.lane.b32.xlu0 %v3074, 64
    %v3137 = vpop.permute.xlu0 %3136
    %3138 = vrot.lane.b32.xlu0 %v3075, 64
    %v3139 = vpop.permute.xlu0 %3138
    %v3156 = vmul.f32 %v2933, %v3109
    %v3157 = vmul.f32 %v2935, %v3111
    %v3158 = vmul.f32 %v2937, %v3113
    %v3159 = vmul.f32 %v2939, %v3115
    %v3160 = vmul.f32 %v2941, %v3117
    %v3161 = vmul.f32 %v2943, %v3119
    %v3162 = vmul.f32 %v2945, %v3121
    %v3163 = vmul.f32 %v2947, %v3123
    %v3164 = vmul.f32 %v2949, %v3125
    %v3165 = vmul.f32 %v2951, %v3127
    %v3166 = vmul.f32 %v2953, %v3129
    %v3167 = vmul.f32 %v2955, %v3131
    %v3168 = vmul.f32 %v2957, %v3133
    %v3169 = vmul.f32 %v2959, %v3135
    %v3170 = vmul.f32 %v2961, %v3137
    %v3171 = vmul.f32 %v2963, %v3139
    %3188 = vrot.lane.b32.xlu0 %v3156, 64
    %v3189 = vpop.permute.xlu0 %3188
    %3190 = vrot.lane.b32.xlu0 %v3157, 64
    %v3191 = vpop.permute.xlu0 %3190
    %3192 = vrot.lane.b32.xlu0 %v3158, 64
    %v3193 = vpop.permute.xlu0 %3192
    %3194 = vrot.lane.b32.xlu0 %v3159, 64
    %v3195 = vpop.permute.xlu0 %3194
    %3196 = vrot.lane.b32.xlu0 %v3160, 64
    %v3197 = vpop.permute.xlu0 %3196
    %3198 = vrot.lane.b32.xlu0 %v3161, 64
    %v3199 = vpop.permute.xlu0 %3198
    %3200 = vrot.lane.b32.xlu0 %v3162, 64
    %v3201 = vpop.permute.xlu0 %3200
    %3202 = vrot.lane.b32.xlu0 %v3163, 64
    %v3203 = vpop.permute.xlu0 %3202
    %3204 = vrot.lane.b32.xlu0 %v3164, 64
    %v3205 = vpop.permute.xlu0 %3204
    %3206 = vrot.lane.b32.xlu0 %v3165, 64
    %v3207 = vpop.permute.xlu0 %3206
    %3208 = vrot.lane.b32.xlu0 %v3166, 64
    %v3209 = vpop.permute.xlu0 %3208
    %3210 = vrot.lane.b32.xlu0 %v3167, 64
    %v3211 = vpop.permute.xlu0 %3210
    %3212 = vrot.lane.b32.xlu0 %v3168, 64
    %v3213 = vpop.permute.xlu0 %3212
    %3214 = vrot.lane.b32.xlu0 %v3169, 64
    %v3215 = vpop.permute.xlu0 %3214
    %3216 = vrot.lane.b32.xlu0 %v3170, 64
    %v3217 = vpop.permute.xlu0 %3216
    %3218 = vrot.lane.b32.xlu0 %v3171, 64
    %v3219 = vpop.permute.xlu0 %3218
    %v3236 = vadd.f32 %v3076, %v3189
    %v3237 = vadd.f32 %v3077, %v3191
    %v3238 = vadd.f32 %v3078, %v3193
    %v3239 = vadd.f32 %v3079, %v3195
    %v3240 = vadd.f32 %v3080, %v3197
    %v3241 = vadd.f32 %v3081, %v3199
    %v3242 = vadd.f32 %v3082, %v3201
    %v3243 = vadd.f32 %v3083, %v3203
    %v3244 = vadd.f32 %v3084, %v3205
    %v3245 = vadd.f32 %v3085, %v3207
    %v3246 = vadd.f32 %v3086, %v3209
    %v3247 = vadd.f32 %v3087, %v3211
    %v3248 = vadd.f32 %v3088, %v3213
    %v3249 = vadd.f32 %v3089, %v3215
    %v3250 = vadd.f32 %v3090, %v3217
    %v3251 = vadd.f32 %v3091, %v3219
    %v3252 = vtanh.pop %v3236
    %v3253 = vtanh.pop %v3237
    %v3254 = vtanh.pop %v3238
    %v3255 = vtanh.pop %v3239
    %v3256 = vtanh.pop %v3240
    %v3257 = vtanh.pop %v3241
    %v3258 = vtanh.pop %v3242
    %v3259 = vtanh.pop %v3243
    %v3260 = vtanh.pop %v3244
    %v3261 = vtanh.pop %v3245
    %v3262 = vtanh.pop %v3246
    %v3263 = vtanh.pop %v3247
    %v3264 = vtanh.pop %v3248
    %v3265 = vtanh.pop %v3249
    %v3266 = vtanh.pop %v3250
    %v3267 = vtanh.pop %v3251
    %3284 = vrot.lane.b32.xlu0 %v3252, 64
    %v3285 = vpop.permute.xlu0 %3284
    %3286 = vrot.lane.b32.xlu0 %v3253, 64
    %v3287 = vpop.permute.xlu0 %3286
    %3288 = vrot.lane.b32.xlu0 %v3254, 64
    %v3289 = vpop.permute.xlu0 %3288
    %3290 = vrot.lane.b32.xlu0 %v3255, 64
    %v3291 = vpop.permute.xlu0 %3290
    %3292 = vrot.lane.b32.xlu0 %v3256, 64
    %v3293 = vpop.permute.xlu0 %3292
    %3294 = vrot.lane.b32.xlu0 %v3257, 64
    %v3295 = vpop.permute.xlu0 %3294
    %3296 = vrot.lane.b32.xlu0 %v3258, 64
    %v3297 = vpop.permute.xlu0 %3296
    %3298 = vrot.lane.b32.xlu0 %v3259, 64
    %v3299 = vpop.permute.xlu0 %3298
    %3300 = vrot.lane.b32.xlu0 %v3260, 64
    %v3301 = vpop.permute.xlu0 %3300
    %3302 = vrot.lane.b32.xlu0 %v3261, 64
    %v3303 = vpop.permute.xlu0 %3302
    %3304 = vrot.lane.b32.xlu0 %v3262, 64
    %v3305 = vpop.permute.xlu0 %3304
    %3306 = vrot.lane.b32.xlu0 %v3263, 64
    %v3307 = vpop.permute.xlu0 %3306
    %3308 = vrot.lane.b32.xlu0 %v3264, 64
    %v3309 = vpop.permute.xlu0 %3308
    %3310 = vrot.lane.b32.xlu0 %v3265, 64
    %v3311 = vpop.permute.xlu0 %3310
    %3312 = vrot.lane.b32.xlu0 %v3266, 64
    %v3313 = vpop.permute.xlu0 %3312
    %3314 = vrot.lane.b32.xlu0 %v3267, 64
    %v3315 = vpop.permute.xlu0 %3314
    %v3332 = vmul.f32 %v3029, %v3285
    %v3333 = vmul.f32 %v3031, %v3287
    %v3334 = vmul.f32 %v3033, %v3289
    %v3335 = vmul.f32 %v3035, %v3291
    %v3336 = vmul.f32 %v3037, %v3293
    %v3337 = vmul.f32 %v3039, %v3295
    %v3338 = vmul.f32 %v3041, %v3297
    %v3339 = vmul.f32 %v3043, %v3299
    %v3340 = vmul.f32 %v3045, %v3301
    %v3341 = vmul.f32 %v3047, %v3303
    %v3342 = vmul.f32 %v3049, %v3305
    %v3343 = vmul.f32 %v3051, %v3307
    %v3344 = vmul.f32 %v3053, %v3309
    %v3345 = vmul.f32 %v3055, %v3311
    %v3346 = vmul.f32 %v3057, %v3313
    %v3347 = vmul.f32 %v3059, %v3315
    %s3348 = scalar_lea.vmem %s0, 512
    %v3349 = vld [vmem:[%s3348] sm:$0xff]
    %v3350 = vld [vmem:[%s3348 + $0x8] sm:$0xff]
    %v3351 = vld [vmem:[%s3348 + $0x10] sm:$0xff]
    %v3352 = vld [vmem:[%s3348 + $0x18] sm:$0xff]
    %v3353 = vld [vmem:[%s3348 + $0x20] sm:$0xff]
    %v3354 = vld [vmem:[%s3348 + $0x28] sm:$0xff]
    %v3355 = vld [vmem:[%s3348 + $0x30] sm:$0xff]
    %v3356 = vld [vmem:[%s3348 + $0x38] sm:$0xff]
    %v3357 = vld [vmem:[%s3348 + $0x40] sm:$0xff]
    %v3358 = vld [vmem:[%s3348 + $0x48] sm:$0xff]
    %v3359 = vld [vmem:[%s3348 + $0x50] sm:$0xff]
    %v3360 = vld [vmem:[%s3348 + $0x58] sm:$0xff]
    %v3361 = vld [vmem:[%s3348 + $0x60] sm:$0xff]
    %v3362 = vld [vmem:[%s3348 + $0x68] sm:$0xff]
    %v3363 = vld [vmem:[%s3348 + $0x70] sm:$0xff]
    %v3364 = vld [vmem:[%s3348 + $0x78] sm:$0xff]
    %3366 = vset.pattern.permute.xlu0 0
    %3367 = vperm.xlu0 %3366, %v3349
    %v3368 = vpop.permute.xlu0 %3367
    %3371 = vset.pattern.permute.xlu0 0
    %3372 = vperm.xlu0 %3371, %v3350
    %v3373 = vpop.permute.xlu0 %3372
    %3376 = vset.pattern.permute.xlu0 0
    %3377 = vperm.xlu0 %3376, %v3351
    %v3378 = vpop.permute.xlu0 %3377
    %3381 = vset.pattern.permute.xlu0 0
    %3382 = vperm.xlu0 %3381, %v3352
    %v3383 = vpop.permute.xlu0 %3382
    %3386 = vset.pattern.permute.xlu0 0
    %3387 = vperm.xlu0 %3386, %v3353
    %v3388 = vpop.permute.xlu0 %3387
    %3391 = vset.pattern.permute.xlu0 0
    %3392 = vperm.xlu0 %3391, %v3354
    %v3393 = vpop.permute.xlu0 %3392
    %3396 = vset.pattern.permute.xlu0 0
    %3397 = vperm.xlu0 %3396, %v3355
    %v3398 = vpop.permute.xlu0 %3397
    %3401 = vset.pattern.permute.xlu0 0
    %3402 = vperm.xlu0 %3401, %v3356
    %v3403 = vpop.permute.xlu0 %3402
    %3406 = vset.pattern.permute.xlu0 0
    %3407 = vperm.xlu0 %3406, %v3357
    %v3408 = vpop.permute.xlu0 %3407
    %3411 = vset.pattern.permute.xlu0 0
    %3412 = vperm.xlu0 %3411, %v3358
    %v3413 = vpop.permute.xlu0 %3412
    %3416 = vset.pattern.permute.xlu0 0
    %3417 = vperm.xlu0 %3416, %v3359
    %v3418 = vpop.permute.xlu0 %3417
    %3421 = vset.pattern.permute.xlu0 0
    %3422 = vperm.xlu0 %3421, %v3360
    %v3423 = vpop.permute.xlu0 %3422
    %3426 = vset.pattern.permute.xlu0 0
    %3427 = vperm.xlu0 %3426, %v3361
    %v3428 = vpop.permute.xlu0 %3427
    %3431 = vset.pattern.permute.xlu0 0
    %3432 = vperm.xlu0 %3431, %v3362
    %v3433 = vpop.permute.xlu0 %3432
    %3436 = vset.pattern.permute.xlu0 0
    %3437 = vperm.xlu0 %3436, %v3363
    %v3438 = vpop.permute.xlu0 %3437
    %3441 = vset.pattern.permute.xlu0 0
    %3442 = vperm.xlu0 %3441, %v3364
    %v3443 = vpop.permute.xlu0 %3442
    %v3445 = vmul.f32 %v3368, %v143
    %v3446 = vmul.f32 %v3368, %v147
    %v3447 = vmul.f32 %v3373, %v143
    %v3448 = vmul.f32 %v3373, %v147
    %v3449 = vmul.f32 %v3378, %v143
    %v3450 = vmul.f32 %v3378, %v147
    %v3451 = vmul.f32 %v3383, %v143
    %v3452 = vmul.f32 %v3383, %v147
    %v3453 = vmul.f32 %v3388, %v143
    %v3454 = vmul.f32 %v3388, %v147
    %v3455 = vmul.f32 %v3393, %v143
    %v3456 = vmul.f32 %v3393, %v147
    %v3457 = vmul.f32 %v3398, %v143
    %v3458 = vmul.f32 %v3398, %v147
    %v3459 = vmul.f32 %v3403, %v143
    %v3460 = vmul.f32 %v3403, %v147
    %v3461 = vmul.f32 %v3408, %v143
    %v3462 = vmul.f32 %v3408, %v147
    %v3463 = vmul.f32 %v3413, %v143
    %v3464 = vmul.f32 %v3413, %v147
    %v3465 = vmul.f32 %v3418, %v143
    %v3466 = vmul.f32 %v3418, %v147
    %v3467 = vmul.f32 %v3423, %v143
    %v3468 = vmul.f32 %v3423, %v147
    %v3469 = vmul.f32 %v3428, %v143
    %v3470 = vmul.f32 %v3428, %v147
    %v3471 = vmul.f32 %v3433, %v143
    %v3472 = vmul.f32 %v3433, %v147
    %v3473 = vmul.f32 %v3438, %v143
    %v3474 = vmul.f32 %v3438, %v147
    %v3475 = vmul.f32 %v3443, %v143
    %v3476 = vmul.f32 %v3443, %v147
    %v3477 = vadd.f32 %v3445, %v186
    %v3478 = vadd.f32 %v3446, %v190
    %v3479 = vadd.f32 %v3447, %v186
    %v3480 = vadd.f32 %v3448, %v190
    %v3481 = vadd.f32 %v3449, %v186
    %v3482 = vadd.f32 %v3450, %v190
    %v3483 = vadd.f32 %v3451, %v186
    %v3484 = vadd.f32 %v3452, %v190
    %v3485 = vadd.f32 %v3453, %v186
    %v3486 = vadd.f32 %v3454, %v190
    %v3487 = vadd.f32 %v3455, %v186
    %v3488 = vadd.f32 %v3456, %v190
    %v3489 = vadd.f32 %v3457, %v186
    %v3490 = vadd.f32 %v3458, %v190
    %v3491 = vadd.f32 %v3459, %v186
    %v3492 = vadd.f32 %v3460, %v190
    %v3493 = vadd.f32 %v3461, %v186
    %v3494 = vadd.f32 %v3462, %v190
    %v3495 = vadd.f32 %v3463, %v186
    %v3496 = vadd.f32 %v3464, %v190
    %v3497 = vadd.f32 %v3465, %v186
    %v3498 = vadd.f32 %v3466, %v190
    %v3499 = vadd.f32 %v3467, %v186
    %v3500 = vadd.f32 %v3468, %v190
    %v3501 = vadd.f32 %v3469, %v186
    %v3502 = vadd.f32 %v3470, %v190
    %v3503 = vadd.f32 %v3471, %v186
    %v3504 = vadd.f32 %v3472, %v190
    %v3505 = vadd.f32 %v3473, %v186
    %v3506 = vadd.f32 %v3474, %v190
    %v3507 = vadd.f32 %v3475, %v186
    %v3508 = vadd.f32 %v3476, %v190
    %v3509 = vpack.c.bf16 %v3333, %v3332
    %v3510 = vpack.c.bf16 %v3335, %v3334
    %v3511 = vpack.c.bf16 %v3337, %v3336
    %v3512 = vpack.c.bf16 %v3339, %v3338
    %v3513 = vpack.c.bf16 %v3341, %v3340
    %v3514 = vpack.c.bf16 %v3343, %v3342
    %v3515 = vpack.c.bf16 %v3345, %v3344
    %v3516 = vpack.c.bf16 %v3347, %v3346
    %v3518 = vsel %vm265, %v3509, 0
    %v3521 = vsel %vm265, %v3510, 0
    %v3524 = vsel %vm265, %v3511, 0
    %v3527 = vsel %vm265, %v3512, 0
    %v3530 = vsel %vm265, %v3513, 0
    %v3533 = vsel %vm265, %v3514, 0
    %v3536 = vsel %vm265, %v3515, 0
    %v3539 = vsel %vm265, %v3516, 0
    %3541 = vmatprep.subr.bf16.mxu0 %v250
    %3542 = vmatpush1.bf16.msra.mxu0 %v249
    %3543 = vmatprep.subr.bf16.mxu0 %v252
    %3544 = vmatpush1.bf16.msra.mxu0 %v251
    %3545 = vmatprep.subr.bf16.mxu0 %v254
    %3546 = vmatpush1.bf16.msra.mxu0 %v253
    %3547 = vmatprep.subr.bf16.mxu0 %v256
    %3548 = vmatpush1.bf16.msra.mxu0 %v255
    %3549 = vmatprep.subr.bf16.mxu0 0
    %3550 = vmatpush1.bf16.msra.mxu0 0
    %3551 = vmatprep.subr.bf16.mxu0 0
    %3552 = vmatpush1.bf16.msra.mxu0 0
    %3553 = vmatprep.subr.bf16.mxu0 0
    %3554 = vmatpush1.bf16.msra.mxu0 0
    %3555 = vmatprep.subr.bf16.mxu0 0
    %3556 = vmatpush1.bf16.msra.mxu0 0
    %3557 = vmatprep.subr.bf16.mxu0 0
    %3558 = vmatpush1.bf16.msra.mxu0 0
    %3559 = vmatprep.subr.bf16.mxu0 0
    %3560 = vmatpush1.bf16.msra.mxu0 0
    %3561 = vmatprep.subr.bf16.mxu0 0
    %3562 = vmatpush1.bf16.msra.mxu0 0
    %3563 = vmatprep.subr.bf16.mxu0 0
    %3564 = vmatpush1.bf16.msra.mxu0 0
    %3565 = vmatprep.subr.bf16.mxu0 0
    %3566 = vmatpush1.bf16.msra.mxu0 0
    %3567 = vmatprep.subr.bf16.mxu0 0
    %3568 = vmatpush1.bf16.msra.mxu0 0
    %3569 = vmatprep.subr.bf16.mxu0 0
    %3570 = vmatpush1.bf16.msra.mxu0 0
    %3571 = vmatprep.subr.bf16.mxu0 0
    %3572 = vmatpush1.bf16.msra.mxu0 0
    %3573 = vmatprep.mubr.bf16.mxu0 0
    %3574 = vmatmul.mubr.bf16.gmra.mrb[0].mxu0 %v3518
    %v3575 = vpop.f32.mrb[0].mxu0
    %v3576 = vadd.f32 0.0, %v3575
    %v3577 = vpop.f32.mrb[0].mxu0
    %v3578 = vadd.f32 0.0, %v3577
    %v3579 = vpop.f32.mrb[0].mxu0
    %v3580 = vadd.f32 0.0, %v3579
    %v3581 = vpop.f32.mrb[0].mxu0
    %v3582 = vadd.f32 0.0, %v3581
    %3583 = vmatprep.mubr.bf16.mxu0 0
    %3584 = vmatmul.mubr.bf16.gmra.mrb[0].mxu0 %v3521
    %v3585 = vpop.f32.mrb[0].mxu0
    %v3586 = vadd.f32 0.0, %v3585
    %v3587 = vpop.f32.mrb[0].mxu0
    %v3588 = vadd.f32 0.0, %v3587
    %v3589 = vpop.f32.mrb[0].mxu0
    %v3590 = vadd.f32 0.0, %v3589
    %v3591 = vpop.f32.mrb[0].mxu0
    %v3592 = vadd.f32 0.0, %v3591
    %3593 = vmatprep.mubr.bf16.mxu0 0
    %3594 = vmatmul.mubr.bf16.gmra.mrb[0].mxu0 %v3524
    %v3595 = vpop.f32.mrb[0].mxu0
    %v3596 = vadd.f32 0.0, %v3595
    %v3597 = vpop.f32.mrb[0].mxu0
    %v3598 = vadd.f32 0.0, %v3597
    %v3599 = vpop.f32.mrb[0].mxu0
    %v3600 = vadd.f32 0.0, %v3599
    %v3601 = vpop.f32.mrb[0].mxu0
    %v3602 = vadd.f32 0.0, %v3601
    %3603 = vmatprep.mubr.bf16.mxu0 0
    %3604 = vmatmul.mubr.bf16.gmra.mrb[0].mxu0 %v3527
    %v3605 = vpop.f32.mrb[0].mxu0
    %v3606 = vadd.f32 0.0, %v3605
    %v3607 = vpop.f32.mrb[0].mxu0
    %v3608 = vadd.f32 0.0, %v3607
    %v3609 = vpop.f32.mrb[0].mxu0
    %v3610 = vadd.f32 0.0, %v3609
    %v3611 = vpop.f32.mrb[0].mxu0
    %v3612 = vadd.f32 0.0, %v3611
    %3613 = vmatprep.mubr.bf16.mxu0 0
    %3614 = vmatmul.mubr.bf16.gmra.mrb[0].mxu0 %v3530
    %v3615 = vpop.f32.mrb[0].mxu0
    %v3616 = vadd.f32 0.0, %v3615
    %v3617 = vpop.f32.mrb[0].mxu0
    %v3618 = vadd.f32 0.0, %v3617
    %v3619 = vpop.f32.mrb[0].mxu0
    %v3620 = vadd.f32 0.0, %v3619
    %v3621 = vpop.f32.mrb[0].mxu0
    %v3622 = vadd.f32 0.0, %v3621
    %3623 = vmatprep.mubr.bf16.mxu0 0
    %3624 = vmatmul.mubr.bf16.gmra.mrb[0].mxu0 %v3533
    %v3625 = vpop.f32.mrb[0].mxu0
    %v3626 = vadd.f32 0.0, %v3625
    %v3627 = vpop.f32.mrb[0].mxu0
    %v3628 = vadd.f32 0.0, %v3627
    %v3629 = vpop.f32.mrb[0].mxu0
    %v3630 = vadd.f32 0.0, %v3629
    %v3631 = vpop.f32.mrb[0].mxu0
    %v3632 = vadd.f32 0.0, %v3631
    %3633 = vmatprep.mubr.bf16.mxu0 0
    %3634 = vmatmul.mubr.bf16.gmra.mrb[0].mxu0 %v3536
    %v3635 = vpop.f32.mrb[0].mxu0
    %v3636 = vadd.f32 0.0, %v3635
    %v3637 = vpop.f32.mrb[0].mxu0
    %v3638 = vadd.f32 0.0, %v3637
    %v3639 = vpop.f32.mrb[0].mxu0
    %v3640 = vadd.f32 0.0, %v3639
    %v3641 = vpop.f32.mrb[0].mxu0
    %v3642 = vadd.f32 0.0, %v3641
    %3643 = vmatprep.mubr.bf16.mxu0 0
    %3644 = vmatmul.mubr.bf16.gmra.mrb[0].mxu0 %v3539
    %v3645 = vpop.f32.mrb[0].mxu0
    %v3646 = vadd.f32 0.0, %v3645
    %v3647 = vpop.f32.mrb[0].mxu0
    %v3648 = vadd.f32 0.0, %v3647
    %v3649 = vpop.f32.mrb[0].mxu0
    %v3650 = vadd.f32 0.0, %v3649
    %v3651 = vpop.f32.mrb[0].mxu0
    %v3652 = vadd.f32 0.0, %v3651
    %3653 = vdwg.mxu0
    %v3654 = vadd.f32 %v3477, %v3576
    %v3655 = vadd.f32 %v3478, %v3578
    %v3656 = vadd.f32 %v3479, %v3580
    %v3657 = vadd.f32 %v3480, %v3582
    %v3658 = vadd.f32 %v3481, %v3586
    %v3659 = vadd.f32 %v3482, %v3588
    %v3660 = vadd.f32 %v3483, %v3590
    %v3661 = vadd.f32 %v3484, %v3592
    %v3662 = vadd.f32 %v3485, %v3596
    %v3663 = vadd.f32 %v3486, %v3598
    %v3664 = vadd.f32 %v3487, %v3600
    %v3665 = vadd.f32 %v3488, %v3602
    %v3666 = vadd.f32 %v3489, %v3606
    %v3667 = vadd.f32 %v3490, %v3608
    %v3668 = vadd.f32 %v3491, %v3610
    %v3669 = vadd.f32 %v3492, %v3612
    %v3670 = vadd.f32 %v3493, %v3616
    %v3671 = vadd.f32 %v3494, %v3618
    %v3672 = vadd.f32 %v3495, %v3620
    %v3673 = vadd.f32 %v3496, %v3622
    %v3674 = vadd.f32 %v3497, %v3626
    %v3675 = vadd.f32 %v3498, %v3628
    %v3676 = vadd.f32 %v3499, %v3630
    %v3677 = vadd.f32 %v3500, %v3632
    %v3678 = vadd.f32 %v3501, %v3636
    %v3679 = vadd.f32 %v3502, %v3638
    %v3680 = vadd.f32 %v3503, %v3640
    %v3681 = vadd.f32 %v3504, %v3642
    %v3682 = vadd.f32 %v3505, %v3646
    %v3683 = vadd.f32 %v3506, %v3648
    %v3684 = vadd.f32 %v3507, %v3650
    %v3685 = vadd.f32 %v3508, %v3652
    %v3686 = vxor.u32 %v3654, 2147483648
    %v3687 = vxor.u32 %v3656, 2147483648
    %v3688 = vxor.u32 %v3658, 2147483648
    %v3689 = vxor.u32 %v3660, 2147483648
    %v3690 = vxor.u32 %v3662, 2147483648
    %v3691 = vxor.u32 %v3664, 2147483648
    %v3692 = vxor.u32 %v3666, 2147483648
    %v3693 = vxor.u32 %v3668, 2147483648
    %v3694 = vxor.u32 %v3670, 2147483648
    %v3695 = vxor.u32 %v3672, 2147483648
    %v3696 = vxor.u32 %v3674, 2147483648
    %v3697 = vxor.u32 %v3676, 2147483648
    %v3698 = vxor.u32 %v3678, 2147483648
    %v3699 = vxor.u32 %v3680, 2147483648
    %v3700 = vxor.u32 %v3682, 2147483648
    %v3701 = vxor.u32 %v3684, 2147483648
    %v3702 = vmul.f32 %v3686, 1.442695
    %v3703 = vpow.pop %v3702
    %v3704 = vmul.f32 %v3687, 1.442695
    %v3705 = vpow.pop %v3704
    %v3706 = vmul.f32 %v3688, 1.442695
    %v3707 = vpow.pop %v3706
    %v3708 = vmul.f32 %v3689, 1.442695
    %v3709 = vpow.pop %v3708
    %v3710 = vmul.f32 %v3690, 1.442695
    %v3711 = vpow.pop %v3710
    %v3712 = vmul.f32 %v3691, 1.442695
    %v3713 = vpow.pop %v3712
    %v3714 = vmul.f32 %v3692, 1.442695
    %v3715 = vpow.pop %v3714
    %v3716 = vmul.f32 %v3693, 1.442695
    %v3717 = vpow.pop %v3716
    %v3718 = vmul.f32 %v3694, 1.442695
    %v3719 = vpow.pop %v3718
    %v3720 = vmul.f32 %v3695, 1.442695
    %v3721 = vpow.pop %v3720
    %v3722 = vmul.f32 %v3696, 1.442695
    %v3723 = vpow.pop %v3722
    %v3724 = vmul.f32 %v3697, 1.442695
    %v3725 = vpow.pop %v3724
    %v3726 = vmul.f32 %v3698, 1.442695
    %v3727 = vpow.pop %v3726
    %v3728 = vmul.f32 %v3699, 1.442695
    %v3729 = vpow.pop %v3728
    %v3730 = vmul.f32 %v3700, 1.442695
    %v3731 = vpow.pop %v3730
    %v3732 = vmul.f32 %v3701, 1.442695
    %v3733 = vpow.pop %v3732
    %v3734 = vadd.f32 %v3703, 1.0
    %v3735 = vadd.f32 %v3705, 1.0
    %v3736 = vadd.f32 %v3707, 1.0
    %v3737 = vadd.f32 %v3709, 1.0
    %v3738 = vadd.f32 %v3711, 1.0
    %v3739 = vadd.f32 %v3713, 1.0
    %v3740 = vadd.f32 %v3715, 1.0
    %v3741 = vadd.f32 %v3717, 1.0
    %v3742 = vadd.f32 %v3719, 1.0
    %v3743 = vadd.f32 %v3721, 1.0
    %v3744 = vadd.f32 %v3723, 1.0
    %v3745 = vadd.f32 %v3725, 1.0
    %v3746 = vadd.f32 %v3727, 1.0
    %v3747 = vadd.f32 %v3729, 1.0
    %v3748 = vadd.f32 %v3731, 1.0
    %v3749 = vadd.f32 %v3733, 1.0
    %v3750 = vrcp.pop %v3734
    %v3751 = vmul.f32 1.0, %v3750
    %v3752 = vrcp.pop %v3735
    %v3753 = vmul.f32 1.0, %v3752
    %v3754 = vrcp.pop %v3736
    %v3755 = vmul.f32 1.0, %v3754
    %v3756 = vrcp.pop %v3737
    %v3757 = vmul.f32 1.0, %v3756
    %v3758 = vrcp.pop %v3738
    %v3759 = vmul.f32 1.0, %v3758
    %v3760 = vrcp.pop %v3739
    %v3761 = vmul.f32 1.0, %v3760
    %v3762 = vrcp.pop %v3740
    %v3763 = vmul.f32 1.0, %v3762
    %v3764 = vrcp.pop %v3741
    %v3765 = vmul.f32 1.0, %v3764
    %v3766 = vrcp.pop %v3742
    %v3767 = vmul.f32 1.0, %v3766
    %v3768 = vrcp.pop %v3743
    %v3769 = vmul.f32 1.0, %v3768
    %v3770 = vrcp.pop %v3744
    %v3771 = vmul.f32 1.0, %v3770
    %v3772 = vrcp.pop %v3745
    %v3773 = vmul.f32 1.0, %v3772
    %v3774 = vrcp.pop %v3746
    %v3775 = vmul.f32 1.0, %v3774
    %v3776 = vrcp.pop %v3747
    %v3777 = vmul.f32 1.0, %v3776
    %v3778 = vrcp.pop %v3748
    %v3779 = vmul.f32 1.0, %v3778
    %v3780 = vrcp.pop %v3749
    %v3781 = vmul.f32 1.0, %v3780
    %v3782 = vxor.u32 %v3655, 2147483648
    %v3783 = vxor.u32 %v3657, 2147483648
    %v3784 = vxor.u32 %v3659, 2147483648
    %v3785 = vxor.u32 %v3661, 2147483648
    %v3786 = vxor.u32 %v3663, 2147483648
    %v3787 = vxor.u32 %v3665, 2147483648
    %v3788 = vxor.u32 %v3667, 2147483648
    %v3789 = vxor.u32 %v3669, 2147483648
    %v3790 = vxor.u32 %v3671, 2147483648
    %v3791 = vxor.u32 %v3673, 2147483648
    %v3792 = vxor.u32 %v3675, 2147483648
    %v3793 = vxor.u32 %v3677, 2147483648
    %v3794 = vxor.u32 %v3679, 2147483648
    %v3795 = vxor.u32 %v3681, 2147483648
    %v3796 = vxor.u32 %v3683, 2147483648
    %v3797 = vxor.u32 %v3685, 2147483648
    %v3798 = vmul.f32 %v3782, 1.442695
    %v3799 = vpow.pop %v3798
    %v3800 = vmul.f32 %v3783, 1.442695
    %v3801 = vpow.pop %v3800
    %v3802 = vmul.f32 %v3784, 1.442695
    %v3803 = vpow.pop %v3802
    %v3804 = vmul.f32 %v3785, 1.442695
    %v3805 = vpow.pop %v3804
    %v3806 = vmul.f32 %v3786, 1.442695
    %v3807 = vpow.pop %v3806
    %v3808 = vmul.f32 %v3787, 1.442695
    %v3809 = vpow.pop %v3808
    %v3810 = vmul.f32 %v3788, 1.442695
    %v3811 = vpow.pop %v3810
    %v3812 = vmul.f32 %v3789, 1.442695
    %v3813 = vpow.pop %v3812
    %v3814 = vmul.f32 %v3790, 1.442695
    %v3815 = vpow.pop %v3814
    %v3816 = vmul.f32 %v3791, 1.442695
    %v3817 = vpow.pop %v3816
    %v3818 = vmul.f32 %v3792, 1.442695
    %v3819 = vpow.pop %v3818
    %v3820 = vmul.f32 %v3793, 1.442695
    %v3821 = vpow.pop %v3820
    %v3822 = vmul.f32 %v3794, 1.442695
    %v3823 = vpow.pop %v3822
    %v3824 = vmul.f32 %v3795, 1.442695
    %v3825 = vpow.pop %v3824
    %v3826 = vmul.f32 %v3796, 1.442695
    %v3827 = vpow.pop %v3826
    %v3828 = vmul.f32 %v3797, 1.442695
    %v3829 = vpow.pop %v3828
    %v3830 = vadd.f32 %v3799, 1.0
    %v3831 = vadd.f32 %v3801, 1.0
    %v3832 = vadd.f32 %v3803, 1.0
    %v3833 = vadd.f32 %v3805, 1.0
    %v3834 = vadd.f32 %v3807, 1.0
    %v3835 = vadd.f32 %v3809, 1.0
    %v3836 = vadd.f32 %v3811, 1.0
    %v3837 = vadd.f32 %v3813, 1.0
    %v3838 = vadd.f32 %v3815, 1.0
    %v3839 = vadd.f32 %v3817, 1.0
    %v3840 = vadd.f32 %v3819, 1.0
    %v3841 = vadd.f32 %v3821, 1.0
    %v3842 = vadd.f32 %v3823, 1.0
    %v3843 = vadd.f32 %v3825, 1.0
    %v3844 = vadd.f32 %v3827, 1.0
    %v3845 = vadd.f32 %v3829, 1.0
    %v3846 = vrcp.pop %v3830
    %v3847 = vmul.f32 1.0, %v3846
    %v3848 = vrcp.pop %v3831
    %v3849 = vmul.f32 1.0, %v3848
    %v3850 = vrcp.pop %v3832
    %v3851 = vmul.f32 1.0, %v3850
    %v3852 = vrcp.pop %v3833
    %v3853 = vmul.f32 1.0, %v3852
    %v3854 = vrcp.pop %v3834
    %v3855 = vmul.f32 1.0, %v3854
    %v3856 = vrcp.pop %v3835
    %v3857 = vmul.f32 1.0, %v3856
    %v3858 = vrcp.pop %v3836
    %v3859 = vmul.f32 1.0, %v3858
    %v3860 = vrcp.pop %v3837
    %v3861 = vmul.f32 1.0, %v3860
    %v3862 = vrcp.pop %v3838
    %v3863 = vmul.f32 1.0, %v3862
    %v3864 = vrcp.pop %v3839
    %v3865 = vmul.f32 1.0, %v3864
    %v3866 = vrcp.pop %v3840
    %v3867 = vmul.f32 1.0, %v3866
    %v3868 = vrcp.pop %v3841
    %v3869 = vmul.f32 1.0, %v3868
    %v3870 = vrcp.pop %v3842
    %v3871 = vmul.f32 1.0, %v3870
    %v3872 = vrcp.pop %v3843
    %v3873 = vmul.f32 1.0, %v3872
    %v3874 = vrcp.pop %v3844
    %v3875 = vmul.f32 1.0, %v3874
    %v3876 = vrcp.pop %v3845
    %v3877 = vmul.f32 1.0, %v3876
    %v3878 = vtanh.pop %v3655
    %v3879 = vtanh.pop %v3657
    %v3880 = vtanh.pop %v3659
    %v3881 = vtanh.pop %v3661
    %v3882 = vtanh.pop %v3663
    %v3883 = vtanh.pop %v3665
    %v3884 = vtanh.pop %v3667
    %v3885 = vtanh.pop %v3669
    %v3886 = vtanh.pop %v3671
    %v3887 = vtanh.pop %v3673
    %v3888 = vtanh.pop %v3675
    %v3889 = vtanh.pop %v3677
    %v3890 = vtanh.pop %v3679
    %v3891 = vtanh.pop %v3681
    %v3892 = vtanh.pop %v3683
    %v3893 = vtanh.pop %v3685
    %v3894 = vmul.f32 %v3751, %v3236
    %v3895 = vmul.f32 %v3753, %v3237
    %v3896 = vmul.f32 %v3755, %v3238
    %v3897 = vmul.f32 %v3757, %v3239
    %v3898 = vmul.f32 %v3759, %v3240
    %v3899 = vmul.f32 %v3761, %v3241
    %v3900 = vmul.f32 %v3763, %v3242
    %v3901 = vmul.f32 %v3765, %v3243
    %v3902 = vmul.f32 %v3767, %v3244
    %v3903 = vmul.f32 %v3769, %v3245
    %v3904 = vmul.f32 %v3771, %v3246
    %v3905 = vmul.f32 %v3773, %v3247
    %v3906 = vmul.f32 %v3775, %v3248
    %v3907 = vmul.f32 %v3777, %v3249
    %v3908 = vmul.f32 %v3779, %v3250
    %v3909 = vmul.f32 %v3781, %v3251
    %3926 = vrot.lane.b32.xlu0 %v3878, 64
    %v3927 = vpop.permute.xlu0 %3926
    %3928 = vrot.lane.b32.xlu0 %v3879, 64
    %v3929 = vpop.permute.xlu0 %3928
    %3930 = vrot.lane.b32.xlu0 %v3880, 64
    %v3931 = vpop.permute.xlu0 %3930
    %3932 = vrot.lane.b32.xlu0 %v3881, 64
    %v3933 = vpop.permute.xlu0 %3932
    %3934 = vrot.lane.b32.xlu0 %v3882, 64
    %v3935 = vpop.permute.xlu0 %3934
    %3936 = vrot.lane.b32.xlu0 %v3883, 64
    %v3937 = vpop.permute.xlu0 %3936
    %3938 = vrot.lane.b32.xlu0 %v3884, 64
    %v3939 = vpop.permute.xlu0 %3938
    %3940 = vrot.lane.b32.xlu0 %v3885, 64
    %v3941 = vpop.permute.xlu0 %3940
    %3942 = vrot.lane.b32.xlu0 %v3886, 64
    %v3943 = vpop.permute.xlu0 %3942
    %3944 = vrot.lane.b32.xlu0 %v3887, 64
    %v3945 = vpop.permute.xlu0 %3944
    %3946 = vrot.lane.b32.xlu0 %v3888, 64
    %v3947 = vpop.permute.xlu0 %3946
    %3948 = vrot.lane.b32.xlu0 %v3889, 64
    %v3949 = vpop.permute.xlu0 %3948
    %3950 = vrot.lane.b32.xlu0 %v3890, 64
    %v3951 = vpop.permute.xlu0 %3950
    %3952 = vrot.lane.b32.xlu0 %v3891, 64
    %v3953 = vpop.permute.xlu0 %3952
    %3954 = vrot.lane.b32.xlu0 %v3892, 64
    %v3955 = vpop.permute.xlu0 %3954
    %3956 = vrot.lane.b32.xlu0 %v3893, 64
    %v3957 = vpop.permute.xlu0 %3956
    %v3974 = vmul.f32 %v3751, %v3927
    %v3975 = vmul.f32 %v3753, %v3929
    %v3976 = vmul.f32 %v3755, %v3931
    %v3977 = vmul.f32 %v3757, %v3933
    %v3978 = vmul.f32 %v3759, %v3935
    %v3979 = vmul.f32 %v3761, %v3937
    %v3980 = vmul.f32 %v3763, %v3939
    %v3981 = vmul.f32 %v3765, %v3941
    %v3982 = vmul.f32 %v3767, %v3943
    %v3983 = vmul.f32 %v3769, %v3945
    %v3984 = vmul.f32 %v3771, %v3947
    %v3985 = vmul.f32 %v3773, %v3949
    %v3986 = vmul.f32 %v3775, %v3951
    %v3987 = vmul.f32 %v3777, %v3953
    %v3988 = vmul.f32 %v3779, %v3955
    %v3989 = vmul.f32 %v3781, %v3957
    %4006 = vrot.lane.b32.xlu0 %v3974, 64
    %v4007 = vpop.permute.xlu0 %4006
    %4008 = vrot.lane.b32.xlu0 %v3975, 64
    %v4009 = vpop.permute.xlu0 %4008
    %4010 = vrot.lane.b32.xlu0 %v3976, 64
    %v4011 = vpop.permute.xlu0 %4010
    %4012 = vrot.lane.b32.xlu0 %v3977, 64
    %v4013 = vpop.permute.xlu0 %4012
    %4014 = vrot.lane.b32.xlu0 %v3978, 64
    %v4015 = vpop.permute.xlu0 %4014
    %4016 = vrot.lane.b32.xlu0 %v3979, 64
    %v4017 = vpop.permute.xlu0 %4016
    %4018 = vrot.lane.b32.xlu0 %v3980, 64
    %v4019 = vpop.permute.xlu0 %4018
    %4020 = vrot.lane.b32.xlu0 %v3981, 64
    %v4021 = vpop.permute.xlu0 %4020
    %4022 = vrot.lane.b32.xlu0 %v3982, 64
    %v4023 = vpop.permute.xlu0 %4022
    %4024 = vrot.lane.b32.xlu0 %v3983, 64
    %v4025 = vpop.permute.xlu0 %4024
    %4026 = vrot.lane.b32.xlu0 %v3984, 64
    %v4027 = vpop.permute.xlu0 %4026
    %4028 = vrot.lane.b32.xlu0 %v3985, 64
    %v4029 = vpop.permute.xlu0 %4028
    %4030 = vrot.lane.b32.xlu0 %v3986, 64
    %v4031 = vpop.permute.xlu0 %4030
    %4032 = vrot.lane.b32.xlu0 %v3987, 64
    %v4033 = vpop.permute.xlu0 %4032
    %4034 = vrot.lane.b32.xlu0 %v3988, 64
    %v4035 = vpop.permute.xlu0 %4034
    %4036 = vrot.lane.b32.xlu0 %v3989, 64
    %v4037 = vpop.permute.xlu0 %4036
    %v4054 = vadd.f32 %v3894, %v4007
    %v4055 = vadd.f32 %v3895, %v4009
    %v4056 = vadd.f32 %v3896, %v4011
    %v4057 = vadd.f32 %v3897, %v4013
    %v4058 = vadd.f32 %v3898, %v4015
    %v4059 = vadd.f32 %v3899, %v4017
    %v4060 = vadd.f32 %v3900, %v4019
    %v4061 = vadd.f32 %v3901, %v4021
    %v4062 = vadd.f32 %v3902, %v4023
    %v4063 = vadd.f32 %v3903, %v4025
    %v4064 = vadd.f32 %v3904, %v4027
    %v4065 = vadd.f32 %v3905, %v4029
    %v4066 = vadd.f32 %v3906, %v4031
    %v4067 = vadd.f32 %v3907, %v4033
    %v4068 = vadd.f32 %v3908, %v4035
    %v4069 = vadd.f32 %v3909, %v4037
    %v4070 = vtanh.pop %v4054
    %v4071 = vtanh.pop %v4055
    %v4072 = vtanh.pop %v4056
    %v4073 = vtanh.pop %v4057
    %v4074 = vtanh.pop %v4058
    %v4075 = vtanh.pop %v4059
    %v4076 = vtanh.pop %v4060
    %v4077 = vtanh.pop %v4061
    %v4078 = vtanh.pop %v4062
    %v4079 = vtanh.pop %v4063
    %v4080 = vtanh.pop %v4064
    %v4081 = vtanh.pop %v4065
    %v4082 = vtanh.pop %v4066
    %v4083 = vtanh.pop %v4067
    %v4084 = vtanh.pop %v4068
    %v4085 = vtanh.pop %v4069
    %4102 = vrot.lane.b32.xlu0 %v4070, 64
    %v4103 = vpop.permute.xlu0 %4102
    %4104 = vrot.lane.b32.xlu0 %v4071, 64
    %v4105 = vpop.permute.xlu0 %4104
    %4106 = vrot.lane.b32.xlu0 %v4072, 64
    %v4107 = vpop.permute.xlu0 %4106
    %4108 = vrot.lane.b32.xlu0 %v4073, 64
    %v4109 = vpop.permute.xlu0 %4108
    %4110 = vrot.lane.b32.xlu0 %v4074, 64
    %v4111 = vpop.permute.xlu0 %4110
    %4112 = vrot.lane.b32.xlu0 %v4075, 64
    %v4113 = vpop.permute.xlu0 %4112
    %4114 = vrot.lane.b32.xlu0 %v4076, 64
    %v4115 = vpop.permute.xlu0 %4114
    %4116 = vrot.lane.b32.xlu0 %v4077, 64
    %v4117 = vpop.permute.xlu0 %4116
    %4118 = vrot.lane.b32.xlu0 %v4078, 64
    %v4119 = vpop.permute.xlu0 %4118
    %4120 = vrot.lane.b32.xlu0 %v4079, 64
    %v4121 = vpop.permute.xlu0 %4120
    %4122 = vrot.lane.b32.xlu0 %v4080, 64
    %v4123 = vpop.permute.xlu0 %4122
    %4124 = vrot.lane.b32.xlu0 %v4081, 64
    %v4125 = vpop.permute.xlu0 %4124
    %4126 = vrot.lane.b32.xlu0 %v4082, 64
    %v4127 = vpop.permute.xlu0 %4126
    %4128 = vrot.lane.b32.xlu0 %v4083, 64
    %v4129 = vpop.permute.xlu0 %4128
    %4130 = vrot.lane.b32.xlu0 %v4084, 64
    %v4131 = vpop.permute.xlu0 %4130
    %4132 = vrot.lane.b32.xlu0 %v4085, 64
    %v4133 = vpop.permute.xlu0 %4132
    %v4150 = vmul.f32 %v3847, %v4103
    %v4151 = vmul.f32 %v3849, %v4105
    %v4152 = vmul.f32 %v3851, %v4107
    %v4153 = vmul.f32 %v3853, %v4109
    %v4154 = vmul.f32 %v3855, %v4111
    %v4155 = vmul.f32 %v3857, %v4113
    %v4156 = vmul.f32 %v3859, %v4115
    %v4157 = vmul.f32 %v3861, %v4117
    %v4158 = vmul.f32 %v3863, %v4119
    %v4159 = vmul.f32 %v3865, %v4121
    %v4160 = vmul.f32 %v3867, %v4123
    %v4161 = vmul.f32 %v3869, %v4125
    %v4162 = vmul.f32 %v3871, %v4127
    %v4163 = vmul.f32 %v3873, %v4129
    %v4164 = vmul.f32 %v3875, %v4131
    %v4165 = vmul.f32 %v3877, %v4133
    %s4166 = scalar_lea.vmem %s0, 640
    %v4167 = vld [vmem:[%s4166] sm:$0xff]
    %v4168 = vld [vmem:[%s4166 + $0x8] sm:$0xff]
    %v4169 = vld [vmem:[%s4166 + $0x10] sm:$0xff]
    %v4170 = vld [vmem:[%s4166 + $0x18] sm:$0xff]
    %v4171 = vld [vmem:[%s4166 + $0x20] sm:$0xff]
    %v4172 = vld [vmem:[%s4166 + $0x28] sm:$0xff]
    %v4173 = vld [vmem:[%s4166 + $0x30] sm:$0xff]
    %v4174 = vld [vmem:[%s4166 + $0x38] sm:$0xff]
    %v4175 = vld [vmem:[%s4166 + $0x40] sm:$0xff]
    %v4176 = vld [vmem:[%s4166 + $0x48] sm:$0xff]
    %v4177 = vld [vmem:[%s4166 + $0x50] sm:$0xff]
    %v4178 = vld [vmem:[%s4166 + $0x58] sm:$0xff]
    %v4179 = vld [vmem:[%s4166 + $0x60] sm:$0xff]
    %v4180 = vld [vmem:[%s4166 + $0x68] sm:$0xff]
    %v4181 = vld [vmem:[%s4166 + $0x70] sm:$0xff]
    %v4182 = vld [vmem:[%s4166 + $0x78] sm:$0xff]
    %4184 = vset.pattern.permute.xlu0 0
    %4185 = vperm.xlu0 %4184, %v4167
    %v4186 = vpop.permute.xlu0 %4185
    %4189 = vset.pattern.permute.xlu0 0
    %4190 = vperm.xlu0 %4189, %v4168
    %v4191 = vpop.permute.xlu0 %4190
    %4194 = vset.pattern.permute.xlu0 0
    %4195 = vperm.xlu0 %4194, %v4169
    %v4196 = vpop.permute.xlu0 %4195
    %4199 = vset.pattern.permute.xlu0 0
    %4200 = vperm.xlu0 %4199, %v4170
    %v4201 = vpop.permute.xlu0 %4200
    %4204 = vset.pattern.permute.xlu0 0
    %4205 = vperm.xlu0 %4204, %v4171
    %v4206 = vpop.permute.xlu0 %4205
    %4209 = vset.pattern.permute.xlu0 0
    %4210 = vperm.xlu0 %4209, %v4172
    %v4211 = vpop.permute.xlu0 %4210
    %4214 = vset.pattern.permute.xlu0 0
    %4215 = vperm.xlu0 %4214, %v4173
    %v4216 = vpop.permute.xlu0 %4215
    %4219 = vset.pattern.permute.xlu0 0
    %4220 = vperm.xlu0 %4219, %v4174
    %v4221 = vpop.permute.xlu0 %4220
    %4224 = vset.pattern.permute.xlu0 0
    %4225 = vperm.xlu0 %4224, %v4175
    %v4226 = vpop.permute.xlu0 %4225
    %4229 = vset.pattern.permute.xlu0 0
    %4230 = vperm.xlu0 %4229, %v4176
    %v4231 = vpop.permute.xlu0 %4230
    %4234 = vset.pattern.permute.xlu0 0
    %4235 = vperm.xlu0 %4234, %v4177
    %v4236 = vpop.permute.xlu0 %4235
    %4239 = vset.pattern.permute.xlu0 0
    %4240 = vperm.xlu0 %4239, %v4178
    %v4241 = vpop.permute.xlu0 %4240
    %4244 = vset.pattern.permute.xlu0 0
    %4245 = vperm.xlu0 %4244, %v4179
    %v4246 = vpop.permute.xlu0 %4245
    %4249 = vset.pattern.permute.xlu0 0
    %4250 = vperm.xlu0 %4249, %v4180
    %v4251 = vpop.permute.xlu0 %4250
    %4254 = vset.pattern.permute.xlu0 0
    %4255 = vperm.xlu0 %4254, %v4181
    %v4256 = vpop.permute.xlu0 %4255
    %4259 = vset.pattern.permute.xlu0 0
    %4260 = vperm.xlu0 %4259, %v4182
    %v4261 = vpop.permute.xlu0 %4260
    %v4263 = vmul.f32 %v4186, %v143
    %v4264 = vmul.f32 %v4186, %v147
    %v4265 = vmul.f32 %v4191, %v143
    %v4266 = vmul.f32 %v4191, %v147
    %v4267 = vmul.f32 %v4196, %v143
    %v4268 = vmul.f32 %v4196, %v147
    %v4269 = vmul.f32 %v4201, %v143
    %v4270 = vmul.f32 %v4201, %v147
    %v4271 = vmul.f32 %v4206, %v143
    %v4272 = vmul.f32 %v4206, %v147
    %v4273 = vmul.f32 %v4211, %v143
    %v4274 = vmul.f32 %v4211, %v147
    %v4275 = vmul.f32 %v4216, %v143
    %v4276 = vmul.f32 %v4216, %v147
    %v4277 = vmul.f32 %v4221, %v143
    %v4278 = vmul.f32 %v4221, %v147
    %v4279 = vmul.f32 %v4226, %v143
    %v4280 = vmul.f32 %v4226, %v147
    %v4281 = vmul.f32 %v4231, %v143
    %v4282 = vmul.f32 %v4231, %v147
    %v4283 = vmul.f32 %v4236, %v143
    %v4284 = vmul.f32 %v4236, %v147
    %v4285 = vmul.f32 %v4241, %v143
    %v4286 = vmul.f32 %v4241, %v147
    %v4287 = vmul.f32 %v4246, %v143
    %v4288 = vmul.f32 %v4246, %v147
    %v4289 = vmul.f32 %v4251, %v143
    %v4290 = vmul.f32 %v4251, %v147
    %v4291 = vmul.f32 %v4256, %v143
    %v4292 = vmul.f32 %v4256, %v147
    %v4293 = vmul.f32 %v4261, %v143
    %v4294 = vmul.f32 %v4261, %v147
    %v4295 = vadd.f32 %v4263, %v186
    %v4296 = vadd.f32 %v4264, %v190
    %v4297 = vadd.f32 %v4265, %v186
    %v4298 = vadd.f32 %v4266, %v190
    %v4299 = vadd.f32 %v4267, %v186
    %v4300 = vadd.f32 %v4268, %v190
    %v4301 = vadd.f32 %v4269, %v186
    %v4302 = vadd.f32 %v4270, %v190
    %v4303 = vadd.f32 %v4271, %v186
    %v4304 = vadd.f32 %v4272, %v190
    %v4305 = vadd.f32 %v4273, %v186
    %v4306 = vadd.f32 %v4274, %v190
    %v4307 = vadd.f32 %v4275, %v186
    %v4308 = vadd.f32 %v4276, %v190
    %v4309 = vadd.f32 %v4277, %v186
    %v4310 = vadd.f32 %v4278, %v190
    %v4311 = vadd.f32 %v4279, %v186
    %v4312 = vadd.f32 %v4280, %v190
    %v4313 = vadd.f32 %v4281, %v186
    %v4314 = vadd.f32 %v4282, %v190
    %v4315 = vadd.f32 %v4283, %v186
    %v4316 = vadd.f32 %v4284, %v190
    %v4317 = vadd.f32 %v4285, %v186
    %v4318 = vadd.f32 %v4286, %v190
    %v4319 = vadd.f32 %v4287, %v186
    %v4320 = vadd.f32 %v4288, %v190
    %v4321 = vadd.f32 %v4289, %v186
    %v4322 = vadd.f32 %v4290, %v190
    %v4323 = vadd.f32 %v4291, %v186
    %v4324 = vadd.f32 %v4292, %v190
    %v4325 = vadd.f32 %v4293, %v186
    %v4326 = vadd.f32 %v4294, %v190
    %v4327 = vpack.c.bf16 %v4151, %v4150
    %v4328 = vpack.c.bf16 %v4153, %v4152
    %v4329 = vpack.c.bf16 %v4155, %v4154
    %v4330 = vpack.c.bf16 %v4157, %v4156
    %v4331 = vpack.c.bf16 %v4159, %v4158
    %v4332 = vpack.c.bf16 %v4161, %v4160
    %v4333 = vpack.c.bf16 %v4163, %v4162
    %v4334 = vpack.c.bf16 %v4165, %v4164
    %v4336 = vsel %vm265, %v4327, 0
    %v4339 = vsel %vm265, %v4328, 0
    %v4342 = vsel %vm265, %v4329, 0
    %v4345 = vsel %vm265, %v4330, 0
    %v4348 = vsel %vm265, %v4331, 0
    %v4351 = vsel %vm265, %v4332, 0
    %v4354 = vsel %vm265, %v4333, 0
    %v4357 = vsel %vm265, %v4334, 0
    %4359 = vmatprep.subr.bf16.mxu0 %v250
    %4360 = vmatpush1.bf16.msra.mxu0 %v249
    %4361 = vmatprep.subr.bf16.mxu0 %v252
    %4362 = vmatpush1.bf16.msra.mxu0 %v251
    %4363 = vmatprep.subr.bf16.mxu0 %v254
    %4364 = vmatpush1.bf16.msra.mxu0 %v253
    %4365 = vmatprep.subr.bf16.mxu0 %v256
    %4366 = vmatpush1.bf16.msra.mxu0 %v255
    %4367 = vmatprep.subr.bf16.mxu0 0
    %4368 = vmatpush1.bf16.msra.mxu0 0
    %4369 = vmatprep.subr.bf16.mxu0 0
    %4370 = vmatpush1.bf16.msra.mxu0 0
    %4371 = vmatprep.subr.bf16.mxu0 0
    %4372 = vmatpush1.bf16.msra.mxu0 0
    %4373 = vmatprep.subr.bf16.mxu0 0
    %4374 = vmatpush1.bf16.msra.mxu0 0
    %4375 = vmatprep.subr.bf16.mxu0 0
    %4376 = vmatpush1.bf16.msra.mxu0 0
    %4377 = vmatprep.subr.bf16.mxu0 0
    %4378 = vmatpush1.bf16.msra.mxu0 0
    %4379 = vmatprep.subr.bf16.mxu0 0
    %4380 = vmatpush1.bf16.msra.mxu0 0
    %4381 = vmatprep.subr.bf16.mxu0 0
    %4382 = vmatpush1.bf16.msra.mxu0 0
    %4383 = vmatprep.subr.bf16.mxu0 0
    %4384 = vmatpush1.bf16.msra.mxu0 0
    %4385 = vmatprep.subr.bf16.mxu0 0
    %4386 = vmatpush1.bf16.msra.mxu0 0
    %4387 = vmatprep.subr.bf16.mxu0 0
    %4388 = vmatpush1.bf16.msra.mxu0 0
    %4389 = vmatprep.subr.bf16.mxu0 0
    %4390 = vmatpush1.bf16.msra.mxu0 0
    %4391 = vmatprep.mubr.bf16.mxu0 0
    %4392 = vmatmul.mubr.bf16.gmra.mrb[0].mxu0 %v4336
    %v4393 = vpop.f32.mrb[0].mxu0
    %v4394 = vadd.f32 0.0, %v4393
    %v4395 = vpop.f32.mrb[0].mxu0
    %v4396 = vadd.f32 0.0, %v4395
    %v4397 = vpop.f32.mrb[0].mxu0
    %v4398 = vadd.f32 0.0, %v4397
    %v4399 = vpop.f32.mrb[0].mxu0
    %v4400 = vadd.f32 0.0, %v4399
    %4401 = vmatprep.mubr.bf16.mxu0 0
    %4402 = vmatmul.mubr.bf16.gmra.mrb[0].mxu0 %v4339
    %v4403 = vpop.f32.mrb[0].mxu0
    %v4404 = vadd.f32 0.0, %v4403
    %v4405 = vpop.f32.mrb[0].mxu0
    %v4406 = vadd.f32 0.0, %v4405
    %v4407 = vpop.f32.mrb[0].mxu0
    %v4408 = vadd.f32 0.0, %v4407
    %v4409 = vpop.f32.mrb[0].mxu0
    %v4410 = vadd.f32 0.0, %v4409
    %4411 = vmatprep.mubr.bf16.mxu0 0
    %4412 = vmatmul.mubr.bf16.gmra.mrb[0].mxu0 %v4342
    %v4413 = vpop.f32.mrb[0].mxu0
    %v4414 = vadd.f32 0.0, %v4413
    %v4415 = vpop.f32.mrb[0].mxu0
    %v4416 = vadd.f32 0.0, %v4415
    %v4417 = vpop.f32.mrb[0].mxu0
    %v4418 = vadd.f32 0.0, %v4417
    %v4419 = vpop.f32.mrb[0].mxu0
    %v4420 = vadd.f32 0.0, %v4419
    %4421 = vmatprep.mubr.bf16.mxu0 0
    %4422 = vmatmul.mubr.bf16.gmra.mrb[0].mxu0 %v4345
    %v4423 = vpop.f32.mrb[0].mxu0
    %v4424 = vadd.f32 0.0, %v4423
    %v4425 = vpop.f32.mrb[0].mxu0
    %v4426 = vadd.f32 0.0, %v4425
    %v4427 = vpop.f32.mrb[0].mxu0
    %v4428 = vadd.f32 0.0, %v4427
    %v4429 = vpop.f32.mrb[0].mxu0
    %v4430 = vadd.f32 0.0, %v4429
    %4431 = vmatprep.mubr.bf16.mxu0 0
    %4432 = vmatmul.mubr.bf16.gmra.mrb[0].mxu0 %v4348
    %v4433 = vpop.f32.mrb[0].mxu0
    %v4434 = vadd.f32 0.0, %v4433
    %v4435 = vpop.f32.mrb[0].mxu0
    %v4436 = vadd.f32 0.0, %v4435
    %v4437 = vpop.f32.mrb[0].mxu0
    %v4438 = vadd.f32 0.0, %v4437
    %v4439 = vpop.f32.mrb[0].mxu0
    %v4440 = vadd.f32 0.0, %v4439
    %4441 = vmatprep.mubr.bf16.mxu0 0
    %4442 = vmatmul.mubr.bf16.gmra.mrb[0].mxu0 %v4351
    %v4443 = vpop.f32.mrb[0].mxu0
    %v4444 = vadd.f32 0.0, %v4443
    %v4445 = vpop.f32.mrb[0].mxu0
    %v4446 = vadd.f32 0.0, %v4445
    %v4447 = vpop.f32.mrb[0].mxu0
    %v4448 = vadd.f32 0.0, %v4447
    %v4449 = vpop.f32.mrb[0].mxu0
    %v4450 = vadd.f32 0.0, %v4449
    %4451 = vmatprep.mubr.bf16.mxu0 0
    %4452 = vmatmul.mubr.bf16.gmra.mrb[0].mxu0 %v4354
    %v4453 = vpop.f32.mrb[0].mxu0
    %v4454 = vadd.f32 0.0, %v4453
    %v4455 = vpop.f32.mrb[0].mxu0
    %v4456 = vadd.f32 0.0, %v4455
    %v4457 = vpop.f32.mrb[0].mxu0
    %v4458 = vadd.f32 0.0, %v4457
    %v4459 = vpop.f32.mrb[0].mxu0
    %v4460 = vadd.f32 0.0, %v4459
    %4461 = vmatprep.mubr.bf16.mxu0 0
    %4462 = vmatmul.mubr.bf16.gmra.mrb[0].mxu0 %v4357
    %v4463 = vpop.f32.mrb[0].mxu0
    %v4464 = vadd.f32 0.0, %v4463
    %v4465 = vpop.f32.mrb[0].mxu0
    %v4466 = vadd.f32 0.0, %v4465
    %v4467 = vpop.f32.mrb[0].mxu0
    %v4468 = vadd.f32 0.0, %v4467
    %v4469 = vpop.f32.mrb[0].mxu0
    %v4470 = vadd.f32 0.0, %v4469
    %4471 = vdwg.mxu0
    %v4472 = vadd.f32 %v4295, %v4394
    %v4473 = vadd.f32 %v4296, %v4396
    %v4474 = vadd.f32 %v4297, %v4398
    %v4475 = vadd.f32 %v4298, %v4400
    %v4476 = vadd.f32 %v4299, %v4404
    %v4477 = vadd.f32 %v4300, %v4406
    %v4478 = vadd.f32 %v4301, %v4408
    %v4479 = vadd.f32 %v4302, %v4410
    %v4480 = vadd.f32 %v4303, %v4414
    %v4481 = vadd.f32 %v4304, %v4416
    %v4482 = vadd.f32 %v4305, %v4418
    %v4483 = vadd.f32 %v4306, %v4420
    %v4484 = vadd.f32 %v4307, %v4424
    %v4485 = vadd.f32 %v4308, %v4426
    %v4486 = vadd.f32 %v4309, %v4428
    %v4487 = vadd.f32 %v4310, %v4430
    %v4488 = vadd.f32 %v4311, %v4434
    %v4489 = vadd.f32 %v4312, %v4436
    %v4490 = vadd.f32 %v4313, %v4438
    %v4491 = vadd.f32 %v4314, %v4440
    %v4492 = vadd.f32 %v4315, %v4444
    %v4493 = vadd.f32 %v4316, %v4446
    %v4494 = vadd.f32 %v4317, %v4448
    %v4495 = vadd.f32 %v4318, %v4450
    %v4496 = vadd.f32 %v4319, %v4454
    %v4497 = vadd.f32 %v4320, %v4456
    %v4498 = vadd.f32 %v4321, %v4458
    %v4499 = vadd.f32 %v4322, %v4460
    %v4500 = vadd.f32 %v4323, %v4464
    %v4501 = vadd.f32 %v4324, %v4466
    %v4502 = vadd.f32 %v4325, %v4468
    %v4503 = vadd.f32 %v4326, %v4470
    %v4504 = vxor.u32 %v4472, 2147483648
    %v4505 = vxor.u32 %v4474, 2147483648
    %v4506 = vxor.u32 %v4476, 2147483648
    %v4507 = vxor.u32 %v4478, 2147483648
    %v4508 = vxor.u32 %v4480, 2147483648
    %v4509 = vxor.u32 %v4482, 2147483648
    %v4510 = vxor.u32 %v4484, 2147483648
    %v4511 = vxor.u32 %v4486, 2147483648
    %v4512 = vxor.u32 %v4488, 2147483648
    %v4513 = vxor.u32 %v4490, 2147483648
    %v4514 = vxor.u32 %v4492, 2147483648
    %v4515 = vxor.u32 %v4494, 2147483648
    %v4516 = vxor.u32 %v4496, 2147483648
    %v4517 = vxor.u32 %v4498, 2147483648
    %v4518 = vxor.u32 %v4500, 2147483648
    %v4519 = vxor.u32 %v4502, 2147483648
    %v4520 = vmul.f32 %v4504, 1.442695
    %v4521 = vpow.pop %v4520
    %v4522 = vmul.f32 %v4505, 1.442695
    %v4523 = vpow.pop %v4522
    %v4524 = vmul.f32 %v4506, 1.442695
    %v4525 = vpow.pop %v4524
    %v4526 = vmul.f32 %v4507, 1.442695
    %v4527 = vpow.pop %v4526
    %v4528 = vmul.f32 %v4508, 1.442695
    %v4529 = vpow.pop %v4528
    %v4530 = vmul.f32 %v4509, 1.442695
    %v4531 = vpow.pop %v4530
    %v4532 = vmul.f32 %v4510, 1.442695
    %v4533 = vpow.pop %v4532
    %v4534 = vmul.f32 %v4511, 1.442695
    %v4535 = vpow.pop %v4534
    %v4536 = vmul.f32 %v4512, 1.442695
    %v4537 = vpow.pop %v4536
    %v4538 = vmul.f32 %v4513, 1.442695
    %v4539 = vpow.pop %v4538
    %v4540 = vmul.f32 %v4514, 1.442695
    %v4541 = vpow.pop %v4540
    %v4542 = vmul.f32 %v4515, 1.442695
    %v4543 = vpow.pop %v4542
    %v4544 = vmul.f32 %v4516, 1.442695
    %v4545 = vpow.pop %v4544
    %v4546 = vmul.f32 %v4517, 1.442695
    %v4547 = vpow.pop %v4546
    %v4548 = vmul.f32 %v4518, 1.442695
    %v4549 = vpow.pop %v4548
    %v4550 = vmul.f32 %v4519, 1.442695
    %v4551 = vpow.pop %v4550
    %v4552 = vadd.f32 %v4521, 1.0
    %v4553 = vadd.f32 %v4523, 1.0
    %v4554 = vadd.f32 %v4525, 1.0
    %v4555 = vadd.f32 %v4527, 1.0
    %v4556 = vadd.f32 %v4529, 1.0
    %v4557 = vadd.f32 %v4531, 1.0
    %v4558 = vadd.f32 %v4533, 1.0
    %v4559 = vadd.f32 %v4535, 1.0
    %v4560 = vadd.f32 %v4537, 1.0
    %v4561 = vadd.f32 %v4539, 1.0
    %v4562 = vadd.f32 %v4541, 1.0
    %v4563 = vadd.f32 %v4543, 1.0
    %v4564 = vadd.f32 %v4545, 1.0
    %v4565 = vadd.f32 %v4547, 1.0
    %v4566 = vadd.f32 %v4549, 1.0
    %v4567 = vadd.f32 %v4551, 1.0
    %v4568 = vrcp.pop %v4552
    %v4569 = vmul.f32 1.0, %v4568
    %v4570 = vrcp.pop %v4553
    %v4571 = vmul.f32 1.0, %v4570
    %v4572 = vrcp.pop %v4554
    %v4573 = vmul.f32 1.0, %v4572
    %v4574 = vrcp.pop %v4555
    %v4575 = vmul.f32 1.0, %v4574
    %v4576 = vrcp.pop %v4556
    %v4577 = vmul.f32 1.0, %v4576
    %v4578 = vrcp.pop %v4557
    %v4579 = vmul.f32 1.0, %v4578
    %v4580 = vrcp.pop %v4558
    %v4581 = vmul.f32 1.0, %v4580
    %v4582 = vrcp.pop %v4559
    %v4583 = vmul.f32 1.0, %v4582
    %v4584 = vrcp.pop %v4560
    %v4585 = vmul.f32 1.0, %v4584
    %v4586 = vrcp.pop %v4561
    %v4587 = vmul.f32 1.0, %v4586
    %v4588 = vrcp.pop %v4562
    %v4589 = vmul.f32 1.0, %v4588
    %v4590 = vrcp.pop %v4563
    %v4591 = vmul.f32 1.0, %v4590
    %v4592 = vrcp.pop %v4564
    %v4593 = vmul.f32 1.0, %v4592
    %v4594 = vrcp.pop %v4565
    %v4595 = vmul.f32 1.0, %v4594
    %v4596 = vrcp.pop %v4566
    %v4597 = vmul.f32 1.0, %v4596
    %v4598 = vrcp.pop %v4567
    %v4599 = vmul.f32 1.0, %v4598
    %v4600 = vxor.u32 %v4473, 2147483648
    %v4601 = vxor.u32 %v4475, 2147483648
    %v4602 = vxor.u32 %v4477, 2147483648
    %v4603 = vxor.u32 %v4479, 2147483648
    %v4604 = vxor.u32 %v4481, 2147483648
    %v4605 = vxor.u32 %v4483, 2147483648
    %v4606 = vxor.u32 %v4485, 2147483648
    %v4607 = vxor.u32 %v4487, 2147483648
    %v4608 = vxor.u32 %v4489, 2147483648
    %v4609 = vxor.u32 %v4491, 2147483648
    %v4610 = vxor.u32 %v4493, 2147483648
    %v4611 = vxor.u32 %v4495, 2147483648
    %v4612 = vxor.u32 %v4497, 2147483648
    %v4613 = vxor.u32 %v4499, 2147483648
    %v4614 = vxor.u32 %v4501, 2147483648
    %v4615 = vxor.u32 %v4503, 2147483648
    %v4616 = vmul.f32 %v4600, 1.442695
    %v4617 = vpow.pop %v4616
    %v4618 = vmul.f32 %v4601, 1.442695
    %v4619 = vpow.pop %v4618
    %v4620 = vmul.f32 %v4602, 1.442695
    %v4621 = vpow.pop %v4620
    %v4622 = vmul.f32 %v4603, 1.442695
    %v4623 = vpow.pop %v4622
    %v4624 = vmul.f32 %v4604, 1.442695
    %v4625 = vpow.pop %v4624
    %v4626 = vmul.f32 %v4605, 1.442695
    %v4627 = vpow.pop %v4626
    %v4628 = vmul.f32 %v4606, 1.442695
    %v4629 = vpow.pop %v4628
    %v4630 = vmul.f32 %v4607, 1.442695
    %v4631 = vpow.pop %v4630
    %v4632 = vmul.f32 %v4608, 1.442695
    %v4633 = vpow.pop %v4632
    %v4634 = vmul.f32 %v4609, 1.442695
    %v4635 = vpow.pop %v4634
    %v4636 = vmul.f32 %v4610, 1.442695
    %v4637 = vpow.pop %v4636
    %v4638 = vmul.f32 %v4611, 1.442695
    %v4639 = vpow.pop %v4638
    %v4640 = vmul.f32 %v4612, 1.442695
    %v4641 = vpow.pop %v4640
    %v4642 = vmul.f32 %v4613, 1.442695
    %v4643 = vpow.pop %v4642
    %v4644 = vmul.f32 %v4614, 1.442695
    %v4645 = vpow.pop %v4644
    %v4646 = vmul.f32 %v4615, 1.442695
    %v4647 = vpow.pop %v4646
    %v4648 = vadd.f32 %v4617, 1.0
    %v4649 = vadd.f32 %v4619, 1.0
    %v4650 = vadd.f32 %v4621, 1.0
    %v4651 = vadd.f32 %v4623, 1.0
    %v4652 = vadd.f32 %v4625, 1.0
    %v4653 = vadd.f32 %v4627, 1.0
    %v4654 = vadd.f32 %v4629, 1.0
    %v4655 = vadd.f32 %v4631, 1.0
    %v4656 = vadd.f32 %v4633, 1.0
    %v4657 = vadd.f32 %v4635, 1.0
    %v4658 = vadd.f32 %v4637, 1.0
    %v4659 = vadd.f32 %v4639, 1.0
    %v4660 = vadd.f32 %v4641, 1.0
    %v4661 = vadd.f32 %v4643, 1.0
    %v4662 = vadd.f32 %v4645, 1.0
    %v4663 = vadd.f32 %v4647, 1.0
    %v4664 = vrcp.pop %v4648
    %v4665 = vmul.f32 1.0, %v4664
    %v4666 = vrcp.pop %v4649
    %v4667 = vmul.f32 1.0, %v4666
    %v4668 = vrcp.pop %v4650
    %v4669 = vmul.f32 1.0, %v4668
    %v4670 = vrcp.pop %v4651
    %v4671 = vmul.f32 1.0, %v4670
    %v4672 = vrcp.pop %v4652
    %v4673 = vmul.f32 1.0, %v4672
    %v4674 = vrcp.pop %v4653
    %v4675 = vmul.f32 1.0, %v4674
    %v4676 = vrcp.pop %v4654
    %v4677 = vmul.f32 1.0, %v4676
    %v4678 = vrcp.pop %v4655
    %v4679 = vmul.f32 1.0, %v4678
    %v4680 = vrcp.pop %v4656
    %v4681 = vmul.f32 1.0, %v4680
    %v4682 = vrcp.pop %v4657
    %v4683 = vmul.f32 1.0, %v4682
    %v4684 = vrcp.pop %v4658
    %v4685 = vmul.f32 1.0, %v4684
    %v4686 = vrcp.pop %v4659
    %v4687 = vmul.f32 1.0, %v4686
    %v4688 = vrcp.pop %v4660
    %v4689 = vmul.f32 1.0, %v4688
    %v4690 = vrcp.pop %v4661
    %v4691 = vmul.f32 1.0, %v4690
    %v4692 = vrcp.pop %v4662
    %v4693 = vmul.f32 1.0, %v4692
    %v4694 = vrcp.pop %v4663
    %v4695 = vmul.f32 1.0, %v4694
    %v4696 = vtanh.pop %v4473
    %v4697 = vtanh.pop %v4475
    %v4698 = vtanh.pop %v4477
    %v4699 = vtanh.pop %v4479
    %v4700 = vtanh.pop %v4481
    %v4701 = vtanh.pop %v4483
    %v4702 = vtanh.pop %v4485
    %v4703 = vtanh.pop %v4487
    %v4704 = vtanh.pop %v4489
    %v4705 = vtanh.pop %v4491
    %v4706 = vtanh.pop %v4493
    %v4707 = vtanh.pop %v4495
    %v4708 = vtanh.pop %v4497
    %v4709 = vtanh.pop %v4499
    %v4710 = vtanh.pop %v4501
    %v4711 = vtanh.pop %v4503
    %v4712 = vmul.f32 %v4569, %v4054
    %v4713 = vmul.f32 %v4571, %v4055
    %v4714 = vmul.f32 %v4573, %v4056
    %v4715 = vmul.f32 %v4575, %v4057
    %v4716 = vmul.f32 %v4577, %v4058
    %v4717 = vmul.f32 %v4579, %v4059
    %v4718 = vmul.f32 %v4581, %v4060
    %v4719 = vmul.f32 %v4583, %v4061
    %v4720 = vmul.f32 %v4585, %v4062
    %v4721 = vmul.f32 %v4587, %v4063
    %v4722 = vmul.f32 %v4589, %v4064
    %v4723 = vmul.f32 %v4591, %v4065
    %v4724 = vmul.f32 %v4593, %v4066
    %v4725 = vmul.f32 %v4595, %v4067
    %v4726 = vmul.f32 %v4597, %v4068
    %v4727 = vmul.f32 %v4599, %v4069
    %4744 = vrot.lane.b32.xlu0 %v4696, 64
    %v4745 = vpop.permute.xlu0 %4744
    %4746 = vrot.lane.b32.xlu0 %v4697, 64
    %v4747 = vpop.permute.xlu0 %4746
    %4748 = vrot.lane.b32.xlu0 %v4698, 64
    %v4749 = vpop.permute.xlu0 %4748
    %4750 = vrot.lane.b32.xlu0 %v4699, 64
    %v4751 = vpop.permute.xlu0 %4750
    %4752 = vrot.lane.b32.xlu0 %v4700, 64
    %v4753 = vpop.permute.xlu0 %4752
    %4754 = vrot.lane.b32.xlu0 %v4701, 64
    %v4755 = vpop.permute.xlu0 %4754
    %4756 = vrot.lane.b32.xlu0 %v4702, 64
    %v4757 = vpop.permute.xlu0 %4756
    %4758 = vrot.lane.b32.xlu0 %v4703, 64
    %v4759 = vpop.permute.xlu0 %4758
    %4760 = vrot.lane.b32.xlu0 %v4704, 64
    %v4761 = vpop.permute.xlu0 %4760
    %4762 = vrot.lane.b32.xlu0 %v4705, 64
    %v4763 = vpop.permute.xlu0 %4762
    %4764 = vrot.lane.b32.xlu0 %v4706, 64
    %v4765 = vpop.permute.xlu0 %4764
    %4766 = vrot.lane.b32.xlu0 %v4707, 64
    %v4767 = vpop.permute.xlu0 %4766
    %4768 = vrot.lane.b32.xlu0 %v4708, 64
    %v4769 = vpop.permute.xlu0 %4768
    %4770 = vrot.lane.b32.xlu0 %v4709, 64
    %v4771 = vpop.permute.xlu0 %4770
    %4772 = vrot.lane.b32.xlu0 %v4710, 64
    %v4773 = vpop.permute.xlu0 %4772
    %4774 = vrot.lane.b32.xlu0 %v4711, 64
    %v4775 = vpop.permute.xlu0 %4774
    %v4792 = vmul.f32 %v4569, %v4745
    %v4793 = vmul.f32 %v4571, %v4747
    %v4794 = vmul.f32 %v4573, %v4749
    %v4795 = vmul.f32 %v4575, %v4751
    %v4796 = vmul.f32 %v4577, %v4753
    %v4797 = vmul.f32 %v4579, %v4755
    %v4798 = vmul.f32 %v4581, %v4757
    %v4799 = vmul.f32 %v4583, %v4759
    %v4800 = vmul.f32 %v4585, %v4761
    %v4801 = vmul.f32 %v4587, %v4763
    %v4802 = vmul.f32 %v4589, %v4765
    %v4803 = vmul.f32 %v4591, %v4767
    %v4804 = vmul.f32 %v4593, %v4769
    %v4805 = vmul.f32 %v4595, %v4771
    %v4806 = vmul.f32 %v4597, %v4773
    %v4807 = vmul.f32 %v4599, %v4775
    %4824 = vrot.lane.b32.xlu0 %v4792, 64
    %v4825 = vpop.permute.xlu0 %4824
    %4826 = vrot.lane.b32.xlu0 %v4793, 64
    %v4827 = vpop.permute.xlu0 %4826
    %4828 = vrot.lane.b32.xlu0 %v4794, 64
    %v4829 = vpop.permute.xlu0 %4828
    %4830 = vrot.lane.b32.xlu0 %v4795, 64
    %v4831 = vpop.permute.xlu0 %4830
    %4832 = vrot.lane.b32.xlu0 %v4796, 64
    %v4833 = vpop.permute.xlu0 %4832
    %4834 = vrot.lane.b32.xlu0 %v4797, 64
    %v4835 = vpop.permute.xlu0 %4834
    %4836 = vrot.lane.b32.xlu0 %v4798, 64
    %v4837 = vpop.permute.xlu0 %4836
    %4838 = vrot.lane.b32.xlu0 %v4799, 64
    %v4839 = vpop.permute.xlu0 %4838
    %4840 = vrot.lane.b32.xlu0 %v4800, 64
    %v4841 = vpop.permute.xlu0 %4840
    %4842 = vrot.lane.b32.xlu0 %v4801, 64
    %v4843 = vpop.permute.xlu0 %4842
    %4844 = vrot.lane.b32.xlu0 %v4802, 64
    %v4845 = vpop.permute.xlu0 %4844
    %4846 = vrot.lane.b32.xlu0 %v4803, 64
    %v4847 = vpop.permute.xlu0 %4846
    %4848 = vrot.lane.b32.xlu0 %v4804, 64
    %v4849 = vpop.permute.xlu0 %4848
    %4850 = vrot.lane.b32.xlu0 %v4805, 64
    %v4851 = vpop.permute.xlu0 %4850
    %4852 = vrot.lane.b32.xlu0 %v4806, 64
    %v4853 = vpop.permute.xlu0 %4852
    %4854 = vrot.lane.b32.xlu0 %v4807, 64
    %v4855 = vpop.permute.xlu0 %4854
    %v4872 = vadd.f32 %v4712, %v4825
    %v4873 = vadd.f32 %v4713, %v4827
    %v4874 = vadd.f32 %v4714, %v4829
    %v4875 = vadd.f32 %v4715, %v4831
    %v4876 = vadd.f32 %v4716, %v4833
    %v4877 = vadd.f32 %v4717, %v4835
    %v4878 = vadd.f32 %v4718, %v4837
    %v4879 = vadd.f32 %v4719, %v4839
    %v4880 = vadd.f32 %v4720, %v4841
    %v4881 = vadd.f32 %v4721, %v4843
    %v4882 = vadd.f32 %v4722, %v4845
    %v4883 = vadd.f32 %v4723, %v4847
    %v4884 = vadd.f32 %v4724, %v4849
    %v4885 = vadd.f32 %v4725, %v4851
    %v4886 = vadd.f32 %v4726, %v4853
    %v4887 = vadd.f32 %v4727, %v4855
    %v4888 = vtanh.pop %v4872
    %v4889 = vtanh.pop %v4873
    %v4890 = vtanh.pop %v4874
    %v4891 = vtanh.pop %v4875
    %v4892 = vtanh.pop %v4876
    %v4893 = vtanh.pop %v4877
    %v4894 = vtanh.pop %v4878
    %v4895 = vtanh.pop %v4879
    %v4896 = vtanh.pop %v4880
    %v4897 = vtanh.pop %v4881
    %v4898 = vtanh.pop %v4882
    %v4899 = vtanh.pop %v4883
    %v4900 = vtanh.pop %v4884
    %v4901 = vtanh.pop %v4885
    %v4902 = vtanh.pop %v4886
    %v4903 = vtanh.pop %v4887
    %4920 = vrot.lane.b32.xlu0 %v4888, 64
    %v4921 = vpop.permute.xlu0 %4920
    %4922 = vrot.lane.b32.xlu0 %v4889, 64
    %v4923 = vpop.permute.xlu0 %4922
    %4924 = vrot.lane.b32.xlu0 %v4890, 64
    %v4925 = vpop.permute.xlu0 %4924
    %4926 = vrot.lane.b32.xlu0 %v4891, 64
    %v4927 = vpop.permute.xlu0 %4926
    %4928 = vrot.lane.b32.xlu0 %v4892, 64
    %v4929 = vpop.permute.xlu0 %4928
    %4930 = vrot.lane.b32.xlu0 %v4893, 64
    %v4931 = vpop.permute.xlu0 %4930
    %4932 = vrot.lane.b32.xlu0 %v4894, 64
    %v4933 = vpop.permute.xlu0 %4932
    %4934 = vrot.lane.b32.xlu0 %v4895, 64
    %v4935 = vpop.permute.xlu0 %4934
    %4936 = vrot.lane.b32.xlu0 %v4896, 64
    %v4937 = vpop.permute.xlu0 %4936
    %4938 = vrot.lane.b32.xlu0 %v4897, 64
    %v4939 = vpop.permute.xlu0 %4938
    %4940 = vrot.lane.b32.xlu0 %v4898, 64
    %v4941 = vpop.permute.xlu0 %4940
    %4942 = vrot.lane.b32.xlu0 %v4899, 64
    %v4943 = vpop.permute.xlu0 %4942
    %4944 = vrot.lane.b32.xlu0 %v4900, 64
    %v4945 = vpop.permute.xlu0 %4944
    %4946 = vrot.lane.b32.xlu0 %v4901, 64
    %v4947 = vpop.permute.xlu0 %4946
    %4948 = vrot.lane.b32.xlu0 %v4902, 64
    %v4949 = vpop.permute.xlu0 %4948
    %4950 = vrot.lane.b32.xlu0 %v4903, 64
    %v4951 = vpop.permute.xlu0 %4950
    %v4968 = vmul.f32 %v4665, %v4921
    %v4969 = vmul.f32 %v4667, %v4923
    %v4970 = vmul.f32 %v4669, %v4925
    %v4971 = vmul.f32 %v4671, %v4927
    %v4972 = vmul.f32 %v4673, %v4929
    %v4973 = vmul.f32 %v4675, %v4931
    %v4974 = vmul.f32 %v4677, %v4933
    %v4975 = vmul.f32 %v4679, %v4935
    %v4976 = vmul.f32 %v4681, %v4937
    %v4977 = vmul.f32 %v4683, %v4939
    %v4978 = vmul.f32 %v4685, %v4941
    %v4979 = vmul.f32 %v4687, %v4943
    %v4980 = vmul.f32 %v4689, %v4945
    %v4981 = vmul.f32 %v4691, %v4947
    %v4982 = vmul.f32 %v4693, %v4949
    %v4983 = vmul.f32 %v4695, %v4951
    %s4984 = scalar_lea.vmem %s0, 768
    %v4985 = vld [vmem:[%s4984] sm:$0xff]
    %v4986 = vld [vmem:[%s4984 + $0x8] sm:$0xff]
    %v4987 = vld [vmem:[%s4984 + $0x10] sm:$0xff]
    %v4988 = vld [vmem:[%s4984 + $0x18] sm:$0xff]
    %v4989 = vld [vmem:[%s4984 + $0x20] sm:$0xff]
    %v4990 = vld [vmem:[%s4984 + $0x28] sm:$0xff]
    %v4991 = vld [vmem:[%s4984 + $0x30] sm:$0xff]
    %v4992 = vld [vmem:[%s4984 + $0x38] sm:$0xff]
    %v4993 = vld [vmem:[%s4984 + $0x40] sm:$0xff]
    %v4994 = vld [vmem:[%s4984 + $0x48] sm:$0xff]
    %v4995 = vld [vmem:[%s4984 + $0x50] sm:$0xff]
    %v4996 = vld [vmem:[%s4984 + $0x58] sm:$0xff]
    %v4997 = vld [vmem:[%s4984 + $0x60] sm:$0xff]
    %v4998 = vld [vmem:[%s4984 + $0x68] sm:$0xff]
    %v4999 = vld [vmem:[%s4984 + $0x70] sm:$0xff]
    %v5000 = vld [vmem:[%s4984 + $0x78] sm:$0xff]
    %5002 = vset.pattern.permute.xlu0 0
    %5003 = vperm.xlu0 %5002, %v4985
    %v5004 = vpop.permute.xlu0 %5003
    %5007 = vset.pattern.permute.xlu0 0
    %5008 = vperm.xlu0 %5007, %v4986
    %v5009 = vpop.permute.xlu0 %5008
    %5012 = vset.pattern.permute.xlu0 0
    %5013 = vperm.xlu0 %5012, %v4987
    %v5014 = vpop.permute.xlu0 %5013
    %5017 = vset.pattern.permute.xlu0 0
    %5018 = vperm.xlu0 %5017, %v4988
    %v5019 = vpop.permute.xlu0 %5018
    %5022 = vset.pattern.permute.xlu0 0
    %5023 = vperm.xlu0 %5022, %v4989
    %v5024 = vpop.permute.xlu0 %5023
    %5027 = vset.pattern.permute.xlu0 0
    %5028 = vperm.xlu0 %5027, %v4990
    %v5029 = vpop.permute.xlu0 %5028
    %5032 = vset.pattern.permute.xlu0 0
    %5033 = vperm.xlu0 %5032, %v4991
    %v5034 = vpop.permute.xlu0 %5033
    %5037 = vset.pattern.permute.xlu0 0
    %5038 = vperm.xlu0 %5037, %v4992
    %v5039 = vpop.permute.xlu0 %5038
    %5042 = vset.pattern.permute.xlu0 0
    %5043 = vperm.xlu0 %5042, %v4993
    %v5044 = vpop.permute.xlu0 %5043
    %5047 = vset.pattern.permute.xlu0 0
    %5048 = vperm.xlu0 %5047, %v4994
    %v5049 = vpop.permute.xlu0 %5048
    %5052 = vset.pattern.permute.xlu0 0
    %5053 = vperm.xlu0 %5052, %v4995
    %v5054 = vpop.permute.xlu0 %5053
    %5057 = vset.pattern.permute.xlu0 0
    %5058 = vperm.xlu0 %5057, %v4996
    %v5059 = vpop.permute.xlu0 %5058
    %5062 = vset.pattern.permute.xlu0 0
    %5063 = vperm.xlu0 %5062, %v4997
    %v5064 = vpop.permute.xlu0 %5063
    %5067 = vset.pattern.permute.xlu0 0
    %5068 = vperm.xlu0 %5067, %v4998
    %v5069 = vpop.permute.xlu0 %5068
    %5072 = vset.pattern.permute.xlu0 0
    %5073 = vperm.xlu0 %5072, %v4999
    %v5074 = vpop.permute.xlu0 %5073
    %5077 = vset.pattern.permute.xlu0 0
    %5078 = vperm.xlu0 %5077, %v5000
    %v5079 = vpop.permute.xlu0 %5078
    %v5081 = vmul.f32 %v5004, %v143
    %v5082 = vmul.f32 %v5004, %v147
    %v5083 = vmul.f32 %v5009, %v143
    %v5084 = vmul.f32 %v5009, %v147
    %v5085 = vmul.f32 %v5014, %v143
    %v5086 = vmul.f32 %v5014, %v147
    %v5087 = vmul.f32 %v5019, %v143
    %v5088 = vmul.f32 %v5019, %v147
    %v5089 = vmul.f32 %v5024, %v143
    %v5090 = vmul.f32 %v5024, %v147
    %v5091 = vmul.f32 %v5029, %v143
    %v5092 = vmul.f32 %v5029, %v147
    %v5093 = vmul.f32 %v5034, %v143
    %v5094 = vmul.f32 %v5034, %v147
    %v5095 = vmul.f32 %v5039, %v143
    %v5096 = vmul.f32 %v5039, %v147
    %v5097 = vmul.f32 %v5044, %v143
    %v5098 = vmul.f32 %v5044, %v147
    %v5099 = vmul.f32 %v5049, %v143
    %v5100 = vmul.f32 %v5049, %v147
    %v5101 = vmul.f32 %v5054, %v143
    %v5102 = vmul.f32 %v5054, %v147
    %v5103 = vmul.f32 %v5059, %v143
    %v5104 = vmul.f32 %v5059, %v147
    %v5105 = vmul.f32 %v5064, %v143
    %v5106 = vmul.f32 %v5064, %v147
    %v5107 = vmul.f32 %v5069, %v143
    %v5108 = vmul.f32 %v5069, %v147
    %v5109 = vmul.f32 %v5074, %v143
    %v5110 = vmul.f32 %v5074, %v147
    %v5111 = vmul.f32 %v5079, %v143
    %v5112 = vmul.f32 %v5079, %v147
    %v5113 = vadd.f32 %v5081, %v186
    %v5114 = vadd.f32 %v5082, %v190
    %v5115 = vadd.f32 %v5083, %v186
    %v5116 = vadd.f32 %v5084, %v190
    %v5117 = vadd.f32 %v5085, %v186
    %v5118 = vadd.f32 %v5086, %v190
    %v5119 = vadd.f32 %v5087, %v186
    %v5120 = vadd.f32 %v5088, %v190
    %v5121 = vadd.f32 %v5089, %v186
    %v5122 = vadd.f32 %v5090, %v190
    %v5123 = vadd.f32 %v5091, %v186
    %v5124 = vadd.f32 %v5092, %v190
    %v5125 = vadd.f32 %v5093, %v186
    %v5126 = vadd.f32 %v5094, %v190
    %v5127 = vadd.f32 %v5095, %v186
    %v5128 = vadd.f32 %v5096, %v190
    %v5129 = vadd.f32 %v5097, %v186
    %v5130 = vadd.f32 %v5098, %v190
    %v5131 = vadd.f32 %v5099, %v186
    %v5132 = vadd.f32 %v5100, %v190
    %v5133 = vadd.f32 %v5101, %v186
    %v5134 = vadd.f32 %v5102, %v190
    %v5135 = vadd.f32 %v5103, %v186
    %v5136 = vadd.f32 %v5104, %v190
    %v5137 = vadd.f32 %v5105, %v186
    %v5138 = vadd.f32 %v5106, %v190
    %v5139 = vadd.f32 %v5107, %v186
    %v5140 = vadd.f32 %v5108, %v190
    %v5141 = vadd.f32 %v5109, %v186
    %v5142 = vadd.f32 %v5110, %v190
    %v5143 = vadd.f32 %v5111, %v186
    %v5144 = vadd.f32 %v5112, %v190
    %v5145 = vpack.c.bf16 %v4969, %v4968
    %v5146 = vpack.c.bf16 %v4971, %v4970
    %v5147 = vpack.c.bf16 %v4973, %v4972
    %v5148 = vpack.c.bf16 %v4975, %v4974
    %v5149 = vpack.c.bf16 %v4977, %v4976
    %v5150 = vpack.c.bf16 %v4979, %v4978
    %v5151 = vpack.c.bf16 %v4981, %v4980
    %v5152 = vpack.c.bf16 %v4983, %v4982
    %v5154 = vsel %vm265, %v5145, 0
    %v5157 = vsel %vm265, %v5146, 0
    %v5160 = vsel %vm265, %v5147, 0
    %v5163 = vsel %vm265, %v5148, 0
    %v5166 = vsel %vm265, %v5149, 0
    %v5169 = vsel %vm265, %v5150, 0
    %v5172 = vsel %vm265, %v5151, 0
    %v5175 = vsel %vm265, %v5152, 0
    %5177 = vmatprep.subr.bf16.mxu0 %v250
    %5178 = vmatpush1.bf16.msra.mxu0 %v249
    %5179 = vmatprep.subr.bf16.mxu0 %v252
    %5180 = vmatpush1.bf16.msra.mxu0 %v251
    %5181 = vmatprep.subr.bf16.mxu0 %v254
    %5182 = vmatpush1.bf16.msra.mxu0 %v253
    %5183 = vmatprep.subr.bf16.mxu0 %v256
    %5184 = vmatpush1.bf16.msra.mxu0 %v255
    %5185 = vmatprep.subr.bf16.mxu0 0
    %5186 = vmatpush1.bf16.msra.mxu0 0
    %5187 = vmatprep.subr.bf16.mxu0 0
    %5188 = vmatpush1.bf16.msra.mxu0 0
    %5189 = vmatprep.subr.bf16.mxu0 0
    %5190 = vmatpush1.bf16.msra.mxu0 0
    %5191 = vmatprep.subr.bf16.mxu0 0
    %5192 = vmatpush1.bf16.msra.mxu0 0
    %5193 = vmatprep.subr.bf16.mxu0 0
    %5194 = vmatpush1.bf16.msra.mxu0 0
    %5195 = vmatprep.subr.bf16.mxu0 0
    %5196 = vmatpush1.bf16.msra.mxu0 0
    %5197 = vmatprep.subr.bf16.mxu0 0
    %5198 = vmatpush1.bf16.msra.mxu0 0
    %5199 = vmatprep.subr.bf16.mxu0 0
    %5200 = vmatpush1.bf16.msra.mxu0 0
    %5201 = vmatprep.subr.bf16.mxu0 0
    %5202 = vmatpush1.bf16.msra.mxu0 0
    %5203 = vmatprep.subr.bf16.mxu0 0
    %5204 = vmatpush1.bf16.msra.mxu0 0
    %5205 = vmatprep.subr.bf16.mxu0 0
    %5206 = vmatpush1.bf16.msra.mxu0 0
    %5207 = vmatprep.subr.bf16.mxu0 0
    %5208 = vmatpush1.bf16.msra.mxu0 0
    %5209 = vmatprep.mubr.bf16.mxu0 0
    %5210 = vmatmul.mubr.bf16.gmra.mrb[0].mxu0 %v5154
    %v5211 = vpop.f32.mrb[0].mxu0
    %v5212 = vadd.f32 0.0, %v5211
    %v5213 = vpop.f32.mrb[0].mxu0
    %v5214 = vadd.f32 0.0, %v5213
    %v5215 = vpop.f32.mrb[0].mxu0
    %v5216 = vadd.f32 0.0, %v5215
    %v5217 = vpop.f32.mrb[0].mxu0
    %v5218 = vadd.f32 0.0, %v5217
    %5219 = vmatprep.mubr.bf16.mxu0 0
    %5220 = vmatmul.mubr.bf16.gmra.mrb[0].mxu0 %v5157
    %v5221 = vpop.f32.mrb[0].mxu0
    %v5222 = vadd.f32 0.0, %v5221
    %v5223 = vpop.f32.mrb[0].mxu0
    %v5224 = vadd.f32 0.0, %v5223
    %v5225 = vpop.f32.mrb[0].mxu0
    %v5226 = vadd.f32 0.0, %v5225
    %v5227 = vpop.f32.mrb[0].mxu0
    %v5228 = vadd.f32 0.0, %v5227
    %5229 = vmatprep.mubr.bf16.mxu0 0
    %5230 = vmatmul.mubr.bf16.gmra.mrb[0].mxu0 %v5160
    %v5231 = vpop.f32.mrb[0].mxu0
    %v5232 = vadd.f32 0.0, %v5231
    %v5233 = vpop.f32.mrb[0].mxu0
    %v5234 = vadd.f32 0.0, %v5233
    %v5235 = vpop.f32.mrb[0].mxu0
    %v5236 = vadd.f32 0.0, %v5235
    %v5237 = vpop.f32.mrb[0].mxu0
    %v5238 = vadd.f32 0.0, %v5237
    %5239 = vmatprep.mubr.bf16.mxu0 0
    %5240 = vmatmul.mubr.bf16.gmra.mrb[0].mxu0 %v5163
    %v5241 = vpop.f32.mrb[0].mxu0
    %v5242 = vadd.f32 0.0, %v5241
    %v5243 = vpop.f32.mrb[0].mxu0
    %v5244 = vadd.f32 0.0, %v5243
    %v5245 = vpop.f32.mrb[0].mxu0
    %v5246 = vadd.f32 0.0, %v5245
    %v5247 = vpop.f32.mrb[0].mxu0
    %v5248 = vadd.f32 0.0, %v5247
    %5249 = vmatprep.mubr.bf16.mxu0 0
    %5250 = vmatmul.mubr.bf16.gmra.mrb[0].mxu0 %v5166
    %v5251 = vpop.f32.mrb[0].mxu0
    %v5252 = vadd.f32 0.0, %v5251
    %v5253 = vpop.f32.mrb[0].mxu0
    %v5254 = vadd.f32 0.0, %v5253
    %v5255 = vpop.f32.mrb[0].mxu0
    %v5256 = vadd.f32 0.0, %v5255
    %v5257 = vpop.f32.mrb[0].mxu0
    %v5258 = vadd.f32 0.0, %v5257
    %5259 = vmatprep.mubr.bf16.mxu0 0
    %5260 = vmatmul.mubr.bf16.gmra.mrb[0].mxu0 %v5169
    %v5261 = vpop.f32.mrb[0].mxu0
    %v5262 = vadd.f32 0.0, %v5261
    %v5263 = vpop.f32.mrb[0].mxu0
    %v5264 = vadd.f32 0.0, %v5263
    %v5265 = vpop.f32.mrb[0].mxu0
    %v5266 = vadd.f32 0.0, %v5265
    %v5267 = vpop.f32.mrb[0].mxu0
    %v5268 = vadd.f32 0.0, %v5267
    %5269 = vmatprep.mubr.bf16.mxu0 0
    %5270 = vmatmul.mubr.bf16.gmra.mrb[0].mxu0 %v5172
    %v5271 = vpop.f32.mrb[0].mxu0
    %v5272 = vadd.f32 0.0, %v5271
    %v5273 = vpop.f32.mrb[0].mxu0
    %v5274 = vadd.f32 0.0, %v5273
    %v5275 = vpop.f32.mrb[0].mxu0
    %v5276 = vadd.f32 0.0, %v5275
    %v5277 = vpop.f32.mrb[0].mxu0
    %v5278 = vadd.f32 0.0, %v5277
    %5279 = vmatprep.mubr.bf16.mxu0 0
    %5280 = vmatmul.mubr.bf16.gmra.mrb[0].mxu0 %v5175
    %v5281 = vpop.f32.mrb[0].mxu0
    %v5282 = vadd.f32 0.0, %v5281
    %v5283 = vpop.f32.mrb[0].mxu0
    %v5284 = vadd.f32 0.0, %v5283
    %v5285 = vpop.f32.mrb[0].mxu0
    %v5286 = vadd.f32 0.0, %v5285
    %v5287 = vpop.f32.mrb[0].mxu0
    %v5288 = vadd.f32 0.0, %v5287
    %5289 = vdwg.mxu0
    %v5290 = vadd.f32 %v5113, %v5212
    %v5291 = vadd.f32 %v5114, %v5214
    %v5292 = vadd.f32 %v5115, %v5216
    %v5293 = vadd.f32 %v5116, %v5218
    %v5294 = vadd.f32 %v5117, %v5222
    %v5295 = vadd.f32 %v5118, %v5224
    %v5296 = vadd.f32 %v5119, %v5226
    %v5297 = vadd.f32 %v5120, %v5228
    %v5298 = vadd.f32 %v5121, %v5232
    %v5299 = vadd.f32 %v5122, %v5234
    %v5300 = vadd.f32 %v5123, %v5236
    %v5301 = vadd.f32 %v5124, %v5238
    %v5302 = vadd.f32 %v5125, %v5242
    %v5303 = vadd.f32 %v5126, %v5244
    %v5304 = vadd.f32 %v5127, %v5246
    %v5305 = vadd.f32 %v5128, %v5248
    %v5306 = vadd.f32 %v5129, %v5252
    %v5307 = vadd.f32 %v5130, %v5254
    %v5308 = vadd.f32 %v5131, %v5256
    %v5309 = vadd.f32 %v5132, %v5258
    %v5310 = vadd.f32 %v5133, %v5262
    %v5311 = vadd.f32 %v5134, %v5264
    %v5312 = vadd.f32 %v5135, %v5266
    %v5313 = vadd.f32 %v5136, %v5268
    %v5314 = vadd.f32 %v5137, %v5272
    %v5315 = vadd.f32 %v5138, %v5274
    %v5316 = vadd.f32 %v5139, %v5276
    %v5317 = vadd.f32 %v5140, %v5278
    %v5318 = vadd.f32 %v5141, %v5282
    %v5319 = vadd.f32 %v5142, %v5284
    %v5320 = vadd.f32 %v5143, %v5286
    %v5321 = vadd.f32 %v5144, %v5288
    %v5322 = vxor.u32 %v5290, 2147483648
    %v5323 = vxor.u32 %v5292, 2147483648
    %v5324 = vxor.u32 %v5294, 2147483648
    %v5325 = vxor.u32 %v5296, 2147483648
    %v5326 = vxor.u32 %v5298, 2147483648
    %v5327 = vxor.u32 %v5300, 2147483648
    %v5328 = vxor.u32 %v5302, 2147483648
    %v5329 = vxor.u32 %v5304, 2147483648
    %v5330 = vxor.u32 %v5306, 2147483648
    %v5331 = vxor.u32 %v5308, 2147483648
    %v5332 = vxor.u32 %v5310, 2147483648
    %v5333 = vxor.u32 %v5312, 2147483648
    %v5334 = vxor.u32 %v5314, 2147483648
    %v5335 = vxor.u32 %v5316, 2147483648
    %v5336 = vxor.u32 %v5318, 2147483648
    %v5337 = vxor.u32 %v5320, 2147483648
    %v5338 = vmul.f32 %v5322, 1.442695
    %v5339 = vpow.pop %v5338
    %v5340 = vmul.f32 %v5323, 1.442695
    %v5341 = vpow.pop %v5340
    %v5342 = vmul.f32 %v5324, 1.442695
    %v5343 = vpow.pop %v5342
    %v5344 = vmul.f32 %v5325, 1.442695
    %v5345 = vpow.pop %v5344
    %v5346 = vmul.f32 %v5326, 1.442695
    %v5347 = vpow.pop %v5346
    %v5348 = vmul.f32 %v5327, 1.442695
    %v5349 = vpow.pop %v5348
    %v5350 = vmul.f32 %v5328, 1.442695
    %v5351 = vpow.pop %v5350
    %v5352 = vmul.f32 %v5329, 1.442695
    %v5353 = vpow.pop %v5352
    %v5354 = vmul.f32 %v5330, 1.442695
    %v5355 = vpow.pop %v5354
    %v5356 = vmul.f32 %v5331, 1.442695
    %v5357 = vpow.pop %v5356
    %v5358 = vmul.f32 %v5332, 1.442695
    %v5359 = vpow.pop %v5358
    %v5360 = vmul.f32 %v5333, 1.442695
    %v5361 = vpow.pop %v5360
    %v5362 = vmul.f32 %v5334, 1.442695
    %v5363 = vpow.pop %v5362
    %v5364 = vmul.f32 %v5335, 1.442695
    %v5365 = vpow.pop %v5364
    %v5366 = vmul.f32 %v5336, 1.442695
    %v5367 = vpow.pop %v5366
    %v5368 = vmul.f32 %v5337, 1.442695
    %v5369 = vpow.pop %v5368
    %v5370 = vadd.f32 %v5339, 1.0
    %v5371 = vadd.f32 %v5341, 1.0
    %v5372 = vadd.f32 %v5343, 1.0
    %v5373 = vadd.f32 %v5345, 1.0
    %v5374 = vadd.f32 %v5347, 1.0
    %v5375 = vadd.f32 %v5349, 1.0
    %v5376 = vadd.f32 %v5351, 1.0
    %v5377 = vadd.f32 %v5353, 1.0
    %v5378 = vadd.f32 %v5355, 1.0
    %v5379 = vadd.f32 %v5357, 1.0
    %v5380 = vadd.f32 %v5359, 1.0
    %v5381 = vadd.f32 %v5361, 1.0
    %v5382 = vadd.f32 %v5363, 1.0
    %v5383 = vadd.f32 %v5365, 1.0
    %v5384 = vadd.f32 %v5367, 1.0
    %v5385 = vadd.f32 %v5369, 1.0
    %v5386 = vrcp.pop %v5370
    %v5387 = vmul.f32 1.0, %v5386
    %v5388 = vrcp.pop %v5371
    %v5389 = vmul.f32 1.0, %v5388
    %v5390 = vrcp.pop %v5372
    %v5391 = vmul.f32 1.0, %v5390
    %v5392 = vrcp.pop %v5373
    %v5393 = vmul.f32 1.0, %v5392
    %v5394 = vrcp.pop %v5374
    %v5395 = vmul.f32 1.0, %v5394
    %v5396 = vrcp.pop %v5375
    %v5397 = vmul.f32 1.0, %v5396
    %v5398 = vrcp.pop %v5376
    %v5399 = vmul.f32 1.0, %v5398
    %v5400 = vrcp.pop %v5377
    %v5401 = vmul.f32 1.0, %v5400
    %v5402 = vrcp.pop %v5378
    %v5403 = vmul.f32 1.0, %v5402
    %v5404 = vrcp.pop %v5379
    %v5405 = vmul.f32 1.0, %v5404
    %v5406 = vrcp.pop %v5380
    %v5407 = vmul.f32 1.0, %v5406
    %v5408 = vrcp.pop %v5381
    %v5409 = vmul.f32 1.0, %v5408
    %v5410 = vrcp.pop %v5382
    %v5411 = vmul.f32 1.0, %v5410
    %v5412 = vrcp.pop %v5383
    %v5413 = vmul.f32 1.0, %v5412
    %v5414 = vrcp.pop %v5384
    %v5415 = vmul.f32 1.0, %v5414
    %v5416 = vrcp.pop %v5385
    %v5417 = vmul.f32 1.0, %v5416
    %v5418 = vxor.u32 %v5291, 2147483648
    %v5419 = vxor.u32 %v5293, 2147483648
    %v5420 = vxor.u32 %v5295, 2147483648
    %v5421 = vxor.u32 %v5297, 2147483648
    %v5422 = vxor.u32 %v5299, 2147483648
    %v5423 = vxor.u32 %v5301, 2147483648
    %v5424 = vxor.u32 %v5303, 2147483648
    %v5425 = vxor.u32 %v5305, 2147483648
    %v5426 = vxor.u32 %v5307, 2147483648
    %v5427 = vxor.u32 %v5309, 2147483648
    %v5428 = vxor.u32 %v5311, 2147483648
    %v5429 = vxor.u32 %v5313, 2147483648
    %v5430 = vxor.u32 %v5315, 2147483648
    %v5431 = vxor.u32 %v5317, 2147483648
    %v5432 = vxor.u32 %v5319, 2147483648
    %v5433 = vxor.u32 %v5321, 2147483648
    %v5434 = vmul.f32 %v5418, 1.442695
    %v5435 = vpow.pop %v5434
    %v5436 = vmul.f32 %v5419, 1.442695
    %v5437 = vpow.pop %v5436
    %v5438 = vmul.f32 %v5420, 1.442695
    %v5439 = vpow.pop %v5438
    %v5440 = vmul.f32 %v5421, 1.442695
    %v5441 = vpow.pop %v5440
    %v5442 = vmul.f32 %v5422, 1.442695
    %v5443 = vpow.pop %v5442
    %v5444 = vmul.f32 %v5423, 1.442695
    %v5445 = vpow.pop %v5444
    %v5446 = vmul.f32 %v5424, 1.442695
    %v5447 = vpow.pop %v5446
    %v5448 = vmul.f32 %v5425, 1.442695
    %v5449 = vpow.pop %v5448
    %v5450 = vmul.f32 %v5426, 1.442695
    %v5451 = vpow.pop %v5450
    %v5452 = vmul.f32 %v5427, 1.442695
    %v5453 = vpow.pop %v5452
    %v5454 = vmul.f32 %v5428, 1.442695
    %v5455 = vpow.pop %v5454
    %v5456 = vmul.f32 %v5429, 1.442695
    %v5457 = vpow.pop %v5456
    %v5458 = vmul.f32 %v5430, 1.442695
    %v5459 = vpow.pop %v5458
    %v5460 = vmul.f32 %v5431, 1.442695
    %v5461 = vpow.pop %v5460
    %v5462 = vmul.f32 %v5432, 1.442695
    %v5463 = vpow.pop %v5462
    %v5464 = vmul.f32 %v5433, 1.442695
    %v5465 = vpow.pop %v5464
    %v5466 = vadd.f32 %v5435, 1.0
    %v5467 = vadd.f32 %v5437, 1.0
    %v5468 = vadd.f32 %v5439, 1.0
    %v5469 = vadd.f32 %v5441, 1.0
    %v5470 = vadd.f32 %v5443, 1.0
    %v5471 = vadd.f32 %v5445, 1.0
    %v5472 = vadd.f32 %v5447, 1.0
    %v5473 = vadd.f32 %v5449, 1.0
    %v5474 = vadd.f32 %v5451, 1.0
    %v5475 = vadd.f32 %v5453, 1.0
    %v5476 = vadd.f32 %v5455, 1.0
    %v5477 = vadd.f32 %v5457, 1.0
    %v5478 = vadd.f32 %v5459, 1.0
    %v5479 = vadd.f32 %v5461, 1.0
    %v5480 = vadd.f32 %v5463, 1.0
    %v5481 = vadd.f32 %v5465, 1.0
    %v5482 = vrcp.pop %v5466
    %v5483 = vmul.f32 1.0, %v5482
    %v5484 = vrcp.pop %v5467
    %v5485 = vmul.f32 1.0, %v5484
    %v5486 = vrcp.pop %v5468
    %v5487 = vmul.f32 1.0, %v5486
    %v5488 = vrcp.pop %v5469
    %v5489 = vmul.f32 1.0, %v5488
    %v5490 = vrcp.pop %v5470
    %v5491 = vmul.f32 1.0, %v5490
    %v5492 = vrcp.pop %v5471
    %v5493 = vmul.f32 1.0, %v5492
    %v5494 = vrcp.pop %v5472
    %v5495 = vmul.f32 1.0, %v5494
    %v5496 = vrcp.pop %v5473
    %v5497 = vmul.f32 1.0, %v5496
    %v5498 = vrcp.pop %v5474
    %v5499 = vmul.f32 1.0, %v5498
    %v5500 = vrcp.pop %v5475
    %v5501 = vmul.f32 1.0, %v5500
    %v5502 = vrcp.pop %v5476
    %v5503 = vmul.f32 1.0, %v5502
    %v5504 = vrcp.pop %v5477
    %v5505 = vmul.f32 1.0, %v5504
    %v5506 = vrcp.pop %v5478
    %v5507 = vmul.f32 1.0, %v5506
    %v5508 = vrcp.pop %v5479
    %v5509 = vmul.f32 1.0, %v5508
    %v5510 = vrcp.pop %v5480
    %v5511 = vmul.f32 1.0, %v5510
    %v5512 = vrcp.pop %v5481
    %v5513 = vmul.f32 1.0, %v5512
    %v5514 = vtanh.pop %v5291
    %v5515 = vtanh.pop %v5293
    %v5516 = vtanh.pop %v5295
    %v5517 = vtanh.pop %v5297
    %v5518 = vtanh.pop %v5299
    %v5519 = vtanh.pop %v5301
    %v5520 = vtanh.pop %v5303
    %v5521 = vtanh.pop %v5305
    %v5522 = vtanh.pop %v5307
    %v5523 = vtanh.pop %v5309
    %v5524 = vtanh.pop %v5311
    %v5525 = vtanh.pop %v5313
    %v5526 = vtanh.pop %v5315
    %v5527 = vtanh.pop %v5317
    %v5528 = vtanh.pop %v5319
    %v5529 = vtanh.pop %v5321
    %v5530 = vmul.f32 %v5387, %v4872
    %v5531 = vmul.f32 %v5389, %v4873
    %v5532 = vmul.f32 %v5391, %v4874
    %v5533 = vmul.f32 %v5393, %v4875
    %v5534 = vmul.f32 %v5395, %v4876
    %v5535 = vmul.f32 %v5397, %v4877
    %v5536 = vmul.f32 %v5399, %v4878
    %v5537 = vmul.f32 %v5401, %v4879
    %v5538 = vmul.f32 %v5403, %v4880
    %v5539 = vmul.f32 %v5405, %v4881
    %v5540 = vmul.f32 %v5407, %v4882
    %v5541 = vmul.f32 %v5409, %v4883
    %v5542 = vmul.f32 %v5411, %v4884
    %v5543 = vmul.f32 %v5413, %v4885
    %v5544 = vmul.f32 %v5415, %v4886
    %v5545 = vmul.f32 %v5417, %v4887
    %5562 = vrot.lane.b32.xlu0 %v5514, 64
    %v5563 = vpop.permute.xlu0 %5562
    %5564 = vrot.lane.b32.xlu0 %v5515, 64
    %v5565 = vpop.permute.xlu0 %5564
    %5566 = vrot.lane.b32.xlu0 %v5516, 64
    %v5567 = vpop.permute.xlu0 %5566
    %5568 = vrot.lane.b32.xlu0 %v5517, 64
    %v5569 = vpop.permute.xlu0 %5568
    %5570 = vrot.lane.b32.xlu0 %v5518, 64
    %v5571 = vpop.permute.xlu0 %5570
    %5572 = vrot.lane.b32.xlu0 %v5519, 64
    %v5573 = vpop.permute.xlu0 %5572
    %5574 = vrot.lane.b32.xlu0 %v5520, 64
    %v5575 = vpop.permute.xlu0 %5574
    %5576 = vrot.lane.b32.xlu0 %v5521, 64
    %v5577 = vpop.permute.xlu0 %5576
    %5578 = vrot.lane.b32.xlu0 %v5522, 64
    %v5579 = vpop.permute.xlu0 %5578
    %5580 = vrot.lane.b32.xlu0 %v5523, 64
    %v5581 = vpop.permute.xlu0 %5580
    %5582 = vrot.lane.b32.xlu0 %v5524, 64
    %v5583 = vpop.permute.xlu0 %5582
    %5584 = vrot.lane.b32.xlu0 %v5525, 64
    %v5585 = vpop.permute.xlu0 %5584
    %5586 = vrot.lane.b32.xlu0 %v5526, 64
    %v5587 = vpop.permute.xlu0 %5586
    %5588 = vrot.lane.b32.xlu0 %v5527, 64
    %v5589 = vpop.permute.xlu0 %5588
    %5590 = vrot.lane.b32.xlu0 %v5528, 64
    %v5591 = vpop.permute.xlu0 %5590
    %5592 = vrot.lane.b32.xlu0 %v5529, 64
    %v5593 = vpop.permute.xlu0 %5592
    %v5610 = vmul.f32 %v5387, %v5563
    %v5611 = vmul.f32 %v5389, %v5565
    %v5612 = vmul.f32 %v5391, %v5567
    %v5613 = vmul.f32 %v5393, %v5569
    %v5614 = vmul.f32 %v5395, %v5571
    %v5615 = vmul.f32 %v5397, %v5573
    %v5616 = vmul.f32 %v5399, %v5575
    %v5617 = vmul.f32 %v5401, %v5577
    %v5618 = vmul.f32 %v5403, %v5579
    %v5619 = vmul.f32 %v5405, %v5581
    %v5620 = vmul.f32 %v5407, %v5583
    %v5621 = vmul.f32 %v5409, %v5585
    %v5622 = vmul.f32 %v5411, %v5587
    %v5623 = vmul.f32 %v5413, %v5589
    %v5624 = vmul.f32 %v5415, %v5591
    %v5625 = vmul.f32 %v5417, %v5593
    %5642 = vrot.lane.b32.xlu0 %v5610, 64
    %v5643 = vpop.permute.xlu0 %5642
    %5644 = vrot.lane.b32.xlu0 %v5611, 64
    %v5645 = vpop.permute.xlu0 %5644
    %5646 = vrot.lane.b32.xlu0 %v5612, 64
    %v5647 = vpop.permute.xlu0 %5646
    %5648 = vrot.lane.b32.xlu0 %v5613, 64
    %v5649 = vpop.permute.xlu0 %5648
    %5650 = vrot.lane.b32.xlu0 %v5614, 64
    %v5651 = vpop.permute.xlu0 %5650
    %5652 = vrot.lane.b32.xlu0 %v5615, 64
    %v5653 = vpop.permute.xlu0 %5652
    %5654 = vrot.lane.b32.xlu0 %v5616, 64
    %v5655 = vpop.permute.xlu0 %5654
    %5656 = vrot.lane.b32.xlu0 %v5617, 64
    %v5657 = vpop.permute.xlu0 %5656
    %5658 = vrot.lane.b32.xlu0 %v5618, 64
    %v5659 = vpop.permute.xlu0 %5658
    %5660 = vrot.lane.b32.xlu0 %v5619, 64
    %v5661 = vpop.permute.xlu0 %5660
    %5662 = vrot.lane.b32.xlu0 %v5620, 64
    %v5663 = vpop.permute.xlu0 %5662
    %5664 = vrot.lane.b32.xlu0 %v5621, 64
    %v5665 = vpop.permute.xlu0 %5664
    %5666 = vrot.lane.b32.xlu0 %v5622, 64
    %v5667 = vpop.permute.xlu0 %5666
    %5668 = vrot.lane.b32.xlu0 %v5623, 64
    %v5669 = vpop.permute.xlu0 %5668
    %5670 = vrot.lane.b32.xlu0 %v5624, 64
    %v5671 = vpop.permute.xlu0 %5670
    %5672 = vrot.lane.b32.xlu0 %v5625, 64
    %v5673 = vpop.permute.xlu0 %5672
    %v5690 = vadd.f32 %v5530, %v5643
    %v5691 = vadd.f32 %v5531, %v5645
    %v5692 = vadd.f32 %v5532, %v5647
    %v5693 = vadd.f32 %v5533, %v5649
    %v5694 = vadd.f32 %v5534, %v5651
    %v5695 = vadd.f32 %v5535, %v5653
    %v5696 = vadd.f32 %v5536, %v5655
    %v5697 = vadd.f32 %v5537, %v5657
    %v5698 = vadd.f32 %v5538, %v5659
    %v5699 = vadd.f32 %v5539, %v5661
    %v5700 = vadd.f32 %v5540, %v5663
    %v5701 = vadd.f32 %v5541, %v5665
    %v5702 = vadd.f32 %v5542, %v5667
    %v5703 = vadd.f32 %v5543, %v5669
    %v5704 = vadd.f32 %v5544, %v5671
    %v5705 = vadd.f32 %v5545, %v5673
    %v5706 = vtanh.pop %v5690
    %v5707 = vtanh.pop %v5691
    %v5708 = vtanh.pop %v5692
    %v5709 = vtanh.pop %v5693
    %v5710 = vtanh.pop %v5694
    %v5711 = vtanh.pop %v5695
    %v5712 = vtanh.pop %v5696
    %v5713 = vtanh.pop %v5697
    %v5714 = vtanh.pop %v5698
    %v5715 = vtanh.pop %v5699
    %v5716 = vtanh.pop %v5700
    %v5717 = vtanh.pop %v5701
    %v5718 = vtanh.pop %v5702
    %v5719 = vtanh.pop %v5703
    %v5720 = vtanh.pop %v5704
    %v5721 = vtanh.pop %v5705
    %5738 = vrot.lane.b32.xlu0 %v5706, 64
    %v5739 = vpop.permute.xlu0 %5738
    %5740 = vrot.lane.b32.xlu0 %v5707, 64
    %v5741 = vpop.permute.xlu0 %5740
    %5742 = vrot.lane.b32.xlu0 %v5708, 64
    %v5743 = vpop.permute.xlu0 %5742
    %5744 = vrot.lane.b32.xlu0 %v5709, 64
    %v5745 = vpop.permute.xlu0 %5744
    %5746 = vrot.lane.b32.xlu0 %v5710, 64
    %v5747 = vpop.permute.xlu0 %5746
    %5748 = vrot.lane.b32.xlu0 %v5711, 64
    %v5749 = vpop.permute.xlu0 %5748
    %5750 = vrot.lane.b32.xlu0 %v5712, 64
    %v5751 = vpop.permute.xlu0 %5750
    %5752 = vrot.lane.b32.xlu0 %v5713, 64
    %v5753 = vpop.permute.xlu0 %5752
    %5754 = vrot.lane.b32.xlu0 %v5714, 64
    %v5755 = vpop.permute.xlu0 %5754
    %5756 = vrot.lane.b32.xlu0 %v5715, 64
    %v5757 = vpop.permute.xlu0 %5756
    %5758 = vrot.lane.b32.xlu0 %v5716, 64
    %v5759 = vpop.permute.xlu0 %5758
    %5760 = vrot.lane.b32.xlu0 %v5717, 64
    %v5761 = vpop.permute.xlu0 %5760
    %5762 = vrot.lane.b32.xlu0 %v5718, 64
    %v5763 = vpop.permute.xlu0 %5762
    %5764 = vrot.lane.b32.xlu0 %v5719, 64
    %v5765 = vpop.permute.xlu0 %5764
    %5766 = vrot.lane.b32.xlu0 %v5720, 64
    %v5767 = vpop.permute.xlu0 %5766
    %5768 = vrot.lane.b32.xlu0 %v5721, 64
    %v5769 = vpop.permute.xlu0 %5768
    %v5786 = vmul.f32 %v5483, %v5739
    %v5787 = vmul.f32 %v5485, %v5741
    %v5788 = vmul.f32 %v5487, %v5743
    %v5789 = vmul.f32 %v5489, %v5745
    %v5790 = vmul.f32 %v5491, %v5747
    %v5791 = vmul.f32 %v5493, %v5749
    %v5792 = vmul.f32 %v5495, %v5751
    %v5793 = vmul.f32 %v5497, %v5753
    %v5794 = vmul.f32 %v5499, %v5755
    %v5795 = vmul.f32 %v5501, %v5757
    %v5796 = vmul.f32 %v5503, %v5759
    %v5797 = vmul.f32 %v5505, %v5761
    %v5798 = vmul.f32 %v5507, %v5763
    %v5799 = vmul.f32 %v5509, %v5765
    %v5800 = vmul.f32 %v5511, %v5767
    %v5801 = vmul.f32 %v5513, %v5769
    %s5802 = scalar_lea.vmem %s0, 896
    %v5803 = vld [vmem:[%s5802] sm:$0xff]
    %v5804 = vld [vmem:[%s5802 + $0x8] sm:$0xff]
    %v5805 = vld [vmem:[%s5802 + $0x10] sm:$0xff]
    %v5806 = vld [vmem:[%s5802 + $0x18] sm:$0xff]
    %v5807 = vld [vmem:[%s5802 + $0x20] sm:$0xff]
    %v5808 = vld [vmem:[%s5802 + $0x28] sm:$0xff]
    %v5809 = vld [vmem:[%s5802 + $0x30] sm:$0xff]
    %v5810 = vld [vmem:[%s5802 + $0x38] sm:$0xff]
    %v5811 = vld [vmem:[%s5802 + $0x40] sm:$0xff]
    %v5812 = vld [vmem:[%s5802 + $0x48] sm:$0xff]
    %v5813 = vld [vmem:[%s5802 + $0x50] sm:$0xff]
    %v5814 = vld [vmem:[%s5802 + $0x58] sm:$0xff]
    %v5815 = vld [vmem:[%s5802 + $0x60] sm:$0xff]
    %v5816 = vld [vmem:[%s5802 + $0x68] sm:$0xff]
    %v5817 = vld [vmem:[%s5802 + $0x70] sm:$0xff]
    %v5818 = vld [vmem:[%s5802 + $0x78] sm:$0xff]
    %5820 = vset.pattern.permute.xlu0 0
    %5821 = vperm.xlu0 %5820, %v5803
    %v5822 = vpop.permute.xlu0 %5821
    %5825 = vset.pattern.permute.xlu0 0
    %5826 = vperm.xlu0 %5825, %v5804
    %v5827 = vpop.permute.xlu0 %5826
    %5830 = vset.pattern.permute.xlu0 0
    %5831 = vperm.xlu0 %5830, %v5805
    %v5832 = vpop.permute.xlu0 %5831
    %5835 = vset.pattern.permute.xlu0 0
    %5836 = vperm.xlu0 %5835, %v5806
    %v5837 = vpop.permute.xlu0 %5836
    %5840 = vset.pattern.permute.xlu0 0
    %5841 = vperm.xlu0 %5840, %v5807
    %v5842 = vpop.permute.xlu0 %5841
    %5845 = vset.pattern.permute.xlu0 0
    %5846 = vperm.xlu0 %5845, %v5808
    %v5847 = vpop.permute.xlu0 %5846
    %5850 = vset.pattern.permute.xlu0 0
    %5851 = vperm.xlu0 %5850, %v5809
    %v5852 = vpop.permute.xlu0 %5851
    %5855 = vset.pattern.permute.xlu0 0
    %5856 = vperm.xlu0 %5855, %v5810
    %v5857 = vpop.permute.xlu0 %5856
    %5860 = vset.pattern.permute.xlu0 0
    %5861 = vperm.xlu0 %5860, %v5811
    %v5862 = vpop.permute.xlu0 %5861
    %5865 = vset.pattern.permute.xlu0 0
    %5866 = vperm.xlu0 %5865, %v5812
    %v5867 = vpop.permute.xlu0 %5866
    %5870 = vset.pattern.permute.xlu0 0
    %5871 = vperm.xlu0 %5870, %v5813
    %v5872 = vpop.permute.xlu0 %5871
    %5875 = vset.pattern.permute.xlu0 0
    %5876 = vperm.xlu0 %5875, %v5814
    %v5877 = vpop.permute.xlu0 %5876
    %5880 = vset.pattern.permute.xlu0 0
    %5881 = vperm.xlu0 %5880, %v5815
    %v5882 = vpop.permute.xlu0 %5881
    %5885 = vset.pattern.permute.xlu0 0
    %5886 = vperm.xlu0 %5885, %v5816
    %v5887 = vpop.permute.xlu0 %5886
    %5890 = vset.pattern.permute.xlu0 0
    %5891 = vperm.xlu0 %5890, %v5817
    %v5892 = vpop.permute.xlu0 %5891
    %5895 = vset.pattern.permute.xlu0 0
    %5896 = vperm.xlu0 %5895, %v5818
    %v5897 = vpop.permute.xlu0 %5896
    %v5899 = vmul.f32 %v5822, %v143
    %v5900 = vmul.f32 %v5822, %v147
    %v5901 = vmul.f32 %v5827, %v143
    %v5902 = vmul.f32 %v5827, %v147
    %v5903 = vmul.f32 %v5832, %v143
    %v5904 = vmul.f32 %v5832, %v147
    %v5905 = vmul.f32 %v5837, %v143
    %v5906 = vmul.f32 %v5837, %v147
    %v5907 = vmul.f32 %v5842, %v143
    %v5908 = vmul.f32 %v5842, %v147
    %v5909 = vmul.f32 %v5847, %v143
    %v5910 = vmul.f32 %v5847, %v147
    %v5911 = vmul.f32 %v5852, %v143
    %v5912 = vmul.f32 %v5852, %v147
    %v5913 = vmul.f32 %v5857, %v143
    %v5914 = vmul.f32 %v5857, %v147
    %v5915 = vmul.f32 %v5862, %v143
    %v5916 = vmul.f32 %v5862, %v147
    %v5917 = vmul.f32 %v5867, %v143
    %v5918 = vmul.f32 %v5867, %v147
    %v5919 = vmul.f32 %v5872, %v143
    %v5920 = vmul.f32 %v5872, %v147
    %v5921 = vmul.f32 %v5877, %v143
    %v5922 = vmul.f32 %v5877, %v147
    %v5923 = vmul.f32 %v5882, %v143
    %v5924 = vmul.f32 %v5882, %v147
    %v5925 = vmul.f32 %v5887, %v143
    %v5926 = vmul.f32 %v5887, %v147
    %v5927 = vmul.f32 %v5892, %v143
    %v5928 = vmul.f32 %v5892, %v147
    %v5929 = vmul.f32 %v5897, %v143
    %v5930 = vmul.f32 %v5897, %v147
    %v5931 = vadd.f32 %v5899, %v186
    %v5932 = vadd.f32 %v5900, %v190
    %v5933 = vadd.f32 %v5901, %v186
    %v5934 = vadd.f32 %v5902, %v190
    %v5935 = vadd.f32 %v5903, %v186
    %v5936 = vadd.f32 %v5904, %v190
    %v5937 = vadd.f32 %v5905, %v186
    %v5938 = vadd.f32 %v5906, %v190
    %v5939 = vadd.f32 %v5907, %v186
    %v5940 = vadd.f32 %v5908, %v190
    %v5941 = vadd.f32 %v5909, %v186
    %v5942 = vadd.f32 %v5910, %v190
    %v5943 = vadd.f32 %v5911, %v186
    %v5944 = vadd.f32 %v5912, %v190
    %v5945 = vadd.f32 %v5913, %v186
    %v5946 = vadd.f32 %v5914, %v190
    %v5947 = vadd.f32 %v5915, %v186
    %v5948 = vadd.f32 %v5916, %v190
    %v5949 = vadd.f32 %v5917, %v186
    %v5950 = vadd.f32 %v5918, %v190
    %v5951 = vadd.f32 %v5919, %v186
    %v5952 = vadd.f32 %v5920, %v190
    %v5953 = vadd.f32 %v5921, %v186
    %v5954 = vadd.f32 %v5922, %v190
    %v5955 = vadd.f32 %v5923, %v186
    %v5956 = vadd.f32 %v5924, %v190
    %v5957 = vadd.f32 %v5925, %v186
    %v5958 = vadd.f32 %v5926, %v190
    %v5959 = vadd.f32 %v5927, %v186
    %v5960 = vadd.f32 %v5928, %v190
    %v5961 = vadd.f32 %v5929, %v186
    %v5962 = vadd.f32 %v5930, %v190
    %v5963 = vpack.c.bf16 %v5787, %v5786
    %v5964 = vpack.c.bf16 %v5789, %v5788
    %v5965 = vpack.c.bf16 %v5791, %v5790
    %v5966 = vpack.c.bf16 %v5793, %v5792
    %v5967 = vpack.c.bf16 %v5795, %v5794
    %v5968 = vpack.c.bf16 %v5797, %v5796
    %v5969 = vpack.c.bf16 %v5799, %v5798
    %v5970 = vpack.c.bf16 %v5801, %v5800
    %v5972 = vsel %vm265, %v5963, 0
    %v5975 = vsel %vm265, %v5964, 0
    %v5978 = vsel %vm265, %v5965, 0
    %v5981 = vsel %vm265, %v5966, 0
    %v5984 = vsel %vm265, %v5967, 0
    %v5987 = vsel %vm265, %v5968, 0
    %v5990 = vsel %vm265, %v5969, 0
    %v5993 = vsel %vm265, %v5970, 0
    %5995 = vmatprep.subr.bf16.mxu0 %v250
    %5996 = vmatpush1.bf16.msra.mxu0 %v249
    %5997 = vmatprep.subr.bf16.mxu0 %v252
    %5998 = vmatpush1.bf16.msra.mxu0 %v251
    %5999 = vmatprep.subr.bf16.mxu0 %v254
    %6000 = vmatpush1.bf16.msra.mxu0 %v253
    %6001 = vmatprep.subr.bf16.mxu0 %v256
    %6002 = vmatpush1.bf16.msra.mxu0 %v255
    %6003 = vmatprep.subr.bf16.mxu0 0
    %6004 = vmatpush1.bf16.msra.mxu0 0
    %6005 = vmatprep.subr.bf16.mxu0 0
    %6006 = vmatpush1.bf16.msra.mxu0 0
    %6007 = vmatprep.subr.bf16.mxu0 0
    %6008 = vmatpush1.bf16.msra.mxu0 0
    %6009 = vmatprep.subr.bf16.mxu0 0
    %6010 = vmatpush1.bf16.msra.mxu0 0
    %6011 = vmatprep.subr.bf16.mxu0 0
    %6012 = vmatpush1.bf16.msra.mxu0 0
    %6013 = vmatprep.subr.bf16.mxu0 0
    %6014 = vmatpush1.bf16.msra.mxu0 0
    %6015 = vmatprep.subr.bf16.mxu0 0
    %6016 = vmatpush1.bf16.msra.mxu0 0
    %6017 = vmatprep.subr.bf16.mxu0 0
    %6018 = vmatpush1.bf16.msra.mxu0 0
    %6019 = vmatprep.subr.bf16.mxu0 0
    %6020 = vmatpush1.bf16.msra.mxu0 0
    %6021 = vmatprep.subr.bf16.mxu0 0
    %6022 = vmatpush1.bf16.msra.mxu0 0
    %6023 = vmatprep.subr.bf16.mxu0 0
    %6024 = vmatpush1.bf16.msra.mxu0 0
    %6025 = vmatprep.subr.bf16.mxu0 0
    %6026 = vmatpush1.bf16.msra.mxu0 0
    %6027 = vmatprep.mubr.bf16.mxu0 0
    %6028 = vmatmul.mubr.bf16.gmra.mrb[0].mxu0 %v5972
    %v6029 = vpop.f32.mrb[0].mxu0
    %v6030 = vadd.f32 0.0, %v6029
    %v6031 = vpop.f32.mrb[0].mxu0
    %v6032 = vadd.f32 0.0, %v6031
    %v6033 = vpop.f32.mrb[0].mxu0
    %v6034 = vadd.f32 0.0, %v6033
    %v6035 = vpop.f32.mrb[0].mxu0
    %v6036 = vadd.f32 0.0, %v6035
    %6037 = vmatprep.mubr.bf16.mxu0 0
    %6038 = vmatmul.mubr.bf16.gmra.mrb[0].mxu0 %v5975
    %v6039 = vpop.f32.mrb[0].mxu0
    %v6040 = vadd.f32 0.0, %v6039
    %v6041 = vpop.f32.mrb[0].mxu0
    %v6042 = vadd.f32 0.0, %v6041
    %v6043 = vpop.f32.mrb[0].mxu0
    %v6044 = vadd.f32 0.0, %v6043
    %v6045 = vpop.f32.mrb[0].mxu0
    %v6046 = vadd.f32 0.0, %v6045
    %6047 = vmatprep.mubr.bf16.mxu0 0
    %6048 = vmatmul.mubr.bf16.gmra.mrb[0].mxu0 %v5978
    %v6049 = vpop.f32.mrb[0].mxu0
    %v6050 = vadd.f32 0.0, %v6049
    %v6051 = vpop.f32.mrb[0].mxu0
    %v6052 = vadd.f32 0.0, %v6051
    %v6053 = vpop.f32.mrb[0].mxu0
    %v6054 = vadd.f32 0.0, %v6053
    %v6055 = vpop.f32.mrb[0].mxu0
    %v6056 = vadd.f32 0.0, %v6055
    %6057 = vmatprep.mubr.bf16.mxu0 0
    %6058 = vmatmul.mubr.bf16.gmra.mrb[0].mxu0 %v5981
    %v6059 = vpop.f32.mrb[0].mxu0
    %v6060 = vadd.f32 0.0, %v6059
    %v6061 = vpop.f32.mrb[0].mxu0
    %v6062 = vadd.f32 0.0, %v6061
    %v6063 = vpop.f32.mrb[0].mxu0
    %v6064 = vadd.f32 0.0, %v6063
    %v6065 = vpop.f32.mrb[0].mxu0
    %v6066 = vadd.f32 0.0, %v6065
    %6067 = vmatprep.mubr.bf16.mxu0 0
    %6068 = vmatmul.mubr.bf16.gmra.mrb[0].mxu0 %v5984
    %v6069 = vpop.f32.mrb[0].mxu0
    %v6070 = vadd.f32 0.0, %v6069
    %v6071 = vpop.f32.mrb[0].mxu0
    %v6072 = vadd.f32 0.0, %v6071
    %v6073 = vpop.f32.mrb[0].mxu0
    %v6074 = vadd.f32 0.0, %v6073
    %v6075 = vpop.f32.mrb[0].mxu0
    %v6076 = vadd.f32 0.0, %v6075
    %6077 = vmatprep.mubr.bf16.mxu0 0
    %6078 = vmatmul.mubr.bf16.gmra.mrb[0].mxu0 %v5987
    %v6079 = vpop.f32.mrb[0].mxu0
    %v6080 = vadd.f32 0.0, %v6079
    %v6081 = vpop.f32.mrb[0].mxu0
    %v6082 = vadd.f32 0.0, %v6081
    %v6083 = vpop.f32.mrb[0].mxu0
    %v6084 = vadd.f32 0.0, %v6083
    %v6085 = vpop.f32.mrb[0].mxu0
    %v6086 = vadd.f32 0.0, %v6085
    %6087 = vmatprep.mubr.bf16.mxu0 0
    %6088 = vmatmul.mubr.bf16.gmra.mrb[0].mxu0 %v5990
    %v6089 = vpop.f32.mrb[0].mxu0
    %v6090 = vadd.f32 0.0, %v6089
    %v6091 = vpop.f32.mrb[0].mxu0
    %v6092 = vadd.f32 0.0, %v6091
    %v6093 = vpop.f32.mrb[0].mxu0
    %v6094 = vadd.f32 0.0, %v6093
    %v6095 = vpop.f32.mrb[0].mxu0
    %v6096 = vadd.f32 0.0, %v6095
    %6097 = vmatprep.mubr.bf16.mxu0 0
    %6098 = vmatmul.mubr.bf16.gmra.mrb[0].mxu0 %v5993
    %v6099 = vpop.f32.mrb[0].mxu0
    %v6100 = vadd.f32 0.0, %v6099
    %v6101 = vpop.f32.mrb[0].mxu0
    %v6102 = vadd.f32 0.0, %v6101
    %v6103 = vpop.f32.mrb[0].mxu0
    %v6104 = vadd.f32 0.0, %v6103
    %v6105 = vpop.f32.mrb[0].mxu0
    %v6106 = vadd.f32 0.0, %v6105
    %6107 = vdwg.mxu0
    %v6108 = vadd.f32 %v5931, %v6030
    %v6109 = vadd.f32 %v5932, %v6032
    %v6110 = vadd.f32 %v5933, %v6034
    %v6111 = vadd.f32 %v5934, %v6036
    %v6112 = vadd.f32 %v5935, %v6040
    %v6113 = vadd.f32 %v5936, %v6042
    %v6114 = vadd.f32 %v5937, %v6044
    %v6115 = vadd.f32 %v5938, %v6046
    %v6116 = vadd.f32 %v5939, %v6050
    %v6117 = vadd.f32 %v5940, %v6052
    %v6118 = vadd.f32 %v5941, %v6054
    %v6119 = vadd.f32 %v5942, %v6056
    %v6120 = vadd.f32 %v5943, %v6060
    %v6121 = vadd.f32 %v5944, %v6062
    %v6122 = vadd.f32 %v5945, %v6064
    %v6123 = vadd.f32 %v5946, %v6066
    %v6124 = vadd.f32 %v5947, %v6070
    %v6125 = vadd.f32 %v5948, %v6072
    %v6126 = vadd.f32 %v5949, %v6074
    %v6127 = vadd.f32 %v5950, %v6076
    %v6128 = vadd.f32 %v5951, %v6080
    %v6129 = vadd.f32 %v5952, %v6082
    %v6130 = vadd.f32 %v5953, %v6084
    %v6131 = vadd.f32 %v5954, %v6086
    %v6132 = vadd.f32 %v5955, %v6090
    %v6133 = vadd.f32 %v5956, %v6092
    %v6134 = vadd.f32 %v5957, %v6094
    %v6135 = vadd.f32 %v5958, %v6096
    %v6136 = vadd.f32 %v5959, %v6100
    %v6137 = vadd.f32 %v5960, %v6102
    %v6138 = vadd.f32 %v5961, %v6104
    %v6139 = vadd.f32 %v5962, %v6106
    %v6140 = vxor.u32 %v6108, 2147483648
    %v6141 = vxor.u32 %v6110, 2147483648
    %v6142 = vxor.u32 %v6112, 2147483648
    %v6143 = vxor.u32 %v6114, 2147483648
    %v6144 = vxor.u32 %v6116, 2147483648
    %v6145 = vxor.u32 %v6118, 2147483648
    %v6146 = vxor.u32 %v6120, 2147483648
    %v6147 = vxor.u32 %v6122, 2147483648
    %v6148 = vxor.u32 %v6124, 2147483648
    %v6149 = vxor.u32 %v6126, 2147483648
    %v6150 = vxor.u32 %v6128, 2147483648
    %v6151 = vxor.u32 %v6130, 2147483648
    %v6152 = vxor.u32 %v6132, 2147483648
    %v6153 = vxor.u32 %v6134, 2147483648
    %v6154 = vxor.u32 %v6136, 2147483648
    %v6155 = vxor.u32 %v6138, 2147483648
    %v6156 = vmul.f32 %v6140, 1.442695
    %v6157 = vpow.pop %v6156
    %v6158 = vmul.f32 %v6141, 1.442695
    %v6159 = vpow.pop %v6158
    %v6160 = vmul.f32 %v6142, 1.442695
    %v6161 = vpow.pop %v6160
    %v6162 = vmul.f32 %v6143, 1.442695
    %v6163 = vpow.pop %v6162
    %v6164 = vmul.f32 %v6144, 1.442695
    %v6165 = vpow.pop %v6164
    %v6166 = vmul.f32 %v6145, 1.442695
    %v6167 = vpow.pop %v6166
    %v6168 = vmul.f32 %v6146, 1.442695
    %v6169 = vpow.pop %v6168
    %v6170 = vmul.f32 %v6147, 1.442695
    %v6171 = vpow.pop %v6170
    %v6172 = vmul.f32 %v6148, 1.442695
    %v6173 = vpow.pop %v6172
    %v6174 = vmul.f32 %v6149, 1.442695
    %v6175 = vpow.pop %v6174
    %v6176 = vmul.f32 %v6150, 1.442695
    %v6177 = vpow.pop %v6176
    %v6178 = vmul.f32 %v6151, 1.442695
    %v6179 = vpow.pop %v6178
    %v6180 = vmul.f32 %v6152, 1.442695
    %v6181 = vpow.pop %v6180
    %v6182 = vmul.f32 %v6153, 1.442695
    %v6183 = vpow.pop %v6182
    %v6184 = vmul.f32 %v6154, 1.442695
    %v6185 = vpow.pop %v6184
    %v6186 = vmul.f32 %v6155, 1.442695
    %v6187 = vpow.pop %v6186
    %v6188 = vadd.f32 %v6157, 1.0
    %v6189 = vadd.f32 %v6159, 1.0
    %v6190 = vadd.f32 %v6161, 1.0
    %v6191 = vadd.f32 %v6163, 1.0
    %v6192 = vadd.f32 %v6165, 1.0
    %v6193 = vadd.f32 %v6167, 1.0
    %v6194 = vadd.f32 %v6169, 1.0
    %v6195 = vadd.f32 %v6171, 1.0
    %v6196 = vadd.f32 %v6173, 1.0
    %v6197 = vadd.f32 %v6175, 1.0
    %v6198 = vadd.f32 %v6177, 1.0
    %v6199 = vadd.f32 %v6179, 1.0
    %v6200 = vadd.f32 %v6181, 1.0
    %v6201 = vadd.f32 %v6183, 1.0
    %v6202 = vadd.f32 %v6185, 1.0
    %v6203 = vadd.f32 %v6187, 1.0
    %v6204 = vrcp.pop %v6188
    %v6205 = vmul.f32 1.0, %v6204
    %v6206 = vrcp.pop %v6189
    %v6207 = vmul.f32 1.0, %v6206
    %v6208 = vrcp.pop %v6190
    %v6209 = vmul.f32 1.0, %v6208
    %v6210 = vrcp.pop %v6191
    %v6211 = vmul.f32 1.0, %v6210
    %v6212 = vrcp.pop %v6192
    %v6213 = vmul.f32 1.0, %v6212
    %v6214 = vrcp.pop %v6193
    %v6215 = vmul.f32 1.0, %v6214
    %v6216 = vrcp.pop %v6194
    %v6217 = vmul.f32 1.0, %v6216
    %v6218 = vrcp.pop %v6195
    %v6219 = vmul.f32 1.0, %v6218
    %v6220 = vrcp.pop %v6196
    %v6221 = vmul.f32 1.0, %v6220
    %v6222 = vrcp.pop %v6197
    %v6223 = vmul.f32 1.0, %v6222
    %v6224 = vrcp.pop %v6198
    %v6225 = vmul.f32 1.0, %v6224
    %v6226 = vrcp.pop %v6199
    %v6227 = vmul.f32 1.0, %v6226
    %v6228 = vrcp.pop %v6200
    %v6229 = vmul.f32 1.0, %v6228
    %v6230 = vrcp.pop %v6201
    %v6231 = vmul.f32 1.0, %v6230
    %v6232 = vrcp.pop %v6202
    %v6233 = vmul.f32 1.0, %v6232
    %v6234 = vrcp.pop %v6203
    %v6235 = vmul.f32 1.0, %v6234
    %v6236 = vxor.u32 %v6109, 2147483648
    %v6237 = vxor.u32 %v6111, 2147483648
    %v6238 = vxor.u32 %v6113, 2147483648
    %v6239 = vxor.u32 %v6115, 2147483648
    %v6240 = vxor.u32 %v6117, 2147483648
    %v6241 = vxor.u32 %v6119, 2147483648
    %v6242 = vxor.u32 %v6121, 2147483648
    %v6243 = vxor.u32 %v6123, 2147483648
    %v6244 = vxor.u32 %v6125, 2147483648
    %v6245 = vxor.u32 %v6127, 2147483648
    %v6246 = vxor.u32 %v6129, 2147483648
    %v6247 = vxor.u32 %v6131, 2147483648
    %v6248 = vxor.u32 %v6133, 2147483648
    %v6249 = vxor.u32 %v6135, 2147483648
    %v6250 = vxor.u32 %v6137, 2147483648
    %v6251 = vxor.u32 %v6139, 2147483648
    %v6252 = vmul.f32 %v6236, 1.442695
    %v6253 = vpow.pop %v6252
    %v6254 = vmul.f32 %v6237, 1.442695
    %v6255 = vpow.pop %v6254
    %v6256 = vmul.f32 %v6238, 1.442695
    %v6257 = vpow.pop %v6256
    %v6258 = vmul.f32 %v6239, 1.442695
    %v6259 = vpow.pop %v6258
    %v6260 = vmul.f32 %v6240, 1.442695
    %v6261 = vpow.pop %v6260
    %v6262 = vmul.f32 %v6241, 1.442695
    %v6263 = vpow.pop %v6262
    %v6264 = vmul.f32 %v6242, 1.442695
    %v6265 = vpow.pop %v6264
    %v6266 = vmul.f32 %v6243, 1.442695
    %v6267 = vpow.pop %v6266
    %v6268 = vmul.f32 %v6244, 1.442695
    %v6269 = vpow.pop %v6268
    %v6270 = vmul.f32 %v6245, 1.442695
    %v6271 = vpow.pop %v6270
    %v6272 = vmul.f32 %v6246, 1.442695
    %v6273 = vpow.pop %v6272
    %v6274 = vmul.f32 %v6247, 1.442695
    %v6275 = vpow.pop %v6274
    %v6276 = vmul.f32 %v6248, 1.442695
    %v6277 = vpow.pop %v6276
    %v6278 = vmul.f32 %v6249, 1.442695
    %v6279 = vpow.pop %v6278
    %v6280 = vmul.f32 %v6250, 1.442695
    %v6281 = vpow.pop %v6280
    %v6282 = vmul.f32 %v6251, 1.442695
    %v6283 = vpow.pop %v6282
    %v6284 = vadd.f32 %v6253, 1.0
    %v6285 = vadd.f32 %v6255, 1.0
    %v6286 = vadd.f32 %v6257, 1.0
    %v6287 = vadd.f32 %v6259, 1.0
    %v6288 = vadd.f32 %v6261, 1.0
    %v6289 = vadd.f32 %v6263, 1.0
    %v6290 = vadd.f32 %v6265, 1.0
    %v6291 = vadd.f32 %v6267, 1.0
    %v6292 = vadd.f32 %v6269, 1.0
    %v6293 = vadd.f32 %v6271, 1.0
    %v6294 = vadd.f32 %v6273, 1.0
    %v6295 = vadd.f32 %v6275, 1.0
    %v6296 = vadd.f32 %v6277, 1.0
    %v6297 = vadd.f32 %v6279, 1.0
    %v6298 = vadd.f32 %v6281, 1.0
    %v6299 = vadd.f32 %v6283, 1.0
    %v6300 = vrcp.pop %v6284
    %v6301 = vmul.f32 1.0, %v6300
    %v6302 = vrcp.pop %v6285
    %v6303 = vmul.f32 1.0, %v6302
    %v6304 = vrcp.pop %v6286
    %v6305 = vmul.f32 1.0, %v6304
    %v6306 = vrcp.pop %v6287
    %v6307 = vmul.f32 1.0, %v6306
    %v6308 = vrcp.pop %v6288
    %v6309 = vmul.f32 1.0, %v6308
    %v6310 = vrcp.pop %v6289
    %v6311 = vmul.f32 1.0, %v6310
    %v6312 = vrcp.pop %v6290
    %v6313 = vmul.f32 1.0, %v6312
    %v6314 = vrcp.pop %v6291
    %v6315 = vmul.f32 1.0, %v6314
    %v6316 = vrcp.pop %v6292
    %v6317 = vmul.f32 1.0, %v6316
    %v6318 = vrcp.pop %v6293
    %v6319 = vmul.f32 1.0, %v6318
    %v6320 = vrcp.pop %v6294
    %v6321 = vmul.f32 1.0, %v6320
    %v6322 = vrcp.pop %v6295
    %v6323 = vmul.f32 1.0, %v6322
    %v6324 = vrcp.pop %v6296
    %v6325 = vmul.f32 1.0, %v6324
    %v6326 = vrcp.pop %v6297
    %v6327 = vmul.f32 1.0, %v6326
    %v6328 = vrcp.pop %v6298
    %v6329 = vmul.f32 1.0, %v6328
    %v6330 = vrcp.pop %v6299
    %v6331 = vmul.f32 1.0, %v6330
    %v6332 = vtanh.pop %v6109
    %v6333 = vtanh.pop %v6111
    %v6334 = vtanh.pop %v6113
    %v6335 = vtanh.pop %v6115
    %v6336 = vtanh.pop %v6117
    %v6337 = vtanh.pop %v6119
    %v6338 = vtanh.pop %v6121
    %v6339 = vtanh.pop %v6123
    %v6340 = vtanh.pop %v6125
    %v6341 = vtanh.pop %v6127
    %v6342 = vtanh.pop %v6129
    %v6343 = vtanh.pop %v6131
    %v6344 = vtanh.pop %v6133
    %v6345 = vtanh.pop %v6135
    %v6346 = vtanh.pop %v6137
    %v6347 = vtanh.pop %v6139
    %v6348 = vmul.f32 %v6205, %v5690
    %v6349 = vmul.f32 %v6207, %v5691
    %v6350 = vmul.f32 %v6209, %v5692
    %v6351 = vmul.f32 %v6211, %v5693
    %v6352 = vmul.f32 %v6213, %v5694
    %v6353 = vmul.f32 %v6215, %v5695
    %v6354 = vmul.f32 %v6217, %v5696
    %v6355 = vmul.f32 %v6219, %v5697
    %v6356 = vmul.f32 %v6221, %v5698
    %v6357 = vmul.f32 %v6223, %v5699
    %v6358 = vmul.f32 %v6225, %v5700
    %v6359 = vmul.f32 %v6227, %v5701
    %v6360 = vmul.f32 %v6229, %v5702
    %v6361 = vmul.f32 %v6231, %v5703
    %v6362 = vmul.f32 %v6233, %v5704
    %v6363 = vmul.f32 %v6235, %v5705
    %6380 = vrot.lane.b32.xlu0 %v6332, 64
    %v6381 = vpop.permute.xlu0 %6380
    %6382 = vrot.lane.b32.xlu0 %v6333, 64
    %v6383 = vpop.permute.xlu0 %6382
    %6384 = vrot.lane.b32.xlu0 %v6334, 64
    %v6385 = vpop.permute.xlu0 %6384
    %6386 = vrot.lane.b32.xlu0 %v6335, 64
    %v6387 = vpop.permute.xlu0 %6386
    %6388 = vrot.lane.b32.xlu0 %v6336, 64
    %v6389 = vpop.permute.xlu0 %6388
    %6390 = vrot.lane.b32.xlu0 %v6337, 64
    %v6391 = vpop.permute.xlu0 %6390
    %6392 = vrot.lane.b32.xlu0 %v6338, 64
    %v6393 = vpop.permute.xlu0 %6392
    %6394 = vrot.lane.b32.xlu0 %v6339, 64
    %v6395 = vpop.permute.xlu0 %6394
    %6396 = vrot.lane.b32.xlu0 %v6340, 64
    %v6397 = vpop.permute.xlu0 %6396
    %6398 = vrot.lane.b32.xlu0 %v6341, 64
    %v6399 = vpop.permute.xlu0 %6398
    %6400 = vrot.lane.b32.xlu0 %v6342, 64
    %v6401 = vpop.permute.xlu0 %6400
    %6402 = vrot.lane.b32.xlu0 %v6343, 64
    %v6403 = vpop.permute.xlu0 %6402
    %6404 = vrot.lane.b32.xlu0 %v6344, 64
    %v6405 = vpop.permute.xlu0 %6404
    %6406 = vrot.lane.b32.xlu0 %v6345, 64
    %v6407 = vpop.permute.xlu0 %6406
    %6408 = vrot.lane.b32.xlu0 %v6346, 64
    %v6409 = vpop.permute.xlu0 %6408
    %6410 = vrot.lane.b32.xlu0 %v6347, 64
    %v6411 = vpop.permute.xlu0 %6410
    %v6428 = vmul.f32 %v6205, %v6381
    %v6429 = vmul.f32 %v6207, %v6383
    %v6430 = vmul.f32 %v6209, %v6385
    %v6431 = vmul.f32 %v6211, %v6387
    %v6432 = vmul.f32 %v6213, %v6389
    %v6433 = vmul.f32 %v6215, %v6391
    %v6434 = vmul.f32 %v6217, %v6393
    %v6435 = vmul.f32 %v6219, %v6395
    %v6436 = vmul.f32 %v6221, %v6397
    %v6437 = vmul.f32 %v6223, %v6399
    %v6438 = vmul.f32 %v6225, %v6401
    %v6439 = vmul.f32 %v6227, %v6403
    %v6440 = vmul.f32 %v6229, %v6405
    %v6441 = vmul.f32 %v6231, %v6407
    %v6442 = vmul.f32 %v6233, %v6409
    %v6443 = vmul.f32 %v6235, %v6411
    %6460 = vrot.lane.b32.xlu0 %v6428, 64
    %v6461 = vpop.permute.xlu0 %6460
    %6462 = vrot.lane.b32.xlu0 %v6429, 64
    %v6463 = vpop.permute.xlu0 %6462
    %6464 = vrot.lane.b32.xlu0 %v6430, 64
    %v6465 = vpop.permute.xlu0 %6464
    %6466 = vrot.lane.b32.xlu0 %v6431, 64
    %v6467 = vpop.permute.xlu0 %6466
    %6468 = vrot.lane.b32.xlu0 %v6432, 64
    %v6469 = vpop.permute.xlu0 %6468
    %6470 = vrot.lane.b32.xlu0 %v6433, 64
    %v6471 = vpop.permute.xlu0 %6470
    %6472 = vrot.lane.b32.xlu0 %v6434, 64
    %v6473 = vpop.permute.xlu0 %6472
    %6474 = vrot.lane.b32.xlu0 %v6435, 64
    %v6475 = vpop.permute.xlu0 %6474
    %6476 = vrot.lane.b32.xlu0 %v6436, 64
    %v6477 = vpop.permute.xlu0 %6476
    %6478 = vrot.lane.b32.xlu0 %v6437, 64
    %v6479 = vpop.permute.xlu0 %6478
    %6480 = vrot.lane.b32.xlu0 %v6438, 64
    %v6481 = vpop.permute.xlu0 %6480
    %6482 = vrot.lane.b32.xlu0 %v6439, 64
    %v6483 = vpop.permute.xlu0 %6482
    %6484 = vrot.lane.b32.xlu0 %v6440, 64
    %v6485 = vpop.permute.xlu0 %6484
    %6486 = vrot.lane.b32.xlu0 %v6441, 64
    %v6487 = vpop.permute.xlu0 %6486
    %6488 = vrot.lane.b32.xlu0 %v6442, 64
    %v6489 = vpop.permute.xlu0 %6488
    %6490 = vrot.lane.b32.xlu0 %v6443, 64
    %v6491 = vpop.permute.xlu0 %6490
    %v6508 = vadd.f32 %v6348, %v6461
    %v6509 = vadd.f32 %v6349, %v6463
    %v6510 = vadd.f32 %v6350, %v6465
    %v6511 = vadd.f32 %v6351, %v6467
    %v6512 = vadd.f32 %v6352, %v6469
    %v6513 = vadd.f32 %v6353, %v6471
    %v6514 = vadd.f32 %v6354, %v6473
    %v6515 = vadd.f32 %v6355, %v6475
    %v6516 = vadd.f32 %v6356, %v6477
    %v6517 = vadd.f32 %v6357, %v6479
    %v6518 = vadd.f32 %v6358, %v6481
    %v6519 = vadd.f32 %v6359, %v6483
    %v6520 = vadd.f32 %v6360, %v6485
    %v6521 = vadd.f32 %v6361, %v6487
    %v6522 = vadd.f32 %v6362, %v6489
    %v6523 = vadd.f32 %v6363, %v6491
    %v6524 = vtanh.pop %v6508
    %v6525 = vtanh.pop %v6509
    %v6526 = vtanh.pop %v6510
    %v6527 = vtanh.pop %v6511
    %v6528 = vtanh.pop %v6512
    %v6529 = vtanh.pop %v6513
    %v6530 = vtanh.pop %v6514
    %v6531 = vtanh.pop %v6515
    %v6532 = vtanh.pop %v6516
    %v6533 = vtanh.pop %v6517
    %v6534 = vtanh.pop %v6518
    %v6535 = vtanh.pop %v6519
    %v6536 = vtanh.pop %v6520
    %v6537 = vtanh.pop %v6521
    %v6538 = vtanh.pop %v6522
    %v6539 = vtanh.pop %v6523
    %6556 = vrot.lane.b32.xlu0 %v6524, 64
    %v6557 = vpop.permute.xlu0 %6556
    %6558 = vrot.lane.b32.xlu0 %v6525, 64
    %v6559 = vpop.permute.xlu0 %6558
    %6560 = vrot.lane.b32.xlu0 %v6526, 64
    %v6561 = vpop.permute.xlu0 %6560
    %6562 = vrot.lane.b32.xlu0 %v6527, 64
    %v6563 = vpop.permute.xlu0 %6562
    %6564 = vrot.lane.b32.xlu0 %v6528, 64
    %v6565 = vpop.permute.xlu0 %6564
    %6566 = vrot.lane.b32.xlu0 %v6529, 64
    %v6567 = vpop.permute.xlu0 %6566
    %6568 = vrot.lane.b32.xlu0 %v6530, 64
    %v6569 = vpop.permute.xlu0 %6568
    %6570 = vrot.lane.b32.xlu0 %v6531, 64
    %v6571 = vpop.permute.xlu0 %6570
    %6572 = vrot.lane.b32.xlu0 %v6532, 64
    %v6573 = vpop.permute.xlu0 %6572
    %6574 = vrot.lane.b32.xlu0 %v6533, 64
    %v6575 = vpop.permute.xlu0 %6574
    %6576 = vrot.lane.b32.xlu0 %v6534, 64
    %v6577 = vpop.permute.xlu0 %6576
    %6578 = vrot.lane.b32.xlu0 %v6535, 64
    %v6579 = vpop.permute.xlu0 %6578
    %6580 = vrot.lane.b32.xlu0 %v6536, 64
    %v6581 = vpop.permute.xlu0 %6580
    %6582 = vrot.lane.b32.xlu0 %v6537, 64
    %v6583 = vpop.permute.xlu0 %6582
    %6584 = vrot.lane.b32.xlu0 %v6538, 64
    %v6585 = vpop.permute.xlu0 %6584
    %6586 = vrot.lane.b32.xlu0 %v6539, 64
    %v6587 = vpop.permute.xlu0 %6586
    %v6604 = vmul.f32 %v6301, %v6557
    %v6605 = vmul.f32 %v6303, %v6559
    %v6606 = vmul.f32 %v6305, %v6561
    %v6607 = vmul.f32 %v6307, %v6563
    %v6608 = vmul.f32 %v6309, %v6565
    %v6609 = vmul.f32 %v6311, %v6567
    %v6610 = vmul.f32 %v6313, %v6569
    %v6611 = vmul.f32 %v6315, %v6571
    %v6612 = vmul.f32 %v6317, %v6573
    %v6613 = vmul.f32 %v6319, %v6575
    %v6614 = vmul.f32 %v6321, %v6577
    %v6615 = vmul.f32 %v6323, %v6579
    %v6616 = vmul.f32 %v6325, %v6581
    %v6617 = vmul.f32 %v6327, %v6583
    %v6618 = vmul.f32 %v6329, %v6585
    %v6619 = vmul.f32 %v6331, %v6587
    %v6620 = vpack.c.bf16 %v6605, %v6604
    %v6621 = vpack.c.bf16 %v6607, %v6606
    %v6622 = vpack.c.bf16 %v6609, %v6608
    %v6623 = vpack.c.bf16 %v6611, %v6610
    %v6624 = vpack.c.bf16 %v6613, %v6612
    %v6625 = vpack.c.bf16 %v6615, %v6614
    %v6626 = vpack.c.bf16 %v6617, %v6616
    %v6627 = vpack.c.bf16 %v6619, %v6618
    %v6628 = vld [vmem:[%s4] sm:$0xf]
    %v6629 = vld [vmem:[%s4 + $0x4] sm:$0xf]
    %v6630 = vld [vmem:[%s4 + $0x8] sm:$0xf]
    %v6631 = vld [vmem:[%s4 + $0xc] sm:$0xf]
    %v6632 = vld [vmem:[%s4 + $0x10] sm:$0xf]
    %v6633 = vld [vmem:[%s4 + $0x14] sm:$0xf]
    %v6634 = vld [vmem:[%s4 + $0x18] sm:$0xf]
    %v6635 = vld [vmem:[%s4 + $0x1c] sm:$0xf]
    %v6636 = vld [vmem:[%s5] sm:$0x1]
    %v6638 = vlaneseq
    %v6639 = vshrl.u32 %v6638, 7
    %v6640 = vsub.s32 0, %v6639
    %v6641 = vrot.slane %v6636, %v6640
    %v6651 = vunpack.c.l.b16 %v6628
    %v6652 = vunpack.c.l.b16 %v6629
    %v6653 = vunpack.c.l.b16 %v6630
    %v6654 = vunpack.c.l.b16 %v6631
    %v6655 = vunpack.c.l.b16 %v6632
    %v6656 = vunpack.c.l.b16 %v6633
    %v6657 = vunpack.c.l.b16 %v6634
    %v6658 = vunpack.c.l.b16 %v6635
    %v6659 = vpack.c.b16 %v6652, %v6651
    %v6660 = vpack.c.b16 %v6654, %v6653
    %v6661 = vpack.c.b16 %v6656, %v6655
    %v6662 = vpack.c.b16 %v6658, %v6657
    %v6668 = vsel %vm265, %v6620, 0
    %v6671 = vsel %vm265, %v6621, 0
    %v6674 = vsel %vm265, %v6622, 0
    %v6677 = vsel %vm265, %v6623, 0
    %v6680 = vsel %vm265, %v6624, 0
    %v6683 = vsel %vm265, %v6625, 0
    %v6686 = vsel %vm265, %v6626, 0
    %v6689 = vsel %vm265, %v6627, 0
    %6691 = vmatprep.subr.bf16.mxu0 0
    %6692 = vmatpush1.bf16.msra.mxu0 %v6659
    %6693 = vmatprep.subr.bf16.mxu0 0
    %6694 = vmatpush1.bf16.msra.mxu0 %v6660
    %6695 = vmatprep.subr.bf16.mxu0 0
    %6696 = vmatpush1.bf16.msra.mxu0 %v6661
    %6697 = vmatprep.subr.bf16.mxu0 0
    %6698 = vmatpush1.bf16.msra.mxu0 %v6662
    %6699 = vmatprep.subr.bf16.mxu0 0
    %6700 = vmatpush1.bf16.msra.mxu0 0
    %6701 = vmatprep.subr.bf16.mxu0 0
    %6702 = vmatpush1.bf16.msra.mxu0 0
    %6703 = vmatprep.subr.bf16.mxu0 0
    %6704 = vmatpush1.bf16.msra.mxu0 0
    %6705 = vmatprep.subr.bf16.mxu0 0
    %6706 = vmatpush1.bf16.msra.mxu0 0
    %6707 = vmatprep.subr.bf16.mxu0 0
    %6708 = vmatpush1.bf16.msra.mxu0 0
    %6709 = vmatprep.subr.bf16.mxu0 0
    %6710 = vmatpush1.bf16.msra.mxu0 0
    %6711 = vmatprep.subr.bf16.mxu0 0
    %6712 = vmatpush1.bf16.msra.mxu0 0
    %6713 = vmatprep.subr.bf16.mxu0 0
    %6714 = vmatpush1.bf16.msra.mxu0 0
    %6715 = vmatprep.subr.bf16.mxu0 0
    %6716 = vmatpush1.bf16.msra.mxu0 0
    %6717 = vmatprep.subr.bf16.mxu0 0
    %6718 = vmatpush1.bf16.msra.mxu0 0
    %6719 = vmatprep.subr.bf16.mxu0 0
    %6720 = vmatpush1.bf16.msra.mxu0 0
    %6721 = vmatprep.subr.bf16.mxu0 0
    %6722 = vmatpush1.bf16.msra.mxu0 0
    %6723 = vmatprep.mubr.bf16.mxu0 0
    %6724 = vmatmul.mubr.bf16.gmra.mrb[0].mxu0 %v6668
    %v6725 = vpop.f32.mrb[0].mxu0
    %v6726 = vadd.f32 %v6641, %v6725
    %v6727 = vpop.f32.mrb[0].mxu0
    %v6728 = vpop.f32.mrb[0].mxu0
    %v6729 = vadd.f32 %v6641, %v6728
    %v6730 = vpop.f32.mrb[0].mxu0
    %6731 = vmatprep.mubr.bf16.mxu0 0
    %6732 = vmatmul.mubr.bf16.gmra.mrb[0].mxu0 %v6671
    %v6733 = vpop.f32.mrb[0].mxu0
    %v6734 = vadd.f32 %v6641, %v6733
    %v6735 = vpop.f32.mrb[0].mxu0
    %v6736 = vpop.f32.mrb[0].mxu0
    %v6737 = vadd.f32 %v6641, %v6736
    %v6738 = vpop.f32.mrb[0].mxu0
    %6739 = vmatprep.mubr.bf16.mxu0 0
    %6740 = vmatmul.mubr.bf16.gmra.mrb[0].mxu0 %v6674
    %v6741 = vpop.f32.mrb[0].mxu0
    %v6742 = vadd.f32 %v6641, %v6741
    %v6743 = vpop.f32.mrb[0].mxu0
    %v6744 = vpop.f32.mrb[0].mxu0
    %v6745 = vadd.f32 %v6641, %v6744
    %v6746 = vpop.f32.mrb[0].mxu0
    %6747 = vmatprep.mubr.bf16.mxu0 0
    %6748 = vmatmul.mubr.bf16.gmra.mrb[0].mxu0 %v6677
    %v6749 = vpop.f32.mrb[0].mxu0
    %v6750 = vadd.f32 %v6641, %v6749
    %v6751 = vpop.f32.mrb[0].mxu0
    %v6752 = vpop.f32.mrb[0].mxu0
    %v6753 = vadd.f32 %v6641, %v6752
    %v6754 = vpop.f32.mrb[0].mxu0
    %6755 = vmatprep.mubr.bf16.mxu0 0
    %6756 = vmatmul.mubr.bf16.gmra.mrb[0].mxu0 %v6680
    %v6757 = vpop.f32.mrb[0].mxu0
    %v6758 = vadd.f32 %v6641, %v6757
    %v6759 = vpop.f32.mrb[0].mxu0
    %v6760 = vpop.f32.mrb[0].mxu0
    %v6761 = vadd.f32 %v6641, %v6760
    %v6762 = vpop.f32.mrb[0].mxu0
    %6763 = vmatprep.mubr.bf16.mxu0 0
    %6764 = vmatmul.mubr.bf16.gmra.mrb[0].mxu0 %v6683
    %v6765 = vpop.f32.mrb[0].mxu0
    %v6766 = vadd.f32 %v6641, %v6765
    %v6767 = vpop.f32.mrb[0].mxu0
    %v6768 = vpop.f32.mrb[0].mxu0
    %v6769 = vadd.f32 %v6641, %v6768
    %v6770 = vpop.f32.mrb[0].mxu0
    %6771 = vmatprep.mubr.bf16.mxu0 0
    %6772 = vmatmul.mubr.bf16.gmra.mrb[0].mxu0 %v6686
    %v6773 = vpop.f32.mrb[0].mxu0
    %v6774 = vadd.f32 %v6641, %v6773
    %v6775 = vpop.f32.mrb[0].mxu0
    %v6776 = vpop.f32.mrb[0].mxu0
    %v6777 = vadd.f32 %v6641, %v6776
    %v6778 = vpop.f32.mrb[0].mxu0
    %6779 = vmatprep.mubr.bf16.mxu0 0
    %6780 = vmatmul.mubr.bf16.gmra.mrb[0].mxu0 %v6689
    %v6781 = vpop.f32.mrb[0].mxu0
    %v6782 = vadd.f32 %v6641, %v6781
    %v6783 = vpop.f32.mrb[0].mxu0
    %v6784 = vpop.f32.mrb[0].mxu0
    %v6785 = vadd.f32 %v6641, %v6784
    %v6786 = vpop.f32.mrb[0].mxu0
    %6787 = vdwg.mxu0
    %v6788 = vmax.f32 %v6726, 0.0
    %v6789 = vmax.f32 %v6729, 0.0
    %v6790 = vmax.f32 %v6734, 0.0
    %v6791 = vmax.f32 %v6737, 0.0
    %v6792 = vmax.f32 %v6742, 0.0
    %v6793 = vmax.f32 %v6745, 0.0
    %v6794 = vmax.f32 %v6750, 0.0
    %v6795 = vmax.f32 %v6753, 0.0
    %v6796 = vmax.f32 %v6758, 0.0
    %v6797 = vmax.f32 %v6761, 0.0
    %v6798 = vmax.f32 %v6766, 0.0
    %v6799 = vmax.f32 %v6769, 0.0
    %v6800 = vmax.f32 %v6774, 0.0
    %v6801 = vmax.f32 %v6777, 0.0
    %v6802 = vmax.f32 %v6782, 0.0
    %v6803 = vmax.f32 %v6785, 0.0
    %v6804 = vld [vmem:[%s6] sm:$0x1]
    %v6806 = vlaneseq
    %v6807 = vshrl.u32 %v6806, 7
    %v6808 = vsub.s32 0, %v6807
    %v6809 = vrot.slane %v6804, %v6808
    %v6811 = vmul.f32 %v6788, %v6809
    %v6812 = vmul.f32 %v6789, %v6809
    %v6813 = vmul.f32 %v6790, %v6809
    %v6814 = vmul.f32 %v6791, %v6809
    %v6815 = vmul.f32 %v6792, %v6809
    %v6816 = vmul.f32 %v6793, %v6809
    %v6817 = vmul.f32 %v6794, %v6809
    %v6818 = vmul.f32 %v6795, %v6809
    %v6819 = vmul.f32 %v6796, %v6809
    %v6820 = vmul.f32 %v6797, %v6809
    %v6821 = vmul.f32 %v6798, %v6809
    %v6822 = vmul.f32 %v6799, %v6809
    %v6823 = vmul.f32 %v6800, %v6809
    %v6824 = vmul.f32 %v6801, %v6809
    %v6825 = vmul.f32 %v6802, %v6809
    %v6826 = vmul.f32 %v6803, %v6809
    %vm6827 = vcmask 261120
    %v6828 = vsel %vm6827, %v6811, 0.0
    %6829 = vadd.xlane.f32.xlu0 %v6828
    %v6830 = vpop.xlane.xlu0 %6829
    %v6831 = vsel %vm6827, %v6812, 0.0
    %6832 = vadd.xlane.f32.xlu0 %v6831
    %v6833 = vpop.xlane.xlu0 %6832
    %v6834 = vsel %vm6827, %v6813, 0.0
    %6835 = vadd.xlane.f32.xlu0 %v6834
    %v6836 = vpop.xlane.xlu0 %6835
    %v6837 = vsel %vm6827, %v6814, 0.0
    %6838 = vadd.xlane.f32.xlu0 %v6837
    %v6839 = vpop.xlane.xlu0 %6838
    %v6840 = vsel %vm6827, %v6815, 0.0
    %6841 = vadd.xlane.f32.xlu0 %v6840
    %v6842 = vpop.xlane.xlu0 %6841
    %v6843 = vsel %vm6827, %v6816, 0.0
    %6844 = vadd.xlane.f32.xlu0 %v6843
    %v6845 = vpop.xlane.xlu0 %6844
    %v6846 = vsel %vm6827, %v6817, 0.0
    %6847 = vadd.xlane.f32.xlu0 %v6846
    %v6848 = vpop.xlane.xlu0 %6847
    %v6849 = vsel %vm6827, %v6818, 0.0
    %6850 = vadd.xlane.f32.xlu0 %v6849
    %v6851 = vpop.xlane.xlu0 %6850
    %v6852 = vsel %vm6827, %v6819, 0.0
    %6853 = vadd.xlane.f32.xlu0 %v6852
    %v6854 = vpop.xlane.xlu0 %6853
    %v6855 = vsel %vm6827, %v6820, 0.0
    %6856 = vadd.xlane.f32.xlu0 %v6855
    %v6857 = vpop.xlane.xlu0 %6856
    %v6858 = vsel %vm6827, %v6821, 0.0
    %6859 = vadd.xlane.f32.xlu0 %v6858
    %v6860 = vpop.xlane.xlu0 %6859
    %v6861 = vsel %vm6827, %v6822, 0.0
    %6862 = vadd.xlane.f32.xlu0 %v6861
    %v6863 = vpop.xlane.xlu0 %6862
    %v6864 = vsel %vm6827, %v6823, 0.0
    %6865 = vadd.xlane.f32.xlu0 %v6864
    %v6866 = vpop.xlane.xlu0 %6865
    %v6867 = vsel %vm6827, %v6824, 0.0
    %6868 = vadd.xlane.f32.xlu0 %v6867
    %v6869 = vpop.xlane.xlu0 %6868
    %v6870 = vsel %vm6827, %v6825, 0.0
    %6871 = vadd.xlane.f32.xlu0 %v6870
    %v6872 = vpop.xlane.xlu0 %6871
    %v6873 = vsel %vm6827, %v6826, 0.0
    %6874 = vadd.xlane.f32.xlu0 %v6873
    %v6875 = vpop.xlane.xlu0 %6874
    %v6876 = vld [vmem:[#allocation2] sm:$0x1]
    %v6878 = vlaneseq
    %v6879 = vshrl.u32 %v6878, 7
    %v6880 = vsub.s32 0, %v6879
    %v6881 = vrot.slane %v6876, %v6880
    %v6883 = vadd.f32 %v6830, %v6881
    %v6884 = vadd.f32 %v6833, %v6881
    %v6885 = vadd.f32 %v6836, %v6881
    %v6886 = vadd.f32 %v6839, %v6881
    %v6887 = vadd.f32 %v6842, %v6881
    %v6888 = vadd.f32 %v6845, %v6881
    %v6889 = vadd.f32 %v6848, %v6881
    %v6890 = vadd.f32 %v6851, %v6881
    %v6891 = vadd.f32 %v6854, %v6881
    %v6892 = vadd.f32 %v6857, %v6881
    %v6893 = vadd.f32 %v6860, %v6881
    %v6894 = vadd.f32 %v6863, %v6881
    %v6895 = vadd.f32 %v6866, %v6881
    %v6896 = vadd.f32 %v6869, %v6881
    %v6897 = vadd.f32 %v6872, %v6881
    %v6898 = vadd.f32 %v6875, %v6881
    %6899 = vxpose.xlu0.b32.start [1/16] %v6883, 128
    %6900 = vxpose.xlu0.b32.cont [2/16] %v6884, 128
    %6901 = vxpose.xlu0.b32.cont [3/16] %v6885, 128
    %6902 = vxpose.xlu0.b32.cont [4/16] %v6886, 128
    %6903 = vxpose.xlu0.b32.cont [5/16] %v6887, 128
    %6904 = vxpose.xlu0.b32.cont [6/16] %v6888, 128
    %6905 = vxpose.xlu0.b32.cont [7/16] %v6889, 128
    %6906 = vxpose.xlu0.b32.cont [8/16] %v6890, 128
    %6907 = vxpose.xlu0.b32.cont [9/16] %v6891, 128
    %6908 = vxpose.xlu0.b32.cont [10/16] %v6892, 128
    %6909 = vxpose.xlu0.b32.cont [11/16] %v6893, 128
    %6910 = vxpose.xlu0.b32.cont [12/16] %v6894, 128
    %6911 = vxpose.xlu0.b32.cont [13/16] %v6895, 128
    %6912 = vxpose.xlu0.b32.cont [14/16] %v6896, 128
    %6913 = vxpose.xlu0.b32.cont [15/16] %v6897, 128
    %6914 = vxpose.xlu0.b32.end [16/16] %v6898, 128
    %v6915 = vpop.trf.xlu0
    %v6916 = vpop.trf.xlu0
    %v6917 = vpop.trf.xlu0
    %v6918 = vpop.trf.xlu0
    %v6919 = vpop.trf.xlu0
    %v6920 = vpop.trf.xlu0
    %v6921 = vpop.trf.xlu0
    %v6922 = vpop.trf.xlu0
    %v6923 = vpop.trf.xlu0
    %v6924 = vpop.trf.xlu0
    %v6925 = vpop.trf.xlu0
    %v6926 = vpop.trf.xlu0
    %v6927 = vpop.trf.xlu0
    %v6928 = vpop.trf.xlu0
    %v6929 = vpop.trf.xlu0
    %v6930 = vpop.trf.xlu0
    %6931 = vst [vmem:[#allocation3] sm:$0x1] %v6915
    // Predicated region
    $region34: #{tpu_custom_call.1} parent=1 // pred_check
      _
    $region35: #{tpu_custom_call.1} parent=1 // pred_check_branch
      %6933 = sbr.rel (0) target = $region37
    $region36: #{tpu_custom_call.1} parent=1 // pred_region
      %s6935 = ssub.s32 16, 16
      %6936 = vsyncadd [#allocation4], %s6935
      %s6938 = sshll.u32 [#allocation3], 4
      %s6939 = int_to_ptr.vmem [resolvable:$true] %s6938
      %6941 = dma.vmem_to_hbm [thread:$0]  %s6939, 16, %s8, [#allocation4]
    $region37: #{tpu_custom_call.1} parent=1 // pred_fallthru
      _
    // Predicated region
    $region38: #{tpu_custom_call.1} parent=1 // pred_check
      _
    $region39: #{tpu_custom_call.1} parent=1 // pred_check_branch
      %6943 = sbr.rel (0) target = $region41
    $region40: #{tpu_custom_call.1} parent=1 // pred_region
      %6944 = dma.done [#allocation4], 16
    $region41: #{tpu_custom_call.1} parent=1 // pred_fallthru
      _
    %6945 = vsyncpa [#allocation4], 1

</llo_original>
